<compile_context>
chip_gen: v5e
topology: v5e:2x2
jax: 0.10.0
libtpu: 0.0.40
codegen_flags: <defaults>
</compile_context>

<pallas_src>
import functools

import jax
import jax.numpy as jnp
from jax import lax
from jax.experimental import pallas as pl
from jax.experimental.pallas import tpu as pltpu

N_EMBD = 64
NUM_HEADS = 4
HEAD_SIZE = N_EMBD // NUM_HEADS  # 16


def _mha_kernel(x_ref, wqkv_ref, wp_ref, bp_ref, o_ref, *, num_heads):
    """One grid step = `block_b` batch rows. All heads + output projection.

    x_ref    : (Bb, T, C)   VMEM, bf16
    wqkv_ref : (C, 3*C)     VMEM, bf16   fused [Wq*scale | Wk | Wv], each (C, H*hs)
    wp_ref   : (C, C)       VMEM, bf16   pre-transposed proj weight
    bp_ref   : (1, C)       VMEM, f32    proj bias
    o_ref    : (Bb, T, C)   VMEM, f32
    """
    Bb, T, C = x_ref.shape
    H = num_heads
    hs = C // H
    M = Bb * T
    cdt = x_ref.dtype                         # compute (MXU operand) dtype, bf16

    # ---- fused, lane-dense QKV projection: (M, C) @ (C, 3C), f32 acc, drop to bf16 NOW ----
    # Every consumer re-casts to bf16 anyway; the early cast halves the live footprint of the
    # largest intermediate across the unrolled head loop (avoids spills at block_b = B).
    x2 = x_ref[...].reshape(M, C)
    qkv = jnp.dot(x2, wqkv_ref[...], preferred_element_type=jnp.float32).astype(cdt)

    # Additive causal mask, built + broadcast to (Bb, T, T) ONCE (hoisted out of the head loop).
    row = lax.broadcasted_iota(jnp.int32, (T, T), 0)
    col = lax.broadcasted_iota(jnp.int32, (T, T), 1)
    mask2d = jnp.where(col <= row, jnp.float32(0.0), jnp.float32(-1e30))
    mask_add = jnp.broadcast_to(mask2d[None], (Bb, T, T))

    # Proj-bias broadcast hoisted once as the accumulator seed.
    acc = jnp.broadcast_to(bp_ref[0].astype(jnp.float32)[None, :], (M, C))

    # NOTE: the module's C**-0.5 (n_embd, not head_size) scale is folded into Wq in the wrapper.
    for h in range(H):                        # H = 4, static -> unrolled
        q = qkv[:, h * hs:(h + 1) * hs].reshape(Bb, T, hs)
        k = qkv[:, C + h * hs:C + (h + 1) * hs].reshape(Bb, T, hs)
        v = qkv[:, 2 * C + h * hs:2 * C + (h + 1) * hs].reshape(Bb, T, hs)

        s = jnp.einsum('bqd,bkd->bqk', q, k,
                       preferred_element_type=jnp.float32) + mask_add   # (Bb, T, T) f32

        # numerically-stable softmax (f32); EUP reciprocal instead of a VALU divide
        m = jnp.max(s, axis=-1, keepdims=True)
        p = jnp.exp(s - m)
        denom = jnp.sum(p, axis=-1, keepdims=True)
        p = p * pl.reciprocal(denom, approx=True)
        # TODO(synk): attention dropout omitted (eval-mode semantics).

        o_h = jnp.einsum('bqk,bkd->bqd', p.astype(cdt), v,
                         preferred_element_type=jnp.float32)             # (Bb, T, hs) f32

        # Fold the head concat into the output projection (no lane-axis concatenate):
        acc = acc + jnp.dot(o_h.reshape(M, hs).astype(cdt),
                            wp_ref[h * hs:(h + 1) * hs, :],
                            preferred_element_type=jnp.float32)

    # TODO(synk): output dropout omitted (eval-mode semantics).
    o_ref[...] = acc.reshape(Bb, T, C).astype(o_ref.dtype)


@functools.partial(jax.jit, static_argnames=("block_b",))
def multi_head_attention(x, wq, wk, wv, wp, bp, *, block_b=None):
    """x: (B, T, C); wq/wk/wv: (H, C, hs); wp: (C, C); bp: (1, C) -> (B, T, C)."""
    B, T, C = x.shape
    H, _, hs = wq.shape
    assert H * hs == C

    if block_b is None:
        # Single grid step: on 1-TC chips (v5e/v6e) the batch grid is a serial loop whose
        # ~0.35 us/step fixed overhead dominates this ~us-scale kernel; one step also raises
        # the matmul M-dim to B*T.  On v7x, benchmark block_b=B//2 (core split) vs B.
        block_b = B
    assert B % block_b == 0

    cdt = jnp.bfloat16
    scale = float(C) ** -0.5   # module uses n_embd**-0.5 (NOT head_size**-0.5) — kept as-is.

    # Lane-dense weight layout: (C, H*hs) per projection, fused to (C, 3*C); cast ONCE here.
    # The score scale is folded into the Q columns (one-time 64x64 weight scale).
    w_q = jnp.transpose(wq, (1, 0, 2)).reshape(C, H * hs) * scale
    w_k = jnp.transpose(wk, (1, 0, 2)).reshape(C, H * hs)
    w_v = jnp.transpose(wv, (1, 0, 2)).reshape(C, H * hs)
    w_qkv = jnp.concatenate([w_q, w_k, w_v], axis=-1).astype(cdt)   # (C, 3C)
    wp_c = wp.astype(cdt)
    bp_f = bp.astype(jnp.float32)
    x_c = x.astype(cdt)

    kernel = functools.partial(_mha_kernel, num_heads=H)

    # Advisory cost estimate so XLA can schedule/overlap this small custom call.
    flops = (2 * B * T * C * (3 * C)              # fused QKV projection
             + 4 * B * H * T * T * hs             # scores + PV
             + 2 * B * T * C * C)                 # output projection
    transcendentals = B * H * T * T + B * H * T   # exp + approx reciprocal
    bytes_accessed = (B * T * C * 2                               # x (bf16)
                      + C * (3 * C) * 2 + C * C * 2 + C * 4       # weights + bias
                      + B * T * C * 4)                            # output (f32)
    cost = pl.CostEstimate(flops=flops, transcendentals=transcendentals,
                           bytes_accessed=bytes_accessed)

    return pl.pallas_call(
        kernel,
        out_shape=jax.ShapeDtypeStruct((B, T, C), x.dtype),
        grid_spec=pltpu.PrefetchScalarGridSpec(
            num_scalar_prefetch=0,
            grid=(B // block_b,),
            in_specs=[
                pl.BlockSpec((block_b, T, C), lambda i: (i, 0, 0)),   # x, batch-blocked
                pl.BlockSpec((C, 3 * C), lambda i: (0, 0)),           # fused QKV weight
                pl.BlockSpec((C, C), lambda i: (0, 0)),               # proj weight
                pl.BlockSpec((1, C), lambda i: (0, 0)),               # proj bias
            ],
            out_specs=pl.BlockSpec((block_b, T, C), lambda i: (i, 0, 0)),
        ),
        compiler_params=pltpu.CompilerParams(
            dimension_semantics=("parallel",)),
        cost_estimate=cost,
    )(x_c, w_qkv, wp_c, bp_f)


def _reference(x, wq, wk, wv, wp, bp):
    """Pure-JAX f32 reference mirroring the PyTorch forward (eval mode)."""
    B, T, C = x.shape
    H, _, hs = wq.shape
    scale = C ** -0.5
    causal = jnp.tril(jnp.ones((T, T), dtype=bool))
    outs = []
    for h in range(H):
        q = x @ wq[h]
        k = x @ wk[h]
        v = x @ wv[h]
        wei = (q @ jnp.swapaxes(k, -2, -1)) * scale
        wei = jnp.where(causal[None], wei, -jnp.inf)
        wei = jax.nn.softmax(wei, axis=-1)
        outs.append(wei @ v)
    cat = jnp.concatenate(outs, axis=-1)
    return cat @ wp + bp[0]


if __name__ == "__main__":
    key = jax.random.PRNGKey(0)
    B, T = 8, 32
    C, H, hs = N_EMBD, NUM_HEADS, HEAD_SIZE

    k_x, k_q, k_k, k_v, k_p, k_b = jax.random.split(key, 6)
    x = jax.random.normal(k_x, (B, T, C), dtype=jnp.float32)

    # Deterministic synthetic parameters (pre-transposed: (H, in, out) / (in, out)).
    wq = jax.random.normal(k_q, (H, C, hs), dtype=jnp.float32) * 0.02
    wk = jax.random.normal(k_k, (H, C, hs), dtype=jnp.float32) * 0.02
    wv = jax.random.normal(k_v, (H, C, hs), dtype=jnp.float32) * 0.02
    wp = jax.random.normal(k_p, (C, C), dtype=jnp.float32) * 0.02
    bp = (jax.random.normal(k_b, (1, C), dtype=jnp.float32) * 0.02)

    out = multi_head_attention(x, wq, wk, wv, wp, bp)
    out = jax.block_until_ready(out)

    ref = _reference(x, wq, wk, wv, wp, bp)
    assert out.shape == (B, T, C)
    # bf16 matmul operands (f32 accumulation/softmax) -> loose-ish tolerance vs f32 reference.
    assert jnp.allclose(out, ref, atol=1e-2, rtol=1e-2), "mismatch vs pure-JAX reference"

    print("KERNEL_OK")
</pallas_src>

<mosaic_0001>
module attributes {stable_mosaic.version = 11 : i64} {
  func.func @_mha_kernel(%arg0: i32, %arg1: memref<8x32x64xbf16, #tpu.memory_space<vmem>>, %arg2: memref<64x192xbf16, #tpu.memory_space<vmem>>, %arg3: memref<64x64xbf16, #tpu.memory_space<vmem>>, %arg4: memref<1x64xf32, #tpu.memory_space<vmem>>, %arg5: memref<8x32x64xf32, #tpu.memory_space<vmem>>) attributes {dimension_semantics = [#tpu.dimension_semantics<parallel>], iteration_bounds = array<i64: 1>, scalar_prefetch = 0 : i64, scratch_operands = 0 : i64, tpu.core_type = #tpu.core_type<tc>, window_params = [{transform_indices = @transform_0, window_bounds = array<i64: 8, 32, 64>}, {pipeline_mode = #tpu.pipeline_mode<synchronous>, transform_indices = @transform_1, window_bounds = array<i64: 64, 192>}, {pipeline_mode = #tpu.pipeline_mode<synchronous>, transform_indices = @transform_2, window_bounds = array<i64: 64, 64>}, {pipeline_mode = #tpu.pipeline_mode<synchronous>, transform_indices = @transform_3, window_bounds = array<i64: 1, 64>}, {transform_indices = @transform_4, window_bounds = array<i64: 8, 32, 64>}]} {
    %c0 = arith.constant 0 : index
    %c0_0 = arith.constant 0 : index
    %c0_1 = arith.constant 0 : index
    %0 = vector.load %arg1[%c0, %c0_0, %c0_1] : memref<8x32x64xbf16, #tpu.memory_space<vmem>>, vector<8x32x64xbf16>
    %1 = vector.shape_cast %0 : vector<8x32x64xbf16> to vector<256x64xbf16>
    %c0_2 = arith.constant 0 : index
    %c0_3 = arith.constant 0 : index
    %2 = vector.load %arg2[%c0_2, %c0_3] : memref<64x192xbf16, #tpu.memory_space<vmem>>, vector<64x192xbf16>
    %cst = arith.constant dense<0.000000e+00> : vector<256x192xf32>
    %3 = tpu.matmul %1, %2, %cst {dimension_numbers = #tpu.dot_dimension_numbers<[1], [0], [0], [1], [0, 0, 1, 1], [], []>} : vector<256x64xbf16>, vector<64x192xbf16>, vector<256x192xf32> -> vector<256x192xf32>
    %4 = arith.truncf %3 : vector<256x192xf32> to vector<256x192xbf16>
    %5 = tpu.iota {dimensions = array<i32: 0>} : vector<32x32xi32>
    %6 = tpu.iota {dimensions = array<i32: 1>} : vector<32x32xi32>
    %7 = arith.cmpi sle, %6, %5 : vector<32x32xi32>
    %cst_4 = arith.constant 0.000000e+00 : f32
    %cst_5 = arith.constant -1.000000e+30 : f32
    %8 = vector.broadcast %cst_4 : f32 to vector<32x32xf32>
    %9 = vector.broadcast %cst_5 : f32 to vector<32x32xf32>
    %10 = arith.select %7, %8, %9 : vector<32x32xi1>, vector<32x32xf32>
    %11 = vector.shape_cast %10 : vector<32x32xf32> to vector<1x32x32xf32>
    %12 = vector.shape_cast %11 : vector<1x32x32xf32> to vector<1x32x32xf32>
    %13 = vector.broadcast %12 : vector<1x32x32xf32> to vector<8x32x32xf32>
    %c0_6 = arith.constant 0 : index
    %c0_7 = arith.constant 0 : index
    %14 = vector.load %arg4[%c0_6, %c0_7] : memref<1x64xf32, #tpu.memory_space<vmem>>, vector<1x64xf32>
    %15 = vector.shape_cast %14 : vector<1x64xf32> to vector<64xf32>
    %16 = vector.shape_cast %15 : vector<64xf32> to vector<1x64xf32>
    %17 = vector.shape_cast %16 : vector<1x64xf32> to vector<1x64xf32>
    %18 = vector.broadcast %17 : vector<1x64xf32> to vector<256x64xf32>
    %19 = vector.extract_strided_slice %4 {offsets = [0, 0], sizes = [256, 16], strides = [1, 1]} : vector<256x192xbf16> to vector<256x16xbf16>
    %20 = vector.shape_cast %19 : vector<256x16xbf16> to vector<8x32x16xbf16>
    %21 = vector.extract_strided_slice %4 {offsets = [0, 64], sizes = [256, 16], strides = [1, 1]} : vector<256x192xbf16> to vector<256x16xbf16>
    %22 = vector.shape_cast %21 : vector<256x16xbf16> to vector<8x32x16xbf16>
    %23 = vector.extract_strided_slice %4 {offsets = [0, 128], sizes = [256, 16], strides = [1, 1]} : vector<256x192xbf16> to vector<256x16xbf16>
    %24 = vector.shape_cast %23 : vector<256x16xbf16> to vector<8x32x16xbf16>
    "tpu.trace_start"() <{level = 10 : i32, message = "bqd,bkd->bqk"}> : () -> ()
    %cst_8 = arith.constant dense<0.000000e+00> : vector<8x32x32xf32>
    %25 = tpu.matmul %20, %22, %cst_8 {dimension_numbers = #tpu.dot_dimension_numbers<[2], [2], [1], [1], [0, 0, 0, 1, 1, 1], [0], [0]>} : vector<8x32x16xbf16>, vector<8x32x16xbf16>, vector<8x32x32xf32> -> vector<8x32x32xf32>
    "tpu.trace_stop"() : () -> ()
    %26 = arith.addf %25, %13 : vector<8x32x32xf32>
    %cst_9 = arith.constant dense<0xFF800000> : vector<8x32xf32>
    %27 = vector.multi_reduction <maximumf>, %26, %cst_9 [2] : vector<8x32x32xf32> to vector<8x32xf32>
    %28 = vector.shape_cast %27 : vector<8x32xf32> to vector<8x32x1xf32>
    %29 = vector.broadcast %28 : vector<8x32x1xf32> to vector<8x32x32xf32>
    %30 = arith.subf %26, %29 : vector<8x32x32xf32>
    %31 = math.exp %30 : vector<8x32x32xf32>
    %cst_10 = arith.constant dense<0.000000e+00> : vector<8x32xf32>
    %32 = vector.multi_reduction <add>, %31, %cst_10 [2] : vector<8x32x32xf32> to vector<8x32xf32>
    %33 = vector.shape_cast %32 : vector<8x32xf32> to vector<8x32x1xf32>
    %34 = tpu.reciprocal %33 {approx = true} : vector<8x32x1xf32> -> vector<8x32x1xf32>
    %35 = vector.broadcast %34 : vector<8x32x1xf32> to vector<8x32x32xf32>
    %36 = arith.mulf %31, %35 : vector<8x32x32xf32>
    %37 = arith.truncf %36 : vector<8x32x32xf32> to vector<8x32x32xbf16>
    "tpu.trace_start"() <{level = 10 : i32, message = "bqk,bkd->bqd"}> : () -> ()
    %cst_11 = arith.constant dense<0.000000e+00> : vector<8x32x16xf32>
    %38 = tpu.matmul %37, %24, %cst_11 {dimension_numbers = #tpu.dot_dimension_numbers<[2], [1], [1], [2], [0, 0, 0, 1, 1, 2], [0], [0]>} : vector<8x32x32xbf16>, vector<8x32x16xbf16>, vector<8x32x16xf32> -> vector<8x32x16xf32>
    "tpu.trace_stop"() : () -> ()
    %39 = vector.shape_cast %38 : vector<8x32x16xf32> to vector<256x16xf32>
    %40 = arith.truncf %39 : vector<256x16xf32> to vector<256x16xbf16>
    %c0_12 = arith.constant 0 : index
    %c0_13 = arith.constant 0 : index
    %41 = vector.load %arg3[%c0_12, %c0_13] : memref<64x64xbf16, #tpu.memory_space<vmem>>, vector<16x64xbf16>
    %cst_14 = arith.constant dense<0.000000e+00> : vector<256x64xf32>
    %42 = tpu.matmul %40, %41, %cst_14 {dimension_numbers = #tpu.dot_dimension_numbers<[1], [0], [0], [1], [0, 0, 1, 1], [], []>} : vector<256x16xbf16>, vector<16x64xbf16>, vector<256x64xf32> -> vector<256x64xf32>
    %43 = arith.addf %18, %42 : vector<256x64xf32>
    %44 = vector.extract_strided_slice %4 {offsets = [0, 16], sizes = [256, 16], strides = [1, 1]} : vector<256x192xbf16> to vector<256x16xbf16>
    %45 = vector.shape_cast %44 : vector<256x16xbf16> to vector<8x32x16xbf16>
    %46 = vector.extract_strided_slice %4 {offsets = [0, 80], sizes = [256, 16], strides = [1, 1]} : vector<256x192xbf16> to vector<256x16xbf16>
    %47 = vector.shape_cast %46 : vector<256x16xbf16> to vector<8x32x16xbf16>
    %48 = vector.extract_strided_slice %4 {offsets = [0, 144], sizes = [256, 16], strides = [1, 1]} : vector<256x192xbf16> to vector<256x16xbf16>
    %49 = vector.shape_cast %48 : vector<256x16xbf16> to vector<8x32x16xbf16>
    "tpu.trace_start"() <{level = 10 : i32, message = "bqd,bkd->bqk"}> : () -> ()
    %cst_15 = arith.constant dense<0.000000e+00> : vector<8x32x32xf32>
    %50 = tpu.matmul %45, %47, %cst_15 {dimension_numbers = #tpu.dot_dimension_numbers<[2], [2], [1], [1], [0, 0, 0, 1, 1, 1], [0], [0]>} : vector<8x32x16xbf16>, vector<8x32x16xbf16>, vector<8x32x32xf32> -> vector<8x32x32xf32>
    "tpu.trace_stop"() : () -> ()
    %51 = arith.addf %50, %13 : vector<8x32x32xf32>
    %cst_16 = arith.constant dense<0xFF800000> : vector<8x32xf32>
    %52 = vector.multi_reduction <maximumf>, %51, %cst_16 [2] : vector<8x32x32xf32> to vector<8x32xf32>
    %53 = vector.shape_cast %52 : vector<8x32xf32> to vector<8x32x1xf32>
    %54 = vector.broadcast %53 : vector<8x32x1xf32> to vector<8x32x32xf32>
    %55 = arith.subf %51, %54 : vector<8x32x32xf32>
    %56 = math.exp %55 : vector<8x32x32xf32>
    %cst_17 = arith.constant dense<0.000000e+00> : vector<8x32xf32>
    %57 = vector.multi_reduction <add>, %56, %cst_17 [2] : vector<8x32x32xf32> to vector<8x32xf32>
    %58 = vector.shape_cast %57 : vector<8x32xf32> to vector<8x32x1xf32>
    %59 = tpu.reciprocal %58 {approx = true} : vector<8x32x1xf32> -> vector<8x32x1xf32>
    %60 = vector.broadcast %59 : vector<8x32x1xf32> to vector<8x32x32xf32>
    %61 = arith.mulf %56, %60 : vector<8x32x32xf32>
    %62 = arith.truncf %61 : vector<8x32x32xf32> to vector<8x32x32xbf16>
    "tpu.trace_start"() <{level = 10 : i32, message = "bqk,bkd->bqd"}> : () -> ()
    %cst_18 = arith.constant dense<0.000000e+00> : vector<8x32x16xf32>
    %63 = tpu.matmul %62, %49, %cst_18 {dimension_numbers = #tpu.dot_dimension_numbers<[2], [1], [1], [2], [0, 0, 0, 1, 1, 2], [0], [0]>} : vector<8x32x32xbf16>, vector<8x32x16xbf16>, vector<8x32x16xf32> -> vector<8x32x16xf32>
    "tpu.trace_stop"() : () -> ()
    %64 = vector.shape_cast %63 : vector<8x32x16xf32> to vector<256x16xf32>
    %65 = arith.truncf %64 : vector<256x16xf32> to vector<256x16xbf16>
    %c16 = arith.constant 16 : index
    %c0_19 = arith.constant 0 : index
    %66 = vector.load %arg3[%c16, %c0_19] : memref<64x64xbf16, #tpu.memory_space<vmem>>, vector<16x64xbf16>
    %cst_20 = arith.constant dense<0.000000e+00> : vector<256x64xf32>
    %67 = tpu.matmul %65, %66, %cst_20 {dimension_numbers = #tpu.dot_dimension_numbers<[1], [0], [0], [1], [0, 0, 1, 1], [], []>} : vector<256x16xbf16>, vector<16x64xbf16>, vector<256x64xf32> -> vector<256x64xf32>
    %68 = arith.addf %43, %67 : vector<256x64xf32>
    %69 = vector.extract_strided_slice %4 {offsets = [0, 32], sizes = [256, 16], strides = [1, 1]} : vector<256x192xbf16> to vector<256x16xbf16>
    %70 = vector.shape_cast %69 : vector<256x16xbf16> to vector<8x32x16xbf16>
    %71 = vector.extract_strided_slice %4 {offsets = [0, 96], sizes = [256, 16], strides = [1, 1]} : vector<256x192xbf16> to vector<256x16xbf16>
    %72 = vector.shape_cast %71 : vector<256x16xbf16> to vector<8x32x16xbf16>
    %73 = vector.extract_strided_slice %4 {offsets = [0, 160], sizes = [256, 16], strides = [1, 1]} : vector<256x192xbf16> to vector<256x16xbf16>
    %74 = vector.shape_cast %73 : vector<256x16xbf16> to vector<8x32x16xbf16>
    "tpu.trace_start"() <{level = 10 : i32, message = "bqd,bkd->bqk"}> : () -> ()
    %cst_21 = arith.constant dense<0.000000e+00> : vector<8x32x32xf32>
    %75 = tpu.matmul %70, %72, %cst_21 {dimension_numbers = #tpu.dot_dimension_numbers<[2], [2], [1], [1], [0, 0, 0, 1, 1, 1], [0], [0]>} : vector<8x32x16xbf16>, vector<8x32x16xbf16>, vector<8x32x32xf32> -> vector<8x32x32xf32>
    "tpu.trace_stop"() : () -> ()
    %76 = arith.addf %75, %13 : vector<8x32x32xf32>
    %cst_22 = arith.constant dense<0xFF800000> : vector<8x32xf32>
    %77 = vector.multi_reduction <maximumf>, %76, %cst_22 [2] : vector<8x32x32xf32> to vector<8x32xf32>
    %78 = vector.shape_cast %77 : vector<8x32xf32> to vector<8x32x1xf32>
    %79 = vector.broadcast %78 : vector<8x32x1xf32> to vector<8x32x32xf32>
    %80 = arith.subf %76, %79 : vector<8x32x32xf32>
    %81 = math.exp %80 : vector<8x32x32xf32>
    %cst_23 = arith.constant dense<0.000000e+00> : vector<8x32xf32>
    %82 = vector.multi_reduction <add>, %81, %cst_23 [2] : vector<8x32x32xf32> to vector<8x32xf32>
    %83 = vector.shape_cast %82 : vector<8x32xf32> to vector<8x32x1xf32>
    %84 = tpu.reciprocal %83 {approx = true} : vector<8x32x1xf32> -> vector<8x32x1xf32>
    %85 = vector.broadcast %84 : vector<8x32x1xf32> to vector<8x32x32xf32>
    %86 = arith.mulf %81, %85 : vector<8x32x32xf32>
    %87 = arith.truncf %86 : vector<8x32x32xf32> to vector<8x32x32xbf16>
    "tpu.trace_start"() <{level = 10 : i32, message = "bqk,bkd->bqd"}> : () -> ()
    %cst_24 = arith.constant dense<0.000000e+00> : vector<8x32x16xf32>
    %88 = tpu.matmul %87, %74, %cst_24 {dimension_numbers = #tpu.dot_dimension_numbers<[2], [1], [1], [2], [0, 0, 0, 1, 1, 2], [0], [0]>} : vector<8x32x32xbf16>, vector<8x32x16xbf16>, vector<8x32x16xf32> -> vector<8x32x16xf32>
    "tpu.trace_stop"() : () -> ()
    %89 = vector.shape_cast %88 : vector<8x32x16xf32> to vector<256x16xf32>
    %90 = arith.truncf %89 : vector<256x16xf32> to vector<256x16xbf16>
    %c32 = arith.constant 32 : index
    %c0_25 = arith.constant 0 : index
    %91 = vector.load %arg3[%c32, %c0_25] : memref<64x64xbf16, #tpu.memory_space<vmem>>, vector<16x64xbf16>
    %cst_26 = arith.constant dense<0.000000e+00> : vector<256x64xf32>
    %92 = tpu.matmul %90, %91, %cst_26 {dimension_numbers = #tpu.dot_dimension_numbers<[1], [0], [0], [1], [0, 0, 1, 1], [], []>} : vector<256x16xbf16>, vector<16x64xbf16>, vector<256x64xf32> -> vector<256x64xf32>
    %93 = arith.addf %68, %92 : vector<256x64xf32>
    %94 = vector.extract_strided_slice %4 {offsets = [0, 48], sizes = [256, 16], strides = [1, 1]} : vector<256x192xbf16> to vector<256x16xbf16>
    %95 = vector.shape_cast %94 : vector<256x16xbf16> to vector<8x32x16xbf16>
    %96 = vector.extract_strided_slice %4 {offsets = [0, 112], sizes = [256, 16], strides = [1, 1]} : vector<256x192xbf16> to vector<256x16xbf16>
    %97 = vector.shape_cast %96 : vector<256x16xbf16> to vector<8x32x16xbf16>
    %98 = vector.extract_strided_slice %4 {offsets = [0, 176], sizes = [256, 16], strides = [1, 1]} : vector<256x192xbf16> to vector<256x16xbf16>
    %99 = vector.shape_cast %98 : vector<256x16xbf16> to vector<8x32x16xbf16>
    "tpu.trace_start"() <{level = 10 : i32, message = "bqd,bkd->bqk"}> : () -> ()
    %cst_27 = arith.constant dense<0.000000e+00> : vector<8x32x32xf32>
    %100 = tpu.matmul %95, %97, %cst_27 {dimension_numbers = #tpu.dot_dimension_numbers<[2], [2], [1], [1], [0, 0, 0, 1, 1, 1], [0], [0]>} : vector<8x32x16xbf16>, vector<8x32x16xbf16>, vector<8x32x32xf32> -> vector<8x32x32xf32>
    "tpu.trace_stop"() : () -> ()
    %101 = arith.addf %100, %13 : vector<8x32x32xf32>
    %cst_28 = arith.constant dense<0xFF800000> : vector<8x32xf32>
    %102 = vector.multi_reduction <maximumf>, %101, %cst_28 [2] : vector<8x32x32xf32> to vector<8x32xf32>
    %103 = vector.shape_cast %102 : vector<8x32xf32> to vector<8x32x1xf32>
    %104 = vector.broadcast %103 : vector<8x32x1xf32> to vector<8x32x32xf32>
    %105 = arith.subf %101, %104 : vector<8x32x32xf32>
    %106 = math.exp %105 : vector<8x32x32xf32>
    %cst_29 = arith.constant dense<0.000000e+00> : vector<8x32xf32>
    %107 = vector.multi_reduction <add>, %106, %cst_29 [2] : vector<8x32x32xf32> to vector<8x32xf32>
    %108 = vector.shape_cast %107 : vector<8x32xf32> to vector<8x32x1xf32>
    %109 = tpu.reciprocal %108 {approx = true} : vector<8x32x1xf32> -> vector<8x32x1xf32>
    %110 = vector.broadcast %109 : vector<8x32x1xf32> to vector<8x32x32xf32>
    %111 = arith.mulf %106, %110 : vector<8x32x32xf32>
    %112 = arith.truncf %111 : vector<8x32x32xf32> to vector<8x32x32xbf16>
    "tpu.trace_start"() <{level = 10 : i32, message = "bqk,bkd->bqd"}> : () -> ()
    %cst_30 = arith.constant dense<0.000000e+00> : vector<8x32x16xf32>
    %113 = tpu.matmul %112, %99, %cst_30 {dimension_numbers = #tpu.dot_dimension_numbers<[2], [1], [1], [2], [0, 0, 0, 1, 1, 2], [0], [0]>} : vector<8x32x32xbf16>, vector<8x32x16xbf16>, vector<8x32x16xf32> -> vector<8x32x16xf32>
    "tpu.trace_stop"() : () -> ()
    %114 = vector.shape_cast %113 : vector<8x32x16xf32> to vector<256x16xf32>
    %115 = arith.truncf %114 : vector<256x16xf32> to vector<256x16xbf16>
    %c48 = arith.constant 48 : index
    %c0_31 = arith.constant 0 : index
    %116 = vector.load %arg3[%c48, %c0_31] : memref<64x64xbf16, #tpu.memory_space<vmem>>, vector<16x64xbf16>
    %cst_32 = arith.constant dense<0.000000e+00> : vector<256x64xf32>
    %117 = tpu.matmul %115, %116, %cst_32 {dimension_numbers = #tpu.dot_dimension_numbers<[1], [0], [0], [1], [0, 0, 1, 1], [], []>} : vector<256x16xbf16>, vector<16x64xbf16>, vector<256x64xf32> -> vector<256x64xf32>
    %118 = arith.addf %93, %117 : vector<256x64xf32>
    %119 = vector.shape_cast %118 : vector<256x64xf32> to vector<8x32x64xf32>
    %c0_33 = arith.constant 0 : index
    %c0_34 = arith.constant 0 : index
    %c0_35 = arith.constant 0 : index
    %120 = vector.load %arg5[%c0_33, %c0_34, %c0_35] : memref<8x32x64xf32, #tpu.memory_space<vmem>>, vector<8x32x64xf32>
    tpu.vector_store %arg5[%c0_33, %c0_34, %c0_35], %119 {strides = array<i32>} : memref<8x32x64xf32, #tpu.memory_space<vmem>>, vector<8x32x64xf32>,
    return
  }
  func.func @transform_0(%arg0: i32) -> (i32, i32, i32) {
    %c0_i32 = arith.constant 0 : i32
    %c0_i32_0 = arith.constant 0 : i32
    %c0_i32_1 = arith.constant 0 : i32
    return %arg0, %c0_i32, %c0_i32_0 : i32, i32, i32
  }
  func.func @transform_1(%arg0: i32) -> (i32, i32) {
    %c0_i32 = arith.constant 0 : i32
    %c0_i32_0 = arith.constant 0 : i32
    %c0_i32_1 = arith.constant 0 : i32
    return %c0_i32, %c0_i32_0 : i32, i32
  }
  func.func @transform_2(%arg0: i32) -> (i32, i32) {
    %c0_i32 = arith.constant 0 : i32
    %c0_i32_0 = arith.constant 0 : i32
    %c0_i32_1 = arith.constant 0 : i32
    return %c0_i32, %c0_i32_0 : i32, i32
  }
  func.func @transform_3(%arg0: i32) -> (i32, i32) {
    %c0_i32 = arith.constant 0 : i32
    %c0_i32_0 = arith.constant 0 : i32
    %c0_i32_1 = arith.constant 0 : i32
    return %c0_i32, %c0_i32_0 : i32, i32
  }
  func.func @transform_4(%arg0: i32) -> (i32, i32, i32) {
    %c0_i32 = arith.constant 0 : i32
    %c0_i32_0 = arith.constant 0 : i32
    %c0_i32_1 = arith.constant 0 : i32
    return %arg0, %c0_i32, %c0_i32_0 : i32, i32, i32
  }
}

</mosaic_0001>

<llo_original>
// kernel: multi_head_attention.1
$region0: #{multi_head_attention.1}
  #allocation0 [shape = 'u32[]', space=smem, size = 0x4, offset = 0x4, fixed_abs, tag = 'smem constant byte address 0x4 - core index']
  #allocation1 [shape = 'u32[72,128]{1,0:T(1,128)}', space=vmem, size = 0x9000, scoped, tag = 'internal scratch']
  %s0 = inlined_call_operand.vmem [shape: bf16[8,32,64], index: 0, kind: input, shape index: {}]
  %s1 = inlined_call_operand.vmem [shape: bf16[64,192], index: 1, kind: input, shape index: {}]
  %s2 = inlined_call_operand.vmem [shape: bf16[64,64], index: 2, kind: input, shape index: {}]
  %s3 = inlined_call_operand.vmem [shape: f32[1,64], index: 3, kind: input, shape index: {}]
  %s4 = inlined_call_operand.hbm [shape: f32[8,32,64], index: 4, kind: output, shape index: {}]
  %s5 = sld [smem:[#allocation0]]
  $region26: #{multi_head_attention.1} parent=0
    _
  %s7 = ssub.s32 1, %s5
  %s8 = scalar_select 0, %s7, %s5
  $region1: #{multi_head_attention.1} parent=0
    #allocation2 [shape = 'u8[131072]{0}', space=vmem, size = 0x20000, scoped, tag = 'output window, operand 0, single buffered']
    #allocation3 [shape = 's32[1]{0}', space=sflag, size = 0x4, scoped, tag = 'scoped memory for multi_head_attention.1']
    %9 = vsyncpa [#allocation3], 0
    // Predicated region
    $region2: #{multi_head_attention.1} parent=1 // pred_check
      _
    $region3: #{multi_head_attention.1} parent=1 // pred_check_branch
      %11 = sbr.rel (0) target = $region5
    $region4: #{multi_head_attention.1} parent=1 // pred_region
      _
    $region5: #{multi_head_attention.1} parent=1 // pred_fallthru
      _
    // Predicated region
    $region6: #{multi_head_attention.1} parent=1 // pred_check
      _
    $region7: #{multi_head_attention.1} parent=1 // pred_check_branch
      %13 = sbr.rel (0) target = $region9
    $region8: #{multi_head_attention.1} parent=1 // pred_region
      _
    $region9: #{multi_head_attention.1} parent=1 // pred_fallthru
      _
    // Predicated region
    $region10: #{multi_head_attention.1} parent=1 // pred_check
      _
    $region11: #{multi_head_attention.1} parent=1 // pred_check_branch
      %15 = sbr.rel (0) target = $region13
    $region12: #{multi_head_attention.1} parent=1 // pred_region
      _
    $region13: #{multi_head_attention.1} parent=1 // pred_fallthru
      _
    // Predicated region
    $region14: #{multi_head_attention.1} parent=1 // pred_check
      _
    $region15: #{multi_head_attention.1} parent=1 // pred_check_branch
      %17 = sbr.rel (0) target = $region17
    $region16: #{multi_head_attention.1} parent=1 // pred_region
      _
    $region17: #{multi_head_attention.1} parent=1 // pred_fallthru
      _
    %v19 = vld [vmem:[%s0] sm:$0xf]
    %v20 = vld [vmem:[%s0 + $0x4] sm:$0xf]
    %v21 = vld [vmem:[%s0 + $0x8] sm:$0xf]
    %v22 = vld [vmem:[%s0 + $0xc] sm:$0xf]
    %v23 = vld [vmem:[%s0 + $0x10] sm:$0xf]
    %v24 = vld [vmem:[%s0 + $0x14] sm:$0xf]
    %v25 = vld [vmem:[%s0 + $0x18] sm:$0xf]
    %v26 = vld [vmem:[%s0 + $0x1c] sm:$0xf]
    %v27 = vld [vmem:[%s0 + $0x20] sm:$0xf]
    %v28 = vld [vmem:[%s0 + $0x24] sm:$0xf]
    %v29 = vld [vmem:[%s0 + $0x28] sm:$0xf]
    %v30 = vld [vmem:[%s0 + $0x2c] sm:$0xf]
    %v31 = vld [vmem:[%s0 + $0x30] sm:$0xf]
    %v32 = vld [vmem:[%s0 + $0x34] sm:$0xf]
    %v33 = vld [vmem:[%s0 + $0x38] sm:$0xf]
    %v34 = vld [vmem:[%s0 + $0x3c] sm:$0xf]
    %v35 = vld [vmem:[%s0 + $0x40] sm:$0xf]
    %v36 = vld [vmem:[%s0 + $0x44] sm:$0xf]
    %v37 = vld [vmem:[%s0 + $0x48] sm:$0xf]
    %v38 = vld [vmem:[%s0 + $0x4c] sm:$0xf]
    %v39 = vld [vmem:[%s0 + $0x50] sm:$0xf]
    %v40 = vld [vmem:[%s0 + $0x54] sm:$0xf]
    %v41 = vld [vmem:[%s0 + $0x58] sm:$0xf]
    %v42 = vld [vmem:[%s0 + $0x5c] sm:$0xf]
    %v43 = vld [vmem:[%s0 + $0x60] sm:$0xf]
    %v44 = vld [vmem:[%s0 + $0x64] sm:$0xf]
    %v45 = vld [vmem:[%s0 + $0x68] sm:$0xf]
    %v46 = vld [vmem:[%s0 + $0x6c] sm:$0xf]
    %v47 = vld [vmem:[%s0 + $0x70] sm:$0xf]
    %v48 = vld [vmem:[%s0 + $0x74] sm:$0xf]
    %v49 = vld [vmem:[%s0 + $0x78] sm:$0xf]
    %v50 = vld [vmem:[%s0 + $0x7c] sm:$0xf]
    %v51 = vld [vmem:[%s1] sm:$0xff]
    %v52 = vld [vmem:[%s1 + $0x8] sm:$0xff]
    %v53 = vld [vmem:[%s1 + $0x10] sm:$0xff]
    %v54 = vld [vmem:[%s1 + $0x18] sm:$0xff]
    %v55 = vld [vmem:[%s1 + $0x20] sm:$0xff]
    %v56 = vld [vmem:[%s1 + $0x28] sm:$0xff]
    %v57 = vld [vmem:[%s1 + $0x30] sm:$0xff]
    %v58 = vld [vmem:[%s1 + $0x38] sm:$0xff]
    %v91 = vunpack.c.l.b16 %v19
    %v92 = vunpack.c.l.b16 %v20
    %v93 = vunpack.c.l.b16 %v21
    %v94 = vunpack.c.l.b16 %v22
    %v95 = vunpack.c.l.b16 %v23
    %v96 = vunpack.c.l.b16 %v24
    %v97 = vunpack.c.l.b16 %v25
    %v98 = vunpack.c.l.b16 %v26
    %v99 = vunpack.c.l.b16 %v27
    %v100 = vunpack.c.l.b16 %v28
    %v101 = vunpack.c.l.b16 %v29
    %v102 = vunpack.c.l.b16 %v30
    %v103 = vunpack.c.l.b16 %v31
    %v104 = vunpack.c.l.b16 %v32
    %v105 = vunpack.c.l.b16 %v33
    %v106 = vunpack.c.l.b16 %v34
    %v107 = vunpack.c.l.b16 %v35
    %v108 = vunpack.c.l.b16 %v36
    %v109 = vunpack.c.l.b16 %v37
    %v110 = vunpack.c.l.b16 %v38
    %v111 = vunpack.c.l.b16 %v39
    %v112 = vunpack.c.l.b16 %v40
    %v113 = vunpack.c.l.b16 %v41
    %v114 = vunpack.c.l.b16 %v42
    %v115 = vunpack.c.l.b16 %v43
    %v116 = vunpack.c.l.b16 %v44
    %v117 = vunpack.c.l.b16 %v45
    %v118 = vunpack.c.l.b16 %v46
    %v119 = vunpack.c.l.b16 %v47
    %v120 = vunpack.c.l.b16 %v48
    %v121 = vunpack.c.l.b16 %v49
    %v122 = vunpack.c.l.b16 %v50
    %v123 = vpack.c.b16 %v92, %v91
    %v124 = vpack.c.b16 %v94, %v93
    %v125 = vpack.c.b16 %v96, %v95
    %v126 = vpack.c.b16 %v98, %v97
    %v127 = vpack.c.b16 %v100, %v99
    %v128 = vpack.c.b16 %v102, %v101
    %v129 = vpack.c.b16 %v104, %v103
    %v130 = vpack.c.b16 %v106, %v105
    %v131 = vpack.c.b16 %v108, %v107
    %v132 = vpack.c.b16 %v110, %v109
    %v133 = vpack.c.b16 %v112, %v111
    %v134 = vpack.c.b16 %v114, %v113
    %v135 = vpack.c.b16 %v116, %v115
    %v136 = vpack.c.b16 %v118, %v117
    %v137 = vpack.c.b16 %v120, %v119
    %v138 = vpack.c.b16 %v122, %v121
    %v147 = vunpack.c.l.b16 %v51
    %v148 = vunpack.c.h.b16 %v51
    %v149 = vunpack.c.l.b16 %v52
    %v150 = vunpack.c.h.b16 %v52
    %v151 = vunpack.c.l.b16 %v53
    %v152 = vunpack.c.h.b16 %v53
    %v153 = vunpack.c.l.b16 %v54
    %v154 = vunpack.c.h.b16 %v54
    %v155 = vunpack.c.l.b16 %v55
    %v156 = vunpack.c.h.b16 %v55
    %v157 = vunpack.c.l.b16 %v56
    %v158 = vunpack.c.h.b16 %v56
    %v159 = vunpack.c.l.b16 %v57
    %v160 = vunpack.c.h.b16 %v57
    %v161 = vunpack.c.l.b16 %v58
    %v162 = vunpack.c.h.b16 %v58
    %v163 = vpack.c.b16 %v149, %v147
    %v164 = vpack.c.b16 %v150, %v148
    %v165 = vpack.c.b16 %v153, %v151
    %v166 = vpack.c.b16 %v154, %v152
    %v167 = vpack.c.b16 %v157, %v155
    %v168 = vpack.c.b16 %v158, %v156
    %v169 = vpack.c.b16 %v161, %v159
    %v170 = vpack.c.b16 %v162, %v160
    %vm179 = vcmask 523264
    %v181 = vsel %vm179, %v123, 0
    %v184 = vsel %vm179, %v124, 0
    %v187 = vsel %vm179, %v125, 0
    %v190 = vsel %vm179, %v126, 0
    %v193 = vsel %vm179, %v127, 0
    %v196 = vsel %vm179, %v128, 0
    %v199 = vsel %vm179, %v129, 0
    %v202 = vsel %vm179, %v130, 0
    %v205 = vsel %vm179, %v131, 0
    %v208 = vsel %vm179, %v132, 0
    %v211 = vsel %vm179, %v133, 0
    %v214 = vsel %vm179, %v134, 0
    %v217 = vsel %vm179, %v135, 0
    %v220 = vsel %vm179, %v136, 0
    %v223 = vsel %vm179, %v137, 0
    %v226 = vsel %vm179, %v138, 0
    %228 = vmatpush.bf16.msra.mxu0 0
    %229 = vmatpush.bf16.msra.mxu0 0
    %230 = vmatpush.bf16.msra.mxu0 0
    %231 = vmatpush.bf16.msra.mxu0 0
    %232 = vmatpush.bf16.msra.mxu0 %v169
    %233 = vmatpush.bf16.msra.mxu0 %v167
    %234 = vmatpush.bf16.msra.mxu0 %v165
    %235 = vmatpush.bf16.msra.mxu0 %v163
    %236 = vmatmul.bf16.gmra.mxu0 %v181
    %v237 = vpop.f32.mrf.mxu0
    %v238 = vadd.f32 0.0, %v237
    %v239 = vpop.f32.mrf.mxu0
    %v240 = vadd.f32 0.0, %v239
    %241 = vmatmul.bf16.gmra.mxu0 %v184
    %v242 = vpop.f32.mrf.mxu0
    %v243 = vadd.f32 0.0, %v242
    %v244 = vpop.f32.mrf.mxu0
    %v245 = vadd.f32 0.0, %v244
    %246 = vmatmul.bf16.gmra.mxu0 %v187
    %v247 = vpop.f32.mrf.mxu0
    %v248 = vadd.f32 0.0, %v247
    %v249 = vpop.f32.mrf.mxu0
    %v250 = vadd.f32 0.0, %v249
    %251 = vmatmul.bf16.gmra.mxu0 %v190
    %v252 = vpop.f32.mrf.mxu0
    %v253 = vadd.f32 0.0, %v252
    %v254 = vpop.f32.mrf.mxu0
    %v255 = vadd.f32 0.0, %v254
    %256 = vmatmul.bf16.gmra.mxu0 %v193
    %v257 = vpop.f32.mrf.mxu0
    %v258 = vadd.f32 0.0, %v257
    %v259 = vpop.f32.mrf.mxu0
    %v260 = vadd.f32 0.0, %v259
    %261 = vmatmul.bf16.gmra.mxu0 %v196
    %v262 = vpop.f32.mrf.mxu0
    %v263 = vadd.f32 0.0, %v262
    %v264 = vpop.f32.mrf.mxu0
    %v265 = vadd.f32 0.0, %v264
    %266 = vmatmul.bf16.gmra.mxu0 %v199
    %v267 = vpop.f32.mrf.mxu0
    %v268 = vadd.f32 0.0, %v267
    %v269 = vpop.f32.mrf.mxu0
    %v270 = vadd.f32 0.0, %v269
    %271 = vmatmul.bf16.gmra.mxu0 %v202
    %v272 = vpop.f32.mrf.mxu0
    %v273 = vadd.f32 0.0, %v272
    %v274 = vpop.f32.mrf.mxu0
    %v275 = vadd.f32 0.0, %v274
    %276 = vmatmul.bf16.gmra.mxu0 %v205
    %v277 = vpop.f32.mrf.mxu0
    %v278 = vadd.f32 0.0, %v277
    %v279 = vpop.f32.mrf.mxu0
    %v280 = vadd.f32 0.0, %v279
    %281 = vmatmul.bf16.gmra.mxu0 %v208
    %v282 = vpop.f32.mrf.mxu0
    %v283 = vadd.f32 0.0, %v282
    %v284 = vpop.f32.mrf.mxu0
    %v285 = vadd.f32 0.0, %v284
    %286 = vmatmul.bf16.gmra.mxu0 %v211
    %v287 = vpop.f32.mrf.mxu0
    %v288 = vadd.f32 0.0, %v287
    %v289 = vpop.f32.mrf.mxu0
    %v290 = vadd.f32 0.0, %v289
    %291 = vmatmul.bf16.gmra.mxu0 %v214
    %v292 = vpop.f32.mrf.mxu0
    %v293 = vadd.f32 0.0, %v292
    %v294 = vpop.f32.mrf.mxu0
    %v295 = vadd.f32 0.0, %v294
    %296 = vmatmul.bf16.gmra.mxu0 %v217
    %v297 = vpop.f32.mrf.mxu0
    %v298 = vadd.f32 0.0, %v297
    %v299 = vpop.f32.mrf.mxu0
    %v300 = vadd.f32 0.0, %v299
    %301 = vmatmul.bf16.gmra.mxu0 %v220
    %v302 = vpop.f32.mrf.mxu0
    %v303 = vadd.f32 0.0, %v302
    %v304 = vpop.f32.mrf.mxu0
    %v305 = vadd.f32 0.0, %v304
    %306 = vmatmul.bf16.gmra.mxu0 %v223
    %v307 = vpop.f32.mrf.mxu0
    %v308 = vadd.f32 0.0, %v307
    %v309 = vpop.f32.mrf.mxu0
    %v310 = vadd.f32 0.0, %v309
    %311 = vmatmul.bf16.gmra.mxu0 %v226
    %v312 = vpop.f32.mrf.mxu0
    %v313 = vadd.f32 0.0, %v312
    %v314 = vpop.f32.mrf.mxu0
    %v315 = vadd.f32 0.0, %v314
    %316 = vdwg.mxu0
    %317 = vmatpush.bf16.msra.mxu0 0
    %318 = vmatpush.bf16.msra.mxu0 0
    %319 = vmatpush.bf16.msra.mxu0 0
    %320 = vmatpush.bf16.msra.mxu0 0
    %321 = vmatpush.bf16.msra.mxu0 %v170
    %322 = vmatpush.bf16.msra.mxu0 %v168
    %323 = vmatpush.bf16.msra.mxu0 %v166
    %324 = vmatpush.bf16.msra.mxu0 %v164
    %325 = vmatmul.bf16.gmra.mxu0 %v181
    %v326 = vpop.f32.mrf.mxu0
    %v327 = vadd.f32 0.0, %v326
    %v328 = vpop.f32.mrf.mxu0
    %v329 = vadd.f32 0.0, %v328
    %330 = vmatmul.bf16.gmra.mxu0 %v184
    %v331 = vpop.f32.mrf.mxu0
    %v332 = vadd.f32 0.0, %v331
    %v333 = vpop.f32.mrf.mxu0
    %v334 = vadd.f32 0.0, %v333
    %335 = vmatmul.bf16.gmra.mxu0 %v187
    %v336 = vpop.f32.mrf.mxu0
    %v337 = vadd.f32 0.0, %v336
    %v338 = vpop.f32.mrf.mxu0
    %v339 = vadd.f32 0.0, %v338
    %340 = vmatmul.bf16.gmra.mxu0 %v190
    %v341 = vpop.f32.mrf.mxu0
    %v342 = vadd.f32 0.0, %v341
    %v343 = vpop.f32.mrf.mxu0
    %v344 = vadd.f32 0.0, %v343
    %345 = vmatmul.bf16.gmra.mxu0 %v193
    %v346 = vpop.f32.mrf.mxu0
    %v347 = vadd.f32 0.0, %v346
    %v348 = vpop.f32.mrf.mxu0
    %v349 = vadd.f32 0.0, %v348
    %350 = vmatmul.bf16.gmra.mxu0 %v196
    %v351 = vpop.f32.mrf.mxu0
    %v352 = vadd.f32 0.0, %v351
    %v353 = vpop.f32.mrf.mxu0
    %v354 = vadd.f32 0.0, %v353
    %355 = vmatmul.bf16.gmra.mxu0 %v199
    %v356 = vpop.f32.mrf.mxu0
    %v357 = vadd.f32 0.0, %v356
    %v358 = vpop.f32.mrf.mxu0
    %v359 = vadd.f32 0.0, %v358
    %360 = vmatmul.bf16.gmra.mxu0 %v202
    %v361 = vpop.f32.mrf.mxu0
    %v362 = vadd.f32 0.0, %v361
    %v363 = vpop.f32.mrf.mxu0
    %v364 = vadd.f32 0.0, %v363
    %365 = vmatmul.bf16.gmra.mxu0 %v205
    %v366 = vpop.f32.mrf.mxu0
    %v367 = vadd.f32 0.0, %v366
    %v368 = vpop.f32.mrf.mxu0
    %v369 = vadd.f32 0.0, %v368
    %370 = vmatmul.bf16.gmra.mxu0 %v208
    %v371 = vpop.f32.mrf.mxu0
    %v372 = vadd.f32 0.0, %v371
    %v373 = vpop.f32.mrf.mxu0
    %v374 = vadd.f32 0.0, %v373
    %375 = vmatmul.bf16.gmra.mxu0 %v211
    %v376 = vpop.f32.mrf.mxu0
    %v377 = vadd.f32 0.0, %v376
    %v378 = vpop.f32.mrf.mxu0
    %v379 = vadd.f32 0.0, %v378
    %380 = vmatmul.bf16.gmra.mxu0 %v214
    %v381 = vpop.f32.mrf.mxu0
    %v382 = vadd.f32 0.0, %v381
    %v383 = vpop.f32.mrf.mxu0
    %v384 = vadd.f32 0.0, %v383
    %385 = vmatmul.bf16.gmra.mxu0 %v217
    %v386 = vpop.f32.mrf.mxu0
    %v387 = vadd.f32 0.0, %v386
    %v388 = vpop.f32.mrf.mxu0
    %v389 = vadd.f32 0.0, %v388
    %390 = vmatmul.bf16.gmra.mxu0 %v220
    %v391 = vpop.f32.mrf.mxu0
    %v392 = vadd.f32 0.0, %v391
    %v393 = vpop.f32.mrf.mxu0
    %v394 = vadd.f32 0.0, %v393
    %395 = vmatmul.bf16.gmra.mxu0 %v223
    %v396 = vpop.f32.mrf.mxu0
    %v397 = vadd.f32 0.0, %v396
    %v398 = vpop.f32.mrf.mxu0
    %v399 = vadd.f32 0.0, %v398
    %400 = vmatmul.bf16.gmra.mxu0 %v226
    %v401 = vpop.f32.mrf.mxu0
    %v402 = vadd.f32 0.0, %v401
    %v403 = vpop.f32.mrf.mxu0
    %v404 = vadd.f32 0.0, %v403
    %405 = vdwg.mxu0
    %v406 = vpack.c.bf16 %v327, %v238
    %v407 = vpack.c.bf16 %v329, %v240
    %v408 = vpack.c.bf16 %v332, %v243
    %v409 = vpack.c.bf16 %v334, %v245
    %v410 = vpack.c.bf16 %v337, %v248
    %v411 = vpack.c.bf16 %v339, %v250
    %v412 = vpack.c.bf16 %v342, %v253
    %v413 = vpack.c.bf16 %v344, %v255
    %v414 = vpack.c.bf16 %v347, %v258
    %v415 = vpack.c.bf16 %v349, %v260
    %v416 = vpack.c.bf16 %v352, %v263
    %v417 = vpack.c.bf16 %v354, %v265
    %v418 = vpack.c.bf16 %v357, %v268
    %v419 = vpack.c.bf16 %v359, %v270
    %v420 = vpack.c.bf16 %v362, %v273
    %v421 = vpack.c.bf16 %v364, %v275
    %v422 = vpack.c.bf16 %v367, %v278
    %v423 = vpack.c.bf16 %v369, %v280
    %v424 = vpack.c.bf16 %v372, %v283
    %v425 = vpack.c.bf16 %v374, %v285
    %v426 = vpack.c.bf16 %v377, %v288
    %v427 = vpack.c.bf16 %v379, %v290
    %v428 = vpack.c.bf16 %v382, %v293
    %v429 = vpack.c.bf16 %v384, %v295
    %v430 = vpack.c.bf16 %v387, %v298
    %v431 = vpack.c.bf16 %v389, %v300
    %v432 = vpack.c.bf16 %v392, %v303
    %v433 = vpack.c.bf16 %v394, %v305
    %v434 = vpack.c.bf16 %v397, %v308
    %v435 = vpack.c.bf16 %v399, %v310
    %v436 = vpack.c.bf16 %v402, %v313
    %v437 = vpack.c.bf16 %v404, %v315
    %v438 = vlaneseq
    %v439 = vshrl.u32 %v438, 7
    %v440 = vadd.s32 %v439, 8
    %v441 = vadd.s32 %v439, 16
    %v442 = vadd.s32 %v439, 24
    %v443 = vlaneseq
    %v444 = vand.u32 %v443, 127
    %vm445 = vcmp.le.s32.totalorder %v444, %v439
    %vm446 = vcmp.le.s32.totalorder %v444, %v440
    %vm447 = vcmp.le.s32.totalorder %v444, %v441
    %vm448 = vcmp.le.s32.totalorder %v444, %v442
    %v449 = vsel %vm445, 0.0, -1e+30
    %v450 = vsel %vm446, 0.0, -1e+30
    %v451 = vsel %vm447, 0.0, -1e+30
    %v452 = vsel %vm448, 0.0, -1e+30
    %v453 = vld [vmem:[%s3] sm:$0x1]
    %v455 = vperm.slane %v453, 0
    %v489 = vrot.slane %v406, 4
    %v490 = vrot.slane %v407, 4
    %v491 = vrot.slane %v408, 4
    %v492 = vrot.slane %v409, 4
    %v493 = vrot.slane %v410, 4
    %v494 = vrot.slane %v411, 4
    %v495 = vrot.slane %v412, 4
    %v496 = vrot.slane %v413, 4
    %v497 = vrot.slane %v414, 4
    %v498 = vrot.slane %v415, 4
    %v499 = vrot.slane %v416, 4
    %v500 = vrot.slane %v417, 4
    %v501 = vrot.slane %v418, 4
    %v502 = vrot.slane %v419, 4
    %v503 = vrot.slane %v420, 4
    %v504 = vrot.slane %v421, 4
    %v505 = vrot.slane %v422, 4
    %v506 = vrot.slane %v423, 4
    %v507 = vrot.slane %v424, 4
    %v508 = vrot.slane %v425, 4
    %v509 = vrot.slane %v426, 4
    %v510 = vrot.slane %v427, 4
    %v511 = vrot.slane %v428, 4
    %v512 = vrot.slane %v429, 4
    %v513 = vrot.slane %v430, 4
    %v514 = vrot.slane %v431, 4
    %v515 = vrot.slane %v432, 4
    %v516 = vrot.slane %v433, 4
    %v517 = vrot.slane %v434, 4
    %v518 = vrot.slane %v435, 4
    %v519 = vrot.slane %v436, 4
    %v520 = vrot.slane %v437, 4
    %v521 = vunpack.c.l.b16 %v406
    %v522 = vunpack.c.l.b16 %v407
    %v523 = vunpack.c.l.b16 %v408
    %v524 = vunpack.c.l.b16 %v409
    %v525 = vpack.c.b16 %v522, %v521
    %v526 = vpack.c.b16 %v524, %v523
    %527 = vrot.lane.b32.xlu0 %v525, 64
    %v528 = vpop.permute.xlu0 %527
    %529 = vrot.lane.b32.xlu0 %v526, 64
    %v530 = vpop.permute.xlu0 %529
    %vm531 = vcmask 130048
    %v533 = vsel %vm531, %v525, 0
    %v536 = vsel %vm531, %v526, 0
    %v539 = vsel %vm531, %v528, 0
    %v542 = vsel %vm531, %v530, 0
    %544 = vmatpush.bf16.xpose.msra.mxu0 0
    %545 = vmatpush.bf16.xpose.msra.mxu0 0
    %546 = vmatpush.bf16.xpose.msra.mxu0 0
    %547 = vmatpush.bf16.xpose.msra.mxu0 0
    %548 = vmatpush.bf16.xpose.msra.mxu0 0
    %549 = vmatpush.bf16.xpose.msra.mxu0 0
    %550 = vmatpush.bf16.xpose.msra.mxu0 %v542
    %551 = vmatpush.bf16.xpose.msra.mxu0 %v539
    %552 = vmatmul.bf16.gmra.mxu0 %v533
    %v553 = vpop.f32.mrf.mxu0
    %v554 = vadd.f32 %v449, %v553
    %v555 = vpop.f32.mrf.mxu0
    %v556 = vadd.f32 %v450, %v555
    %557 = vmatmul.bf16.gmra.mxu0 %v536
    %v558 = vpop.f32.mrf.mxu0
    %v559 = vadd.f32 %v451, %v558
    %v560 = vpop.f32.mrf.mxu0
    %v561 = vadd.f32 %v452, %v560
    %562 = vdwg.mxu0
    %v563 = vunpack.c.l.b16 %v410
    %v564 = vunpack.c.l.b16 %v411
    %v565 = vunpack.c.l.b16 %v412
    %v566 = vunpack.c.l.b16 %v413
    %v567 = vpack.c.b16 %v564, %v563
    %v568 = vpack.c.b16 %v566, %v565
    %569 = vrot.lane.b32.xlu0 %v567, 64
    %v570 = vpop.permute.xlu0 %569
    %571 = vrot.lane.b32.xlu0 %v568, 64
    %v572 = vpop.permute.xlu0 %571
    %v574 = vsel %vm531, %v567, 0
    %v577 = vsel %vm531, %v568, 0
    %v580 = vsel %vm531, %v570, 0
    %v583 = vsel %vm531, %v572, 0
    %585 = vmatpush.bf16.xpose.msra.mxu0 0
    %586 = vmatpush.bf16.xpose.msra.mxu0 0
    %587 = vmatpush.bf16.xpose.msra.mxu0 0
    %588 = vmatpush.bf16.xpose.msra.mxu0 0
    %589 = vmatpush.bf16.xpose.msra.mxu0 0
    %590 = vmatpush.bf16.xpose.msra.mxu0 0
    %591 = vmatpush.bf16.xpose.msra.mxu0 %v583
    %592 = vmatpush.bf16.xpose.msra.mxu0 %v580
    %593 = vmatmul.bf16.gmra.mxu0 %v574
    %v594 = vpop.f32.mrf.mxu0
    %v595 = vadd.f32 %v449, %v594
    %v596 = vpop.f32.mrf.mxu0
    %v597 = vadd.f32 %v450, %v596
    %598 = vmatmul.bf16.gmra.mxu0 %v577
    %v599 = vpop.f32.mrf.mxu0
    %v600 = vadd.f32 %v451, %v599
    %v601 = vpop.f32.mrf.mxu0
    %v602 = vadd.f32 %v452, %v601
    %603 = vdwg.mxu0
    %v604 = vunpack.c.l.b16 %v414
    %v605 = vunpack.c.l.b16 %v415
    %v606 = vunpack.c.l.b16 %v416
    %v607 = vunpack.c.l.b16 %v417
    %v608 = vpack.c.b16 %v605, %v604
    %v609 = vpack.c.b16 %v607, %v606
    %610 = vrot.lane.b32.xlu0 %v608, 64
    %v611 = vpop.permute.xlu0 %610
    %612 = vrot.lane.b32.xlu0 %v609, 64
    %v613 = vpop.permute.xlu0 %612
    %v615 = vsel %vm531, %v608, 0
    %v618 = vsel %vm531, %v609, 0
    %v621 = vsel %vm531, %v611, 0
    %v624 = vsel %vm531, %v613, 0
    %626 = vmatpush.bf16.xpose.msra.mxu0 0
    %627 = vmatpush.bf16.xpose.msra.mxu0 0
    %628 = vmatpush.bf16.xpose.msra.mxu0 0
    %629 = vmatpush.bf16.xpose.msra.mxu0 0
    %630 = vmatpush.bf16.xpose.msra.mxu0 0
    %631 = vmatpush.bf16.xpose.msra.mxu0 0
    %632 = vmatpush.bf16.xpose.msra.mxu0 %v624
    %633 = vmatpush.bf16.xpose.msra.mxu0 %v621
    %634 = vmatmul.bf16.gmra.mxu0 %v615
    %v635 = vpop.f32.mrf.mxu0
    %v636 = vadd.f32 %v449, %v635
    %v637 = vpop.f32.mrf.mxu0
    %v638 = vadd.f32 %v450, %v637
    %639 = vmatmul.bf16.gmra.mxu0 %v618
    %v640 = vpop.f32.mrf.mxu0
    %v641 = vadd.f32 %v451, %v640
    %v642 = vpop.f32.mrf.mxu0
    %v643 = vadd.f32 %v452, %v642
    %644 = vdwg.mxu0
    %v645 = vunpack.c.l.b16 %v418
    %v646 = vunpack.c.l.b16 %v419
    %v647 = vunpack.c.l.b16 %v420
    %v648 = vunpack.c.l.b16 %v421
    %v649 = vpack.c.b16 %v646, %v645
    %v650 = vpack.c.b16 %v648, %v647
    %651 = vrot.lane.b32.xlu0 %v649, 64
    %v652 = vpop.permute.xlu0 %651
    %653 = vrot.lane.b32.xlu0 %v650, 64
    %v654 = vpop.permute.xlu0 %653
    %v656 = vsel %vm531, %v649, 0
    %v659 = vsel %vm531, %v650, 0
    %v662 = vsel %vm531, %v652, 0
    %v665 = vsel %vm531, %v654, 0
    %667 = vmatpush.bf16.xpose.msra.mxu0 0
    %668 = vmatpush.bf16.xpose.msra.mxu0 0
    %669 = vmatpush.bf16.xpose.msra.mxu0 0
    %670 = vmatpush.bf16.xpose.msra.mxu0 0
    %671 = vmatpush.bf16.xpose.msra.mxu0 0
    %672 = vmatpush.bf16.xpose.msra.mxu0 0
    %673 = vmatpush.bf16.xpose.msra.mxu0 %v665
    %674 = vmatpush.bf16.xpose.msra.mxu0 %v662
    %675 = vmatmul.bf16.gmra.mxu0 %v656
    %v676 = vpop.f32.mrf.mxu0
    %v677 = vadd.f32 %v449, %v676
    %v678 = vpop.f32.mrf.mxu0
    %v679 = vadd.f32 %v450, %v678
    %680 = vmatmul.bf16.gmra.mxu0 %v659
    %v681 = vpop.f32.mrf.mxu0
    %v682 = vadd.f32 %v451, %v681
    %v683 = vpop.f32.mrf.mxu0
    %v684 = vadd.f32 %v452, %v683
    %685 = vdwg.mxu0
    %v686 = vunpack.c.l.b16 %v422
    %v687 = vunpack.c.l.b16 %v423
    %v688 = vunpack.c.l.b16 %v424
    %v689 = vunpack.c.l.b16 %v425
    %v690 = vpack.c.b16 %v687, %v686
    %v691 = vpack.c.b16 %v689, %v688
    %692 = vrot.lane.b32.xlu0 %v690, 64
    %v693 = vpop.permute.xlu0 %692
    %694 = vrot.lane.b32.xlu0 %v691, 64
    %v695 = vpop.permute.xlu0 %694
    %v697 = vsel %vm531, %v690, 0
    %v700 = vsel %vm531, %v691, 0
    %v703 = vsel %vm531, %v693, 0
    %v706 = vsel %vm531, %v695, 0
    %708 = vmatpush.bf16.xpose.msra.mxu0 0
    %709 = vmatpush.bf16.xpose.msra.mxu0 0
    %710 = vmatpush.bf16.xpose.msra.mxu0 0
    %711 = vmatpush.bf16.xpose.msra.mxu0 0
    %712 = vmatpush.bf16.xpose.msra.mxu0 0
    %713 = vmatpush.bf16.xpose.msra.mxu0 0
    %714 = vmatpush.bf16.xpose.msra.mxu0 %v706
    %715 = vmatpush.bf16.xpose.msra.mxu0 %v703
    %716 = vmatmul.bf16.gmra.mxu0 %v697
    %v717 = vpop.f32.mrf.mxu0
    %v718 = vadd.f32 %v449, %v717
    %v719 = vpop.f32.mrf.mxu0
    %v720 = vadd.f32 %v450, %v719
    %721 = vmatmul.bf16.gmra.mxu0 %v700
    %v722 = vpop.f32.mrf.mxu0
    %v723 = vadd.f32 %v451, %v722
    %v724 = vpop.f32.mrf.mxu0
    %v725 = vadd.f32 %v452, %v724
    %726 = vdwg.mxu0
    %v727 = vunpack.c.l.b16 %v426
    %v728 = vunpack.c.l.b16 %v427
    %v729 = vunpack.c.l.b16 %v428
    %v730 = vunpack.c.l.b16 %v429
    %v731 = vpack.c.b16 %v728, %v727
    %v732 = vpack.c.b16 %v730, %v729
    %733 = vrot.lane.b32.xlu0 %v731, 64
    %v734 = vpop.permute.xlu0 %733
    %735 = vrot.lane.b32.xlu0 %v732, 64
    %v736 = vpop.permute.xlu0 %735
    %v738 = vsel %vm531, %v731, 0
    %v741 = vsel %vm531, %v732, 0
    %v744 = vsel %vm531, %v734, 0
    %v747 = vsel %vm531, %v736, 0
    %749 = vmatpush.bf16.xpose.msra.mxu0 0
    %750 = vmatpush.bf16.xpose.msra.mxu0 0
    %751 = vmatpush.bf16.xpose.msra.mxu0 0
    %752 = vmatpush.bf16.xpose.msra.mxu0 0
    %753 = vmatpush.bf16.xpose.msra.mxu0 0
    %754 = vmatpush.bf16.xpose.msra.mxu0 0
    %755 = vmatpush.bf16.xpose.msra.mxu0 %v747
    %756 = vmatpush.bf16.xpose.msra.mxu0 %v744
    %757 = vmatmul.bf16.gmra.mxu0 %v738
    %v758 = vpop.f32.mrf.mxu0
    %v759 = vadd.f32 %v449, %v758
    %v760 = vpop.f32.mrf.mxu0
    %v761 = vadd.f32 %v450, %v760
    %762 = vmatmul.bf16.gmra.mxu0 %v741
    %v763 = vpop.f32.mrf.mxu0
    %v764 = vadd.f32 %v451, %v763
    %v765 = vpop.f32.mrf.mxu0
    %v766 = vadd.f32 %v452, %v765
    %767 = vdwg.mxu0
    %v768 = vunpack.c.l.b16 %v430
    %v769 = vunpack.c.l.b16 %v431
    %v770 = vunpack.c.l.b16 %v432
    %v771 = vunpack.c.l.b16 %v433
    %v772 = vpack.c.b16 %v769, %v768
    %v773 = vpack.c.b16 %v771, %v770
    %774 = vrot.lane.b32.xlu0 %v772, 64
    %v775 = vpop.permute.xlu0 %774
    %776 = vrot.lane.b32.xlu0 %v773, 64
    %v777 = vpop.permute.xlu0 %776
    %v779 = vsel %vm531, %v772, 0
    %v782 = vsel %vm531, %v773, 0
    %v785 = vsel %vm531, %v775, 0
    %v788 = vsel %vm531, %v777, 0
    %790 = vmatpush.bf16.xpose.msra.mxu0 0
    %791 = vmatpush.bf16.xpose.msra.mxu0 0
    %792 = vmatpush.bf16.xpose.msra.mxu0 0
    %793 = vmatpush.bf16.xpose.msra.mxu0 0
    %794 = vmatpush.bf16.xpose.msra.mxu0 0
    %795 = vmatpush.bf16.xpose.msra.mxu0 0
    %796 = vmatpush.bf16.xpose.msra.mxu0 %v788
    %797 = vmatpush.bf16.xpose.msra.mxu0 %v785
    %798 = vmatmul.bf16.gmra.mxu0 %v779
    %v799 = vpop.f32.mrf.mxu0
    %v800 = vadd.f32 %v449, %v799
    %v801 = vpop.f32.mrf.mxu0
    %v802 = vadd.f32 %v450, %v801
    %803 = vmatmul.bf16.gmra.mxu0 %v782
    %v804 = vpop.f32.mrf.mxu0
    %v805 = vadd.f32 %v451, %v804
    %v806 = vpop.f32.mrf.mxu0
    %v807 = vadd.f32 %v452, %v806
    %808 = vdwg.mxu0
    %v809 = vunpack.c.l.b16 %v434
    %v810 = vunpack.c.l.b16 %v435
    %v811 = vunpack.c.l.b16 %v436
    %v812 = vunpack.c.l.b16 %v437
    %v813 = vpack.c.b16 %v810, %v809
    %v814 = vpack.c.b16 %v812, %v811
    %815 = vrot.lane.b32.xlu0 %v813, 64
    %v816 = vpop.permute.xlu0 %815
    %817 = vrot.lane.b32.xlu0 %v814, 64
    %v818 = vpop.permute.xlu0 %817
    %v820 = vsel %vm531, %v813, 0
    %v823 = vsel %vm531, %v814, 0
    %v826 = vsel %vm531, %v816, 0
    %v829 = vsel %vm531, %v818, 0
    %831 = vmatpush.bf16.xpose.msra.mxu0 0
    %832 = vmatpush.bf16.xpose.msra.mxu0 0
    %833 = vmatpush.bf16.xpose.msra.mxu0 0
    %834 = vmatpush.bf16.xpose.msra.mxu0 0
    %835 = vmatpush.bf16.xpose.msra.mxu0 0
    %836 = vmatpush.bf16.xpose.msra.mxu0 0
    %837 = vmatpush.bf16.xpose.msra.mxu0 %v829
    %838 = vmatpush.bf16.xpose.msra.mxu0 %v826
    %839 = vmatmul.bf16.gmra.mxu0 %v820
    %v840 = vpop.f32.mrf.mxu0
    %v841 = vadd.f32 %v449, %v840
    %v842 = vpop.f32.mrf.mxu0
    %v843 = vadd.f32 %v450, %v842
    %844 = vmatmul.bf16.gmra.mxu0 %v823
    %v845 = vpop.f32.mrf.mxu0
    %v846 = vadd.f32 %v451, %v845
    %v847 = vpop.f32.mrf.mxu0
    %v848 = vadd.f32 %v452, %v847
    %849 = vdwg.mxu0
    %vm850 = vcmask 261120
    %v851 = vsel %vm850, %v554, -inf
    %852 = vmax.xlane.f32.xlu0 %v851
    %v853 = vpop.xlane.xlu0 %852
    %v854 = vsel %vm850, %v556, -inf
    %855 = vmax.xlane.f32.xlu0 %v854
    %v856 = vpop.xlane.xlu0 %855
    %v857 = vsel %vm850, %v559, -inf
    %858 = vmax.xlane.f32.xlu0 %v857
    %v859 = vpop.xlane.xlu0 %858
    %v860 = vsel %vm850, %v561, -inf
    %861 = vmax.xlane.f32.xlu0 %v860
    %v862 = vpop.xlane.xlu0 %861
    %v863 = vsel %vm850, %v595, -inf
    %864 = vmax.xlane.f32.xlu0 %v863
    %v865 = vpop.xlane.xlu0 %864
    %v866 = vsel %vm850, %v597, -inf
    %867 = vmax.xlane.f32.xlu0 %v866
    %v868 = vpop.xlane.xlu0 %867
    %v869 = vsel %vm850, %v600, -inf
    %870 = vmax.xlane.f32.xlu0 %v869
    %v871 = vpop.xlane.xlu0 %870
    %v872 = vsel %vm850, %v602, -inf
    %873 = vmax.xlane.f32.xlu0 %v872
    %v874 = vpop.xlane.xlu0 %873
    %v875 = vsel %vm850, %v636, -inf
    %876 = vmax.xlane.f32.xlu0 %v875
    %v877 = vpop.xlane.xlu0 %876
    %v878 = vsel %vm850, %v638, -inf
    %879 = vmax.xlane.f32.xlu0 %v878
    %v880 = vpop.xlane.xlu0 %879
    %v881 = vsel %vm850, %v641, -inf
    %882 = vmax.xlane.f32.xlu0 %v881
    %v883 = vpop.xlane.xlu0 %882
    %v884 = vsel %vm850, %v643, -inf
    %885 = vmax.xlane.f32.xlu0 %v884
    %v886 = vpop.xlane.xlu0 %885
    %v887 = vsel %vm850, %v677, -inf
    %888 = vmax.xlane.f32.xlu0 %v887
    %v889 = vpop.xlane.xlu0 %888
    %v890 = vsel %vm850, %v679, -inf
    %891 = vmax.xlane.f32.xlu0 %v890
    %v892 = vpop.xlane.xlu0 %891
    %v893 = vsel %vm850, %v682, -inf
    %894 = vmax.xlane.f32.xlu0 %v893
    %v895 = vpop.xlane.xlu0 %894
    %v896 = vsel %vm850, %v684, -inf
    %897 = vmax.xlane.f32.xlu0 %v896
    %v898 = vpop.xlane.xlu0 %897
    %v899 = vsel %vm850, %v718, -inf
    %900 = vmax.xlane.f32.xlu0 %v899
    %v901 = vpop.xlane.xlu0 %900
    %v902 = vsel %vm850, %v720, -inf
    %903 = vmax.xlane.f32.xlu0 %v902
    %v904 = vpop.xlane.xlu0 %903
    %v905 = vsel %vm850, %v723, -inf
    %906 = vmax.xlane.f32.xlu0 %v905
    %v907 = vpop.xlane.xlu0 %906
    %v908 = vsel %vm850, %v725, -inf
    %909 = vmax.xlane.f32.xlu0 %v908
    %v910 = vpop.xlane.xlu0 %909
    %v911 = vsel %vm850, %v759, -inf
    %912 = vmax.xlane.f32.xlu0 %v911
    %v913 = vpop.xlane.xlu0 %912
    %v914 = vsel %vm850, %v761, -inf
    %915 = vmax.xlane.f32.xlu0 %v914
    %v916 = vpop.xlane.xlu0 %915
    %v917 = vsel %vm850, %v764, -inf
    %918 = vmax.xlane.f32.xlu0 %v917
    %v919 = vpop.xlane.xlu0 %918
    %v920 = vsel %vm850, %v766, -inf
    %921 = vmax.xlane.f32.xlu0 %v920
    %v922 = vpop.xlane.xlu0 %921
    %v923 = vsel %vm850, %v800, -inf
    %924 = vmax.xlane.f32.xlu0 %v923
    %v925 = vpop.xlane.xlu0 %924
    %v926 = vsel %vm850, %v802, -inf
    %927 = vmax.xlane.f32.xlu0 %v926
    %v928 = vpop.xlane.xlu0 %927
    %v929 = vsel %vm850, %v805, -inf
    %930 = vmax.xlane.f32.xlu0 %v929
    %v931 = vpop.xlane.xlu0 %930
    %v932 = vsel %vm850, %v807, -inf
    %933 = vmax.xlane.f32.xlu0 %v932
    %v934 = vpop.xlane.xlu0 %933
    %v935 = vsel %vm850, %v841, -inf
    %936 = vmax.xlane.f32.xlu0 %v935
    %v937 = vpop.xlane.xlu0 %936
    %v938 = vsel %vm850, %v843, -inf
    %939 = vmax.xlane.f32.xlu0 %v938
    %v940 = vpop.xlane.xlu0 %939
    %v941 = vsel %vm850, %v846, -inf
    %942 = vmax.xlane.f32.xlu0 %v941
    %v943 = vpop.xlane.xlu0 %942
    %v944 = vsel %vm850, %v848, -inf
    %945 = vmax.xlane.f32.xlu0 %v944
    %v946 = vpop.xlane.xlu0 %945
    %v947 = vsub.f32 %v554, %v853
    %v948 = vsub.f32 %v556, %v856
    %v949 = vsub.f32 %v559, %v859
    %v950 = vsub.f32 %v561, %v862
    %v951 = vsub.f32 %v595, %v865
    %v952 = vsub.f32 %v597, %v868
    %v953 = vsub.f32 %v600, %v871
    %v954 = vsub.f32 %v602, %v874
    %v955 = vsub.f32 %v636, %v877
    %v956 = vsub.f32 %v638, %v880
    %v957 = vsub.f32 %v641, %v883
    %v958 = vsub.f32 %v643, %v886
    %v959 = vsub.f32 %v677, %v889
    %v960 = vsub.f32 %v679, %v892
    %v961 = vsub.f32 %v682, %v895
    %v962 = vsub.f32 %v684, %v898
    %v963 = vsub.f32 %v718, %v901
    %v964 = vsub.f32 %v720, %v904
    %v965 = vsub.f32 %v723, %v907
    %v966 = vsub.f32 %v725, %v910
    %v967 = vsub.f32 %v759, %v913
    %v968 = vsub.f32 %v761, %v916
    %v969 = vsub.f32 %v764, %v919
    %v970 = vsub.f32 %v766, %v922
    %v971 = vsub.f32 %v800, %v925
    %v972 = vsub.f32 %v802, %v928
    %v973 = vsub.f32 %v805, %v931
    %v974 = vsub.f32 %v807, %v934
    %v975 = vsub.f32 %v841, %v937
    %v976 = vsub.f32 %v843, %v940
    %v977 = vsub.f32 %v846, %v943
    %v978 = vsub.f32 %v848, %v946
    %v979 = vmul.f32 %v947, 1.442695
    %v980 = vpow.pop %v979
    %v981 = vmul.f32 %v948, 1.442695
    %v982 = vpow.pop %v981
    %v983 = vmul.f32 %v949, 1.442695
    %v984 = vpow.pop %v983
    %v985 = vmul.f32 %v950, 1.442695
    %v986 = vpow.pop %v985
    %v987 = vmul.f32 %v951, 1.442695
    %v988 = vpow.pop %v987
    %v989 = vmul.f32 %v952, 1.442695
    %v990 = vpow.pop %v989
    %v991 = vmul.f32 %v953, 1.442695
    %v992 = vpow.pop %v991
    %v993 = vmul.f32 %v954, 1.442695
    %v994 = vpow.pop %v993
    %v995 = vmul.f32 %v955, 1.442695
    %v996 = vpow.pop %v995
    %v997 = vmul.f32 %v956, 1.442695
    %v998 = vpow.pop %v997
    %v999 = vmul.f32 %v957, 1.442695
    %v1000 = vpow.pop %v999
    %v1001 = vmul.f32 %v958, 1.442695
    %v1002 = vpow.pop %v1001
    %v1003 = vmul.f32 %v959, 1.442695
    %v1004 = vpow.pop %v1003
    %v1005 = vmul.f32 %v960, 1.442695
    %v1006 = vpow.pop %v1005
    %v1007 = vmul.f32 %v961, 1.442695
    %v1008 = vpow.pop %v1007
    %v1009 = vmul.f32 %v962, 1.442695
    %v1010 = vpow.pop %v1009
    %v1011 = vmul.f32 %v963, 1.442695
    %v1012 = vpow.pop %v1011
    %v1013 = vmul.f32 %v964, 1.442695
    %v1014 = vpow.pop %v1013
    %v1015 = vmul.f32 %v965, 1.442695
    %v1016 = vpow.pop %v1015
    %v1017 = vmul.f32 %v966, 1.442695
    %v1018 = vpow.pop %v1017
    %v1019 = vmul.f32 %v967, 1.442695
    %v1020 = vpow.pop %v1019
    %v1021 = vmul.f32 %v968, 1.442695
    %v1022 = vpow.pop %v1021
    %v1023 = vmul.f32 %v969, 1.442695
    %v1024 = vpow.pop %v1023
    %v1025 = vmul.f32 %v970, 1.442695
    %v1026 = vpow.pop %v1025
    %v1027 = vmul.f32 %v971, 1.442695
    %v1028 = vpow.pop %v1027
    %v1029 = vmul.f32 %v972, 1.442695
    %v1030 = vpow.pop %v1029
    %v1031 = vmul.f32 %v973, 1.442695
    %v1032 = vpow.pop %v1031
    %v1033 = vmul.f32 %v974, 1.442695
    %v1034 = vpow.pop %v1033
    %v1035 = vmul.f32 %v975, 1.442695
    %v1036 = vpow.pop %v1035
    %v1037 = vmul.f32 %v976, 1.442695
    %v1038 = vpow.pop %v1037
    %v1039 = vmul.f32 %v977, 1.442695
    %v1040 = vpow.pop %v1039
    %v1041 = vmul.f32 %v978, 1.442695
    %v1042 = vpow.pop %v1041
    %v1043 = vsel %vm850, %v980, 0.0
    %1044 = vadd.xlane.f32.xlu0 %v1043
    %v1045 = vpop.xlane.xlu0 %1044
    %v1046 = vsel %vm850, %v982, 0.0
    %1047 = vadd.xlane.f32.xlu0 %v1046
    %v1048 = vpop.xlane.xlu0 %1047
    %v1049 = vsel %vm850, %v984, 0.0
    %1050 = vadd.xlane.f32.xlu0 %v1049
    %v1051 = vpop.xlane.xlu0 %1050
    %v1052 = vsel %vm850, %v986, 0.0
    %1053 = vadd.xlane.f32.xlu0 %v1052
    %v1054 = vpop.xlane.xlu0 %1053
    %v1055 = vsel %vm850, %v988, 0.0
    %1056 = vadd.xlane.f32.xlu0 %v1055
    %v1057 = vpop.xlane.xlu0 %1056
    %v1058 = vsel %vm850, %v990, 0.0
    %1059 = vadd.xlane.f32.xlu0 %v1058
    %v1060 = vpop.xlane.xlu0 %1059
    %v1061 = vsel %vm850, %v992, 0.0
    %1062 = vadd.xlane.f32.xlu0 %v1061
    %v1063 = vpop.xlane.xlu0 %1062
    %v1064 = vsel %vm850, %v994, 0.0
    %1065 = vadd.xlane.f32.xlu0 %v1064
    %v1066 = vpop.xlane.xlu0 %1065
    %v1067 = vsel %vm850, %v996, 0.0
    %1068 = vadd.xlane.f32.xlu0 %v1067
    %v1069 = vpop.xlane.xlu0 %1068
    %v1070 = vsel %vm850, %v998, 0.0
    %1071 = vadd.xlane.f32.xlu0 %v1070
    %v1072 = vpop.xlane.xlu0 %1071
    %v1073 = vsel %vm850, %v1000, 0.0
    %1074 = vadd.xlane.f32.xlu0 %v1073
    %v1075 = vpop.xlane.xlu0 %1074
    %v1076 = vsel %vm850, %v1002, 0.0
    %1077 = vadd.xlane.f32.xlu0 %v1076
    %v1078 = vpop.xlane.xlu0 %1077
    %v1079 = vsel %vm850, %v1004, 0.0
    %1080 = vadd.xlane.f32.xlu0 %v1079
    %v1081 = vpop.xlane.xlu0 %1080
    %v1082 = vsel %vm850, %v1006, 0.0
    %1083 = vadd.xlane.f32.xlu0 %v1082
    %v1084 = vpop.xlane.xlu0 %1083
    %v1085 = vsel %vm850, %v1008, 0.0
    %1086 = vadd.xlane.f32.xlu0 %v1085
    %v1087 = vpop.xlane.xlu0 %1086
    %v1088 = vsel %vm850, %v1010, 0.0
    %1089 = vadd.xlane.f32.xlu0 %v1088
    %v1090 = vpop.xlane.xlu0 %1089
    %v1091 = vsel %vm850, %v1012, 0.0
    %1092 = vadd.xlane.f32.xlu0 %v1091
    %v1093 = vpop.xlane.xlu0 %1092
    %v1094 = vsel %vm850, %v1014, 0.0
    %1095 = vadd.xlane.f32.xlu0 %v1094
    %v1096 = vpop.xlane.xlu0 %1095
    %v1097 = vsel %vm850, %v1016, 0.0
    %1098 = vadd.xlane.f32.xlu0 %v1097
    %v1099 = vpop.xlane.xlu0 %1098
    %v1100 = vsel %vm850, %v1018, 0.0
    %1101 = vadd.xlane.f32.xlu0 %v1100
    %v1102 = vpop.xlane.xlu0 %1101
    %v1103 = vsel %vm850, %v1020, 0.0
    %1104 = vadd.xlane.f32.xlu0 %v1103
    %v1105 = vpop.xlane.xlu0 %1104
    %v1106 = vsel %vm850, %v1022, 0.0
    %1107 = vadd.xlane.f32.xlu0 %v1106
    %v1108 = vpop.xlane.xlu0 %1107
    %v1109 = vsel %vm850, %v1024, 0.0
    %1110 = vadd.xlane.f32.xlu0 %v1109
    %v1111 = vpop.xlane.xlu0 %1110
    %v1112 = vsel %vm850, %v1026, 0.0
    %1113 = vadd.xlane.f32.xlu0 %v1112
    %v1114 = vpop.xlane.xlu0 %1113
    %v1115 = vsel %vm850, %v1028, 0.0
    %1116 = vadd.xlane.f32.xlu0 %v1115
    %v1117 = vpop.xlane.xlu0 %1116
    %v1118 = vsel %vm850, %v1030, 0.0
    %1119 = vadd.xlane.f32.xlu0 %v1118
    %v1120 = vpop.xlane.xlu0 %1119
    %v1121 = vsel %vm850, %v1032, 0.0
    %1122 = vadd.xlane.f32.xlu0 %v1121
    %v1123 = vpop.xlane.xlu0 %1122
    %v1124 = vsel %vm850, %v1034, 0.0
    %1125 = vadd.xlane.f32.xlu0 %v1124
    %v1126 = vpop.xlane.xlu0 %1125
    %v1127 = vsel %vm850, %v1036, 0.0
    %1128 = vadd.xlane.f32.xlu0 %v1127
    %v1129 = vpop.xlane.xlu0 %1128
    %v1130 = vsel %vm850, %v1038, 0.0
    %1131 = vadd.xlane.f32.xlu0 %v1130
    %v1132 = vpop.xlane.xlu0 %1131
    %v1133 = vsel %vm850, %v1040, 0.0
    %1134 = vadd.xlane.f32.xlu0 %v1133
    %v1135 = vpop.xlane.xlu0 %1134
    %v1136 = vsel %vm850, %v1042, 0.0
    %1137 = vadd.xlane.f32.xlu0 %v1136
    %v1138 = vpop.xlane.xlu0 %1137
    %v1139 = vrcp.pop %v1045
    %v1140 = vrcp.pop %v1048
    %v1141 = vrcp.pop %v1051
    %v1142 = vrcp.pop %v1054
    %v1143 = vrcp.pop %v1057
    %v1144 = vrcp.pop %v1060
    %v1145 = vrcp.pop %v1063
    %v1146 = vrcp.pop %v1066
    %v1147 = vrcp.pop %v1069
    %v1148 = vrcp.pop %v1072
    %v1149 = vrcp.pop %v1075
    %v1150 = vrcp.pop %v1078
    %v1151 = vrcp.pop %v1081
    %v1152 = vrcp.pop %v1084
    %v1153 = vrcp.pop %v1087
    %v1154 = vrcp.pop %v1090
    %v1155 = vrcp.pop %v1093
    %v1156 = vrcp.pop %v1096
    %v1157 = vrcp.pop %v1099
    %v1158 = vrcp.pop %v1102
    %v1159 = vrcp.pop %v1105
    %v1160 = vrcp.pop %v1108
    %v1161 = vrcp.pop %v1111
    %v1162 = vrcp.pop %v1114
    %v1163 = vrcp.pop %v1117
    %v1164 = vrcp.pop %v1120
    %v1165 = vrcp.pop %v1123
    %v1166 = vrcp.pop %v1126
    %v1167 = vrcp.pop %v1129
    %v1168 = vrcp.pop %v1132
    %v1169 = vrcp.pop %v1135
    %v1170 = vrcp.pop %v1138
    %v1171 = vmul.f32 %v980, %v1139
    %v1172 = vmul.f32 %v982, %v1140
    %v1173 = vmul.f32 %v984, %v1141
    %v1174 = vmul.f32 %v986, %v1142
    %v1175 = vmul.f32 %v988, %v1143
    %v1176 = vmul.f32 %v990, %v1144
    %v1177 = vmul.f32 %v992, %v1145
    %v1178 = vmul.f32 %v994, %v1146
    %v1179 = vmul.f32 %v996, %v1147
    %v1180 = vmul.f32 %v998, %v1148
    %v1181 = vmul.f32 %v1000, %v1149
    %v1182 = vmul.f32 %v1002, %v1150
    %v1183 = vmul.f32 %v1004, %v1151
    %v1184 = vmul.f32 %v1006, %v1152
    %v1185 = vmul.f32 %v1008, %v1153
    %v1186 = vmul.f32 %v1010, %v1154
    %v1187 = vmul.f32 %v1012, %v1155
    %v1188 = vmul.f32 %v1014, %v1156
    %v1189 = vmul.f32 %v1016, %v1157
    %v1190 = vmul.f32 %v1018, %v1158
    %v1191 = vmul.f32 %v1020, %v1159
    %v1192 = vmul.f32 %v1022, %v1160
    %v1193 = vmul.f32 %v1024, %v1161
    %v1194 = vmul.f32 %v1026, %v1162
    %v1195 = vmul.f32 %v1028, %v1163
    %v1196 = vmul.f32 %v1030, %v1164
    %v1197 = vmul.f32 %v1032, %v1165
    %v1198 = vmul.f32 %v1034, %v1166
    %v1199 = vmul.f32 %v1036, %v1167
    %v1200 = vmul.f32 %v1038, %v1168
    %v1201 = vmul.f32 %v1040, %v1169
    %v1202 = vmul.f32 %v1042, %v1170
    %v1203 = vpack.c.bf16 %v1171, %v1171
    %v1204 = vpack.c.bf16 %v1172, %v1172
    %v1205 = vpack.c.bf16 %v1173, %v1173
    %v1206 = vpack.c.bf16 %v1174, %v1174
    %v1207 = vpack.c.bf16 %v1175, %v1175
    %v1208 = vpack.c.bf16 %v1176, %v1176
    %v1209 = vpack.c.bf16 %v1177, %v1177
    %v1210 = vpack.c.bf16 %v1178, %v1178
    %v1211 = vpack.c.bf16 %v1179, %v1179
    %v1212 = vpack.c.bf16 %v1180, %v1180
    %v1213 = vpack.c.bf16 %v1181, %v1181
    %v1214 = vpack.c.bf16 %v1182, %v1182
    %v1215 = vpack.c.bf16 %v1183, %v1183
    %v1216 = vpack.c.bf16 %v1184, %v1184
    %v1217 = vpack.c.bf16 %v1185, %v1185
    %v1218 = vpack.c.bf16 %v1186, %v1186
    %v1219 = vpack.c.bf16 %v1187, %v1187
    %v1220 = vpack.c.bf16 %v1188, %v1188
    %v1221 = vpack.c.bf16 %v1189, %v1189
    %v1222 = vpack.c.bf16 %v1190, %v1190
    %v1223 = vpack.c.bf16 %v1191, %v1191
    %v1224 = vpack.c.bf16 %v1192, %v1192
    %v1225 = vpack.c.bf16 %v1193, %v1193
    %v1226 = vpack.c.bf16 %v1194, %v1194
    %v1227 = vpack.c.bf16 %v1195, %v1195
    %v1228 = vpack.c.bf16 %v1196, %v1196
    %v1229 = vpack.c.bf16 %v1197, %v1197
    %v1230 = vpack.c.bf16 %v1198, %v1198
    %v1231 = vpack.c.bf16 %v1199, %v1199
    %v1232 = vpack.c.bf16 %v1200, %v1200
    %v1233 = vpack.c.bf16 %v1201, %v1201
    %v1234 = vpack.c.bf16 %v1202, %v1202
    %v1239 = vunpack.c.l.b16 %v1203
    %v1240 = vunpack.c.l.b16 %v1204
    %v1241 = vunpack.c.l.b16 %v1205
    %v1242 = vunpack.c.l.b16 %v1206
    %v1243 = vpack.c.b16 %v1240, %v1239
    %v1244 = vpack.c.b16 %v1242, %v1241
    %v1245 = vunpack.c.l.b16 %v489
    %v1246 = vunpack.c.l.b16 %v490
    %v1247 = vunpack.c.l.b16 %v491
    %v1248 = vunpack.c.l.b16 %v492
    %v1249 = vpack.c.b16 %v1246, %v1245
    %v1250 = vpack.c.b16 %v1248, %v1247
    %v1254 = vsel %vm850, %v1243, 0
    %v1257 = vsel %vm850, %v1244, 0
    %1259 = vmatpush.bf16.msra.mxu0 0
    %1260 = vmatpush.bf16.msra.mxu0 0
    %1261 = vmatpush.bf16.msra.mxu0 0
    %1262 = vmatpush.bf16.msra.mxu0 0
    %1263 = vmatpush.bf16.msra.mxu0 0
    %1264 = vmatpush.bf16.msra.mxu0 0
    %1265 = vmatpush.bf16.msra.mxu0 %v1250
    %1266 = vmatpush.bf16.msra.mxu0 %v1249
    %1267 = vmatmul.bf16.gmra.mxu0 %v1254
    %v1268 = vpop.f32.mrf.mxu0
    %v1269 = vadd.f32 0.0, %v1268
    %v1270 = vpop.f32.mrf.mxu0
    %v1271 = vadd.f32 0.0, %v1270
    %1272 = vmatmul.bf16.gmra.mxu0 %v1257
    %v1273 = vpop.f32.mrf.mxu0
    %v1274 = vadd.f32 0.0, %v1273
    %v1275 = vpop.f32.mrf.mxu0
    %v1276 = vadd.f32 0.0, %v1275
    %1277 = vdwg.mxu0
    %v1282 = vunpack.c.l.b16 %v1207
    %v1283 = vunpack.c.l.b16 %v1208
    %v1284 = vunpack.c.l.b16 %v1209
    %v1285 = vunpack.c.l.b16 %v1210
    %v1286 = vpack.c.b16 %v1283, %v1282
    %v1287 = vpack.c.b16 %v1285, %v1284
    %v1288 = vunpack.c.l.b16 %v493
    %v1289 = vunpack.c.l.b16 %v494
    %v1290 = vunpack.c.l.b16 %v495
    %v1291 = vunpack.c.l.b16 %v496
    %v1292 = vpack.c.b16 %v1289, %v1288
    %v1293 = vpack.c.b16 %v1291, %v1290
    %v1297 = vsel %vm850, %v1286, 0
    %v1300 = vsel %vm850, %v1287, 0
    %1302 = vmatpush.bf16.msra.mxu0 0
    %1303 = vmatpush.bf16.msra.mxu0 0
    %1304 = vmatpush.bf16.msra.mxu0 0
    %1305 = vmatpush.bf16.msra.mxu0 0
    %1306 = vmatpush.bf16.msra.mxu0 0
    %1307 = vmatpush.bf16.msra.mxu0 0
    %1308 = vmatpush.bf16.msra.mxu0 %v1293
    %1309 = vmatpush.bf16.msra.mxu0 %v1292
    %1310 = vmatmul.bf16.gmra.mxu0 %v1297
    %v1311 = vpop.f32.mrf.mxu0
    %v1312 = vadd.f32 0.0, %v1311
    %v1313 = vpop.f32.mrf.mxu0
    %v1314 = vadd.f32 0.0, %v1313
    %1315 = vmatmul.bf16.gmra.mxu0 %v1300
    %v1316 = vpop.f32.mrf.mxu0
    %v1317 = vadd.f32 0.0, %v1316
    %v1318 = vpop.f32.mrf.mxu0
    %v1319 = vadd.f32 0.0, %v1318
    %1320 = vdwg.mxu0
    %v1325 = vunpack.c.l.b16 %v1211
    %v1326 = vunpack.c.l.b16 %v1212
    %v1327 = vunpack.c.l.b16 %v1213
    %v1328 = vunpack.c.l.b16 %v1214
    %v1329 = vpack.c.b16 %v1326, %v1325
    %v1330 = vpack.c.b16 %v1328, %v1327
    %v1331 = vunpack.c.l.b16 %v497
    %v1332 = vunpack.c.l.b16 %v498
    %v1333 = vunpack.c.l.b16 %v499
    %v1334 = vunpack.c.l.b16 %v500
    %v1335 = vpack.c.b16 %v1332, %v1331
    %v1336 = vpack.c.b16 %v1334, %v1333
    %v1340 = vsel %vm850, %v1329, 0
    %v1343 = vsel %vm850, %v1330, 0
    %1345 = vmatpush.bf16.msra.mxu0 0
    %1346 = vmatpush.bf16.msra.mxu0 0
    %1347 = vmatpush.bf16.msra.mxu0 0
    %1348 = vmatpush.bf16.msra.mxu0 0
    %1349 = vmatpush.bf16.msra.mxu0 0
    %1350 = vmatpush.bf16.msra.mxu0 0
    %1351 = vmatpush.bf16.msra.mxu0 %v1336
    %1352 = vmatpush.bf16.msra.mxu0 %v1335
    %1353 = vmatmul.bf16.gmra.mxu0 %v1340
    %v1354 = vpop.f32.mrf.mxu0
    %v1355 = vadd.f32 0.0, %v1354
    %v1356 = vpop.f32.mrf.mxu0
    %v1357 = vadd.f32 0.0, %v1356
    %1358 = vmatmul.bf16.gmra.mxu0 %v1343
    %v1359 = vpop.f32.mrf.mxu0
    %v1360 = vadd.f32 0.0, %v1359
    %v1361 = vpop.f32.mrf.mxu0
    %v1362 = vadd.f32 0.0, %v1361
    %1363 = vdwg.mxu0
    %v1368 = vunpack.c.l.b16 %v1215
    %v1369 = vunpack.c.l.b16 %v1216
    %v1370 = vunpack.c.l.b16 %v1217
    %v1371 = vunpack.c.l.b16 %v1218
    %v1372 = vpack.c.b16 %v1369, %v1368
    %v1373 = vpack.c.b16 %v1371, %v1370
    %v1374 = vunpack.c.l.b16 %v501
    %v1375 = vunpack.c.l.b16 %v502
    %v1376 = vunpack.c.l.b16 %v503
    %v1377 = vunpack.c.l.b16 %v504
    %v1378 = vpack.c.b16 %v1375, %v1374
    %v1379 = vpack.c.b16 %v1377, %v1376
    %v1383 = vsel %vm850, %v1372, 0
    %v1386 = vsel %vm850, %v1373, 0
    %1388 = vmatpush.bf16.msra.mxu0 0
    %1389 = vmatpush.bf16.msra.mxu0 0
    %1390 = vmatpush.bf16.msra.mxu0 0
    %1391 = vmatpush.bf16.msra.mxu0 0
    %1392 = vmatpush.bf16.msra.mxu0 0
    %1393 = vmatpush.bf16.msra.mxu0 0
    %1394 = vmatpush.bf16.msra.mxu0 %v1379
    %1395 = vmatpush.bf16.msra.mxu0 %v1378
    %1396 = vmatmul.bf16.gmra.mxu0 %v1383
    %v1397 = vpop.f32.mrf.mxu0
    %v1398 = vadd.f32 0.0, %v1397
    %v1399 = vpop.f32.mrf.mxu0
    %v1400 = vadd.f32 0.0, %v1399
    %1401 = vmatmul.bf16.gmra.mxu0 %v1386
    %v1402 = vpop.f32.mrf.mxu0
    %v1403 = vadd.f32 0.0, %v1402
    %v1404 = vpop.f32.mrf.mxu0
    %v1405 = vadd.f32 0.0, %v1404
    %1406 = vdwg.mxu0
    %v1411 = vunpack.c.l.b16 %v1219
    %v1412 = vunpack.c.l.b16 %v1220
    %v1413 = vunpack.c.l.b16 %v1221
    %v1414 = vunpack.c.l.b16 %v1222
    %v1415 = vpack.c.b16 %v1412, %v1411
    %v1416 = vpack.c.b16 %v1414, %v1413
    %v1417 = vunpack.c.l.b16 %v505
    %v1418 = vunpack.c.l.b16 %v506
    %v1419 = vunpack.c.l.b16 %v507
    %v1420 = vunpack.c.l.b16 %v508
    %v1421 = vpack.c.b16 %v1418, %v1417
    %v1422 = vpack.c.b16 %v1420, %v1419
    %v1426 = vsel %vm850, %v1415, 0
    %v1429 = vsel %vm850, %v1416, 0
    %1431 = vmatpush.bf16.msra.mxu0 0
    %1432 = vmatpush.bf16.msra.mxu0 0
    %1433 = vmatpush.bf16.msra.mxu0 0
    %1434 = vmatpush.bf16.msra.mxu0 0
    %1435 = vmatpush.bf16.msra.mxu0 0
    %1436 = vmatpush.bf16.msra.mxu0 0
    %1437 = vmatpush.bf16.msra.mxu0 %v1422
    %1438 = vmatpush.bf16.msra.mxu0 %v1421
    %1439 = vmatmul.bf16.gmra.mxu0 %v1426
    %v1440 = vpop.f32.mrf.mxu0
    %v1441 = vadd.f32 0.0, %v1440
    %v1442 = vpop.f32.mrf.mxu0
    %v1443 = vadd.f32 0.0, %v1442
    %1444 = vmatmul.bf16.gmra.mxu0 %v1429
    %v1445 = vpop.f32.mrf.mxu0
    %v1446 = vadd.f32 0.0, %v1445
    %v1447 = vpop.f32.mrf.mxu0
    %v1448 = vadd.f32 0.0, %v1447
    %1449 = vdwg.mxu0
    %v1454 = vunpack.c.l.b16 %v1223
    %v1455 = vunpack.c.l.b16 %v1224
    %v1456 = vunpack.c.l.b16 %v1225
    %v1457 = vunpack.c.l.b16 %v1226
    %v1458 = vpack.c.b16 %v1455, %v1454
    %v1459 = vpack.c.b16 %v1457, %v1456
    %v1460 = vunpack.c.l.b16 %v509
    %v1461 = vunpack.c.l.b16 %v510
    %v1462 = vunpack.c.l.b16 %v511
    %v1463 = vunpack.c.l.b16 %v512
    %v1464 = vpack.c.b16 %v1461, %v1460
    %v1465 = vpack.c.b16 %v1463, %v1462
    %v1469 = vsel %vm850, %v1458, 0
    %v1472 = vsel %vm850, %v1459, 0
    %1474 = vmatpush.bf16.msra.mxu0 0
    %1475 = vmatpush.bf16.msra.mxu0 0
    %1476 = vmatpush.bf16.msra.mxu0 0
    %1477 = vmatpush.bf16.msra.mxu0 0
    %1478 = vmatpush.bf16.msra.mxu0 0
    %1479 = vmatpush.bf16.msra.mxu0 0
    %1480 = vmatpush.bf16.msra.mxu0 %v1465
    %1481 = vmatpush.bf16.msra.mxu0 %v1464
    %1482 = vmatmul.bf16.gmra.mxu0 %v1469
    %v1483 = vpop.f32.mrf.mxu0
    %v1484 = vadd.f32 0.0, %v1483
    %v1485 = vpop.f32.mrf.mxu0
    %v1486 = vadd.f32 0.0, %v1485
    %1487 = vmatmul.bf16.gmra.mxu0 %v1472
    %v1488 = vpop.f32.mrf.mxu0
    %v1489 = vadd.f32 0.0, %v1488
    %v1490 = vpop.f32.mrf.mxu0
    %v1491 = vadd.f32 0.0, %v1490
    %1492 = vdwg.mxu0
    %v1497 = vunpack.c.l.b16 %v1227
    %v1498 = vunpack.c.l.b16 %v1228
    %v1499 = vunpack.c.l.b16 %v1229
    %v1500 = vunpack.c.l.b16 %v1230
    %v1501 = vpack.c.b16 %v1498, %v1497
    %v1502 = vpack.c.b16 %v1500, %v1499
    %v1503 = vunpack.c.l.b16 %v513
    %v1504 = vunpack.c.l.b16 %v514
    %v1505 = vunpack.c.l.b16 %v515
    %v1506 = vunpack.c.l.b16 %v516
    %v1507 = vpack.c.b16 %v1504, %v1503
    %v1508 = vpack.c.b16 %v1506, %v1505
    %v1512 = vsel %vm850, %v1501, 0
    %v1515 = vsel %vm850, %v1502, 0
    %1517 = vmatpush.bf16.msra.mxu0 0
    %1518 = vmatpush.bf16.msra.mxu0 0
    %1519 = vmatpush.bf16.msra.mxu0 0
    %1520 = vmatpush.bf16.msra.mxu0 0
    %1521 = vmatpush.bf16.msra.mxu0 0
    %1522 = vmatpush.bf16.msra.mxu0 0
    %1523 = vmatpush.bf16.msra.mxu0 %v1508
    %1524 = vmatpush.bf16.msra.mxu0 %v1507
    %1525 = vmatmul.bf16.gmra.mxu0 %v1512
    %v1526 = vpop.f32.mrf.mxu0
    %v1527 = vadd.f32 0.0, %v1526
    %v1528 = vpop.f32.mrf.mxu0
    %v1529 = vadd.f32 0.0, %v1528
    %1530 = vmatmul.bf16.gmra.mxu0 %v1515
    %v1531 = vpop.f32.mrf.mxu0
    %v1532 = vadd.f32 0.0, %v1531
    %v1533 = vpop.f32.mrf.mxu0
    %v1534 = vadd.f32 0.0, %v1533
    %1535 = vdwg.mxu0
    %v1540 = vunpack.c.l.b16 %v1231
    %v1541 = vunpack.c.l.b16 %v1232
    %v1542 = vunpack.c.l.b16 %v1233
    %v1543 = vunpack.c.l.b16 %v1234
    %v1544 = vpack.c.b16 %v1541, %v1540
    %v1545 = vpack.c.b16 %v1543, %v1542
    %v1546 = vunpack.c.l.b16 %v517
    %v1547 = vunpack.c.l.b16 %v518
    %v1548 = vunpack.c.l.b16 %v519
    %v1549 = vunpack.c.l.b16 %v520
    %v1550 = vpack.c.b16 %v1547, %v1546
    %v1551 = vpack.c.b16 %v1549, %v1548
    %v1555 = vsel %vm850, %v1544, 0
    %v1558 = vsel %vm850, %v1545, 0
    %1560 = vmatpush.bf16.msra.mxu0 0
    %1561 = vmatpush.bf16.msra.mxu0 0
    %1562 = vmatpush.bf16.msra.mxu0 0
    %1563 = vmatpush.bf16.msra.mxu0 0
    %1564 = vmatpush.bf16.msra.mxu0 0
    %1565 = vmatpush.bf16.msra.mxu0 0
    %1566 = vmatpush.bf16.msra.mxu0 %v1551
    %1567 = vmatpush.bf16.msra.mxu0 %v1550
    %1568 = vmatmul.bf16.gmra.mxu0 %v1555
    %v1569 = vpop.f32.mrf.mxu0
    %v1570 = vadd.f32 0.0, %v1569
    %v1571 = vpop.f32.mrf.mxu0
    %v1572 = vadd.f32 0.0, %v1571
    %1573 = vmatmul.bf16.gmra.mxu0 %v1558
    %v1574 = vpop.f32.mrf.mxu0
    %v1575 = vadd.f32 0.0, %v1574
    %v1576 = vpop.f32.mrf.mxu0
    %v1577 = vadd.f32 0.0, %v1576
    %1578 = vdwg.mxu0
    %v1579 = vpack.c.bf16 %v1271, %v1269
    %v1580 = vpack.c.bf16 %v1276, %v1274
    %v1581 = vpack.c.bf16 %v1314, %v1312
    %v1582 = vpack.c.bf16 %v1319, %v1317
    %v1583 = vpack.c.bf16 %v1357, %v1355
    %v1584 = vpack.c.bf16 %v1362, %v1360
    %v1585 = vpack.c.bf16 %v1400, %v1398
    %v1586 = vpack.c.bf16 %v1405, %v1403
    %v1587 = vpack.c.bf16 %v1443, %v1441
    %v1588 = vpack.c.bf16 %v1448, %v1446
    %v1589 = vpack.c.bf16 %v1486, %v1484
    %v1590 = vpack.c.bf16 %v1491, %v1489
    %v1591 = vpack.c.bf16 %v1529, %v1527
    %v1592 = vpack.c.bf16 %v1534, %v1532
    %v1593 = vpack.c.bf16 %v1572, %v1570
    %v1594 = vpack.c.bf16 %v1577, %v1575
    %v1595 = vld [vmem:[%s2] sm:$0xf]
    %v1596 = vld [vmem:[%s2 + $0x4] sm:$0xf]
    %v1599 = vunpack.c.l.b16 %v1595
    %v1600 = vunpack.c.l.b16 %v1596
    %v1601 = vpack.c.b16 %v1600, %v1599
    %v1604 = vsel %vm531, %v1579, 0
    %v1607 = vsel %vm531, %v1580, 0
    %v1610 = vsel %vm531, %v1581, 0
    %v1613 = vsel %vm531, %v1582, 0
    %v1616 = vsel %vm531, %v1583, 0
    %v1619 = vsel %vm531, %v1584, 0
    %v1622 = vsel %vm531, %v1585, 0
    %v1625 = vsel %vm531, %v1586, 0
    %v1628 = vsel %vm531, %v1587, 0
    %v1631 = vsel %vm531, %v1588, 0
    %v1634 = vsel %vm531, %v1589, 0
    %v1637 = vsel %vm531, %v1590, 0
    %v1640 = vsel %vm531, %v1591, 0
    %v1643 = vsel %vm531, %v1592, 0
    %v1646 = vsel %vm531, %v1593, 0
    %v1649 = vsel %vm531, %v1594, 0
    %1651 = vmatpush.bf16.msra.mxu0 0
    %1652 = vmatpush.bf16.msra.mxu0 0
    %1653 = vmatpush.bf16.msra.mxu0 0
    %1654 = vmatpush.bf16.msra.mxu0 0
    %1655 = vmatpush.bf16.msra.mxu0 0
    %1656 = vmatpush.bf16.msra.mxu0 0
    %1657 = vmatpush.bf16.msra.mxu0 0
    %1658 = vmatpush.bf16.msra.mxu0 %v1601
    %1659 = vmatmul.bf16.gmra.mxu0 %v1604
    %v1660 = vpop.f32.mrf.mxu0
    %v1661 = vadd.f32 0.0, %v1660
    %v1662 = vpop.f32.mrf.mxu0
    %v1663 = vadd.f32 0.0, %v1662
    %1664 = vmatmul.bf16.gmra.mxu0 %v1607
    %v1665 = vpop.f32.mrf.mxu0
    %v1666 = vadd.f32 0.0, %v1665
    %v1667 = vpop.f32.mrf.mxu0
    %v1668 = vadd.f32 0.0, %v1667
    %1669 = vmatmul.bf16.gmra.mxu0 %v1610
    %v1670 = vpop.f32.mrf.mxu0
    %v1671 = vadd.f32 0.0, %v1670
    %v1672 = vpop.f32.mrf.mxu0
    %v1673 = vadd.f32 0.0, %v1672
    %1674 = vmatmul.bf16.gmra.mxu0 %v1613
    %v1675 = vpop.f32.mrf.mxu0
    %v1676 = vadd.f32 0.0, %v1675
    %v1677 = vpop.f32.mrf.mxu0
    %v1678 = vadd.f32 0.0, %v1677
    %1679 = vmatmul.bf16.gmra.mxu0 %v1616
    %v1680 = vpop.f32.mrf.mxu0
    %v1681 = vadd.f32 0.0, %v1680
    %v1682 = vpop.f32.mrf.mxu0
    %v1683 = vadd.f32 0.0, %v1682
    %1684 = vmatmul.bf16.gmra.mxu0 %v1619
    %v1685 = vpop.f32.mrf.mxu0
    %v1686 = vadd.f32 0.0, %v1685
    %v1687 = vpop.f32.mrf.mxu0
    %v1688 = vadd.f32 0.0, %v1687
    %1689 = vmatmul.bf16.gmra.mxu0 %v1622
    %v1690 = vpop.f32.mrf.mxu0
    %v1691 = vadd.f32 0.0, %v1690
    %v1692 = vpop.f32.mrf.mxu0
    %v1693 = vadd.f32 0.0, %v1692
    %1694 = vmatmul.bf16.gmra.mxu0 %v1625
    %v1695 = vpop.f32.mrf.mxu0
    %v1696 = vadd.f32 0.0, %v1695
    %v1697 = vpop.f32.mrf.mxu0
    %v1698 = vadd.f32 0.0, %v1697
    %1699 = vmatmul.bf16.gmra.mxu0 %v1628
    %v1700 = vpop.f32.mrf.mxu0
    %v1701 = vadd.f32 0.0, %v1700
    %v1702 = vpop.f32.mrf.mxu0
    %v1703 = vadd.f32 0.0, %v1702
    %1704 = vmatmul.bf16.gmra.mxu0 %v1631
    %v1705 = vpop.f32.mrf.mxu0
    %v1706 = vadd.f32 0.0, %v1705
    %v1707 = vpop.f32.mrf.mxu0
    %v1708 = vadd.f32 0.0, %v1707
    %1709 = vmatmul.bf16.gmra.mxu0 %v1634
    %v1710 = vpop.f32.mrf.mxu0
    %v1711 = vadd.f32 0.0, %v1710
    %v1712 = vpop.f32.mrf.mxu0
    %v1713 = vadd.f32 0.0, %v1712
    %1714 = vmatmul.bf16.gmra.mxu0 %v1637
    %v1715 = vpop.f32.mrf.mxu0
    %v1716 = vadd.f32 0.0, %v1715
    %v1717 = vpop.f32.mrf.mxu0
    %v1718 = vadd.f32 0.0, %v1717
    %1719 = vmatmul.bf16.gmra.mxu0 %v1640
    %v1720 = vpop.f32.mrf.mxu0
    %v1721 = vadd.f32 0.0, %v1720
    %v1722 = vpop.f32.mrf.mxu0
    %v1723 = vadd.f32 0.0, %v1722
    %1724 = vmatmul.bf16.gmra.mxu0 %v1643
    %v1725 = vpop.f32.mrf.mxu0
    %v1726 = vadd.f32 0.0, %v1725
    %v1727 = vpop.f32.mrf.mxu0
    %v1728 = vadd.f32 0.0, %v1727
    %1729 = vmatmul.bf16.gmra.mxu0 %v1646
    %v1730 = vpop.f32.mrf.mxu0
    %v1731 = vadd.f32 0.0, %v1730
    %v1732 = vpop.f32.mrf.mxu0
    %v1733 = vadd.f32 0.0, %v1732
    %1734 = vmatmul.bf16.gmra.mxu0 %v1649
    %v1735 = vpop.f32.mrf.mxu0
    %v1736 = vadd.f32 0.0, %v1735
    %v1737 = vpop.f32.mrf.mxu0
    %v1738 = vadd.f32 0.0, %v1737
    %1739 = vdwg.mxu0
    %v1740 = vadd.f32 %v455, %v1661
    %v1741 = vadd.f32 %v455, %v1663
    %v1742 = vadd.f32 %v455, %v1666
    %v1743 = vadd.f32 %v455, %v1668
    %v1744 = vadd.f32 %v455, %v1671
    %v1745 = vadd.f32 %v455, %v1673
    %v1746 = vadd.f32 %v455, %v1676
    %v1747 = vadd.f32 %v455, %v1678
    %v1748 = vadd.f32 %v455, %v1681
    %v1749 = vadd.f32 %v455, %v1683
    %v1750 = vadd.f32 %v455, %v1686
    %v1751 = vadd.f32 %v455, %v1688
    %v1752 = vadd.f32 %v455, %v1691
    %v1753 = vadd.f32 %v455, %v1693
    %v1754 = vadd.f32 %v455, %v1696
    %v1755 = vadd.f32 %v455, %v1698
    %v1756 = vadd.f32 %v455, %v1701
    %v1757 = vadd.f32 %v455, %v1703
    %v1758 = vadd.f32 %v455, %v1706
    %v1759 = vadd.f32 %v455, %v1708
    %v1760 = vadd.f32 %v455, %v1711
    %v1761 = vadd.f32 %v455, %v1713
    %v1762 = vadd.f32 %v455, %v1716
    %v1763 = vadd.f32 %v455, %v1718
    %v1764 = vadd.f32 %v455, %v1721
    %v1765 = vadd.f32 %v455, %v1723
    %v1766 = vadd.f32 %v455, %v1726
    %v1767 = vadd.f32 %v455, %v1728
    %v1768 = vadd.f32 %v455, %v1731
    %v1769 = vadd.f32 %v455, %v1733
    %v1770 = vadd.f32 %v455, %v1736
    %v1771 = vadd.f32 %v455, %v1738
    %1772 = vrot.lane.b32.xlu0 %v406, 112
    %v1773 = vpop.permute.xlu0 %1772
    %1774 = vrot.lane.b32.xlu0 %v407, 112
    %v1775 = vpop.permute.xlu0 %1774
    %1776 = vrot.lane.b32.xlu0 %v408, 112
    %v1777 = vpop.permute.xlu0 %1776
    %1778 = vrot.lane.b32.xlu0 %v409, 112
    %v1779 = vpop.permute.xlu0 %1778
    %1780 = vrot.lane.b32.xlu0 %v410, 112
    %v1781 = vpop.permute.xlu0 %1780
    %1782 = vrot.lane.b32.xlu0 %v411, 112
    %v1783 = vpop.permute.xlu0 %1782
    %1784 = vrot.lane.b32.xlu0 %v412, 112
    %v1785 = vpop.permute.xlu0 %1784
    %1786 = vrot.lane.b32.xlu0 %v413, 112
    %v1787 = vpop.permute.xlu0 %1786
    %1788 = vrot.lane.b32.xlu0 %v414, 112
    %v1789 = vpop.permute.xlu0 %1788
    %1790 = vrot.lane.b32.xlu0 %v415, 112
    %v1791 = vpop.permute.xlu0 %1790
    %1792 = vrot.lane.b32.xlu0 %v416, 112
    %v1793 = vpop.permute.xlu0 %1792
    %1794 = vrot.lane.b32.xlu0 %v417, 112
    %v1795 = vpop.permute.xlu0 %1794
    %1796 = vrot.lane.b32.xlu0 %v418, 112
    %v1797 = vpop.permute.xlu0 %1796
    %1798 = vrot.lane.b32.xlu0 %v419, 112
    %v1799 = vpop.permute.xlu0 %1798
    %1800 = vrot.lane.b32.xlu0 %v420, 112
    %v1801 = vpop.permute.xlu0 %1800
    %1802 = vrot.lane.b32.xlu0 %v421, 112
    %v1803 = vpop.permute.xlu0 %1802
    %1804 = vrot.lane.b32.xlu0 %v422, 112
    %v1805 = vpop.permute.xlu0 %1804
    %1806 = vrot.lane.b32.xlu0 %v423, 112
    %v1807 = vpop.permute.xlu0 %1806
    %1808 = vrot.lane.b32.xlu0 %v424, 112
    %v1809 = vpop.permute.xlu0 %1808
    %1810 = vrot.lane.b32.xlu0 %v425, 112
    %v1811 = vpop.permute.xlu0 %1810
    %1812 = vrot.lane.b32.xlu0 %v426, 112
    %v1813 = vpop.permute.xlu0 %1812
    %1814 = vrot.lane.b32.xlu0 %v427, 112
    %v1815 = vpop.permute.xlu0 %1814
    %1816 = vrot.lane.b32.xlu0 %v428, 112
    %v1817 = vpop.permute.xlu0 %1816
    %1818 = vrot.lane.b32.xlu0 %v429, 112
    %v1819 = vpop.permute.xlu0 %1818
    %1820 = vrot.lane.b32.xlu0 %v430, 112
    %v1821 = vpop.permute.xlu0 %1820
    %1822 = vrot.lane.b32.xlu0 %v431, 112
    %v1823 = vpop.permute.xlu0 %1822
    %1824 = vrot.lane.b32.xlu0 %v432, 112
    %v1825 = vpop.permute.xlu0 %1824
    %1826 = vrot.lane.b32.xlu0 %v433, 112
    %v1827 = vpop.permute.xlu0 %1826
    %1828 = vrot.lane.b32.xlu0 %v434, 112
    %v1829 = vpop.permute.xlu0 %1828
    %1830 = vrot.lane.b32.xlu0 %v435, 112
    %v1831 = vpop.permute.xlu0 %1830
    %1832 = vrot.lane.b32.xlu0 %v436, 112
    %v1833 = vpop.permute.xlu0 %1832
    %1834 = vrot.lane.b32.xlu0 %v437, 112
    %v1835 = vpop.permute.xlu0 %1834
    %v1836 = vrot.slane %v1773, 4
    %v1837 = vrot.slane %v1775, 4
    %v1838 = vrot.slane %v1777, 4
    %v1839 = vrot.slane %v1779, 4
    %v1840 = vrot.slane %v1781, 4
    %v1841 = vrot.slane %v1783, 4
    %v1842 = vrot.slane %v1785, 4
    %v1843 = vrot.slane %v1787, 4
    %v1844 = vrot.slane %v1789, 4
    %v1845 = vrot.slane %v1791, 4
    %v1846 = vrot.slane %v1793, 4
    %v1847 = vrot.slane %v1795, 4
    %v1848 = vrot.slane %v1797, 4
    %v1849 = vrot.slane %v1799, 4
    %v1850 = vrot.slane %v1801, 4
    %v1851 = vrot.slane %v1803, 4
    %v1852 = vrot.slane %v1805, 4
    %v1853 = vrot.slane %v1807, 4
    %v1854 = vrot.slane %v1809, 4
    %v1855 = vrot.slane %v1811, 4
    %v1856 = vrot.slane %v1813, 4
    %v1857 = vrot.slane %v1815, 4
    %v1858 = vrot.slane %v1817, 4
    %v1859 = vrot.slane %v1819, 4
    %v1860 = vrot.slane %v1821, 4
    %v1861 = vrot.slane %v1823, 4
    %v1862 = vrot.slane %v1825, 4
    %v1863 = vrot.slane %v1827, 4
    %v1864 = vrot.slane %v1829, 4
    %v1865 = vrot.slane %v1831, 4
    %v1866 = vrot.slane %v1833, 4
    %v1867 = vrot.slane %v1835, 4
    %1868 = vrot.lane.b32.xlu0 %v525, 112
    %v1869 = vpop.permute.xlu0 %1868
    %1870 = vrot.lane.b32.xlu0 %v526, 112
    %v1871 = vpop.permute.xlu0 %1870
    %1872 = vrot.lane.b32.xlu0 %v525, 48
    %v1873 = vpop.permute.xlu0 %1872
    %1874 = vrot.lane.b32.xlu0 %v526, 48
    %v1875 = vpop.permute.xlu0 %1874
    %v1877 = vsel %vm531, %v1869, 0
    %v1880 = vsel %vm531, %v1871, 0
    %v1883 = vsel %vm531, %v1873, 0
    %v1886 = vsel %vm531, %v1875, 0
    %1888 = vmatpush.bf16.xpose.msra.mxu0 0
    %1889 = vmatpush.bf16.xpose.msra.mxu0 0
    %1890 = vmatpush.bf16.xpose.msra.mxu0 0
    %1891 = vmatpush.bf16.xpose.msra.mxu0 0
    %1892 = vmatpush.bf16.xpose.msra.mxu0 0
    %1893 = vmatpush.bf16.xpose.msra.mxu0 0
    %1894 = vmatpush.bf16.xpose.msra.mxu0 %v1886
    %1895 = vmatpush.bf16.xpose.msra.mxu0 %v1883
    %1896 = vmatmul.bf16.gmra.mxu0 %v1877
    %v1897 = vpop.f32.mrf.mxu0
    %v1898 = vadd.f32 %v449, %v1897
    %v1899 = vpop.f32.mrf.mxu0
    %v1900 = vadd.f32 %v450, %v1899
    %1901 = vmatmul.bf16.gmra.mxu0 %v1880
    %v1902 = vpop.f32.mrf.mxu0
    %v1903 = vadd.f32 %v451, %v1902
    %v1904 = vpop.f32.mrf.mxu0
    %v1905 = vadd.f32 %v452, %v1904
    %1906 = vdwg.mxu0
    %1907 = vrot.lane.b32.xlu0 %v567, 112
    %v1908 = vpop.permute.xlu0 %1907
    %1909 = vrot.lane.b32.xlu0 %v568, 112
    %v1910 = vpop.permute.xlu0 %1909
    %1911 = vrot.lane.b32.xlu0 %v567, 48
    %v1912 = vpop.permute.xlu0 %1911
    %1913 = vrot.lane.b32.xlu0 %v568, 48
    %v1914 = vpop.permute.xlu0 %1913
    %v1916 = vsel %vm531, %v1908, 0
    %v1919 = vsel %vm531, %v1910, 0
    %v1922 = vsel %vm531, %v1912, 0
    %v1925 = vsel %vm531, %v1914, 0
    %1927 = vmatpush.bf16.xpose.msra.mxu0 0
    %1928 = vmatpush.bf16.xpose.msra.mxu0 0
    %1929 = vmatpush.bf16.xpose.msra.mxu0 0
    %1930 = vmatpush.bf16.xpose.msra.mxu0 0
    %1931 = vmatpush.bf16.xpose.msra.mxu0 0
    %1932 = vmatpush.bf16.xpose.msra.mxu0 0
    %1933 = vmatpush.bf16.xpose.msra.mxu0 %v1925
    %1934 = vmatpush.bf16.xpose.msra.mxu0 %v1922
    %1935 = vmatmul.bf16.gmra.mxu0 %v1916
    %v1936 = vpop.f32.mrf.mxu0
    %v1937 = vadd.f32 %v449, %v1936
    %v1938 = vpop.f32.mrf.mxu0
    %v1939 = vadd.f32 %v450, %v1938
    %1940 = vmatmul.bf16.gmra.mxu0 %v1919
    %v1941 = vpop.f32.mrf.mxu0
    %v1942 = vadd.f32 %v451, %v1941
    %v1943 = vpop.f32.mrf.mxu0
    %v1944 = vadd.f32 %v452, %v1943
    %1945 = vdwg.mxu0
    %1946 = vrot.lane.b32.xlu0 %v608, 112
    %v1947 = vpop.permute.xlu0 %1946
    %1948 = vrot.lane.b32.xlu0 %v609, 112
    %v1949 = vpop.permute.xlu0 %1948
    %1950 = vrot.lane.b32.xlu0 %v608, 48
    %v1951 = vpop.permute.xlu0 %1950
    %1952 = vrot.lane.b32.xlu0 %v609, 48
    %v1953 = vpop.permute.xlu0 %1952
    %v1955 = vsel %vm531, %v1947, 0
    %v1958 = vsel %vm531, %v1949, 0
    %v1961 = vsel %vm531, %v1951, 0
    %v1964 = vsel %vm531, %v1953, 0
    %1966 = vmatpush.bf16.xpose.msra.mxu0 0
    %1967 = vmatpush.bf16.xpose.msra.mxu0 0
    %1968 = vmatpush.bf16.xpose.msra.mxu0 0
    %1969 = vmatpush.bf16.xpose.msra.mxu0 0
    %1970 = vmatpush.bf16.xpose.msra.mxu0 0
    %1971 = vmatpush.bf16.xpose.msra.mxu0 0
    %1972 = vmatpush.bf16.xpose.msra.mxu0 %v1964
    %1973 = vmatpush.bf16.xpose.msra.mxu0 %v1961
    %1974 = vmatmul.bf16.gmra.mxu0 %v1955
    %v1975 = vpop.f32.mrf.mxu0
    %v1976 = vadd.f32 %v449, %v1975
    %v1977 = vpop.f32.mrf.mxu0
    %v1978 = vadd.f32 %v450, %v1977
    %1979 = vmatmul.bf16.gmra.mxu0 %v1958
    %v1980 = vpop.f32.mrf.mxu0
    %v1981 = vadd.f32 %v451, %v1980
    %v1982 = vpop.f32.mrf.mxu0
    %v1983 = vadd.f32 %v452, %v1982
    %1984 = vdwg.mxu0
    %1985 = vrot.lane.b32.xlu0 %v649, 112
    %v1986 = vpop.permute.xlu0 %1985
    %1987 = vrot.lane.b32.xlu0 %v650, 112
    %v1988 = vpop.permute.xlu0 %1987
    %1989 = vrot.lane.b32.xlu0 %v649, 48
    %v1990 = vpop.permute.xlu0 %1989
    %1991 = vrot.lane.b32.xlu0 %v650, 48
    %v1992 = vpop.permute.xlu0 %1991
    %v1994 = vsel %vm531, %v1986, 0
    %v1997 = vsel %vm531, %v1988, 0
    %v2000 = vsel %vm531, %v1990, 0
    %v2003 = vsel %vm531, %v1992, 0
    %2005 = vmatpush.bf16.xpose.msra.mxu0 0
    %2006 = vmatpush.bf16.xpose.msra.mxu0 0
    %2007 = vmatpush.bf16.xpose.msra.mxu0 0
    %2008 = vmatpush.bf16.xpose.msra.mxu0 0
    %2009 = vmatpush.bf16.xpose.msra.mxu0 0
    %2010 = vmatpush.bf16.xpose.msra.mxu0 0
    %2011 = vmatpush.bf16.xpose.msra.mxu0 %v2003
    %2012 = vmatpush.bf16.xpose.msra.mxu0 %v2000
    %2013 = vmatmul.bf16.gmra.mxu0 %v1994
    %v2014 = vpop.f32.mrf.mxu0
    %v2015 = vadd.f32 %v449, %v2014
    %v2016 = vpop.f32.mrf.mxu0
    %v2017 = vadd.f32 %v450, %v2016
    %2018 = vmatmul.bf16.gmra.mxu0 %v1997
    %v2019 = vpop.f32.mrf.mxu0
    %v2020 = vadd.f32 %v451, %v2019
    %v2021 = vpop.f32.mrf.mxu0
    %v2022 = vadd.f32 %v452, %v2021
    %2023 = vdwg.mxu0
    %2024 = vrot.lane.b32.xlu0 %v690, 112
    %v2025 = vpop.permute.xlu0 %2024
    %2026 = vrot.lane.b32.xlu0 %v691, 112
    %v2027 = vpop.permute.xlu0 %2026
    %2028 = vrot.lane.b32.xlu0 %v690, 48
    %v2029 = vpop.permute.xlu0 %2028
    %2030 = vrot.lane.b32.xlu0 %v691, 48
    %v2031 = vpop.permute.xlu0 %2030
    %v2033 = vsel %vm531, %v2025, 0
    %v2036 = vsel %vm531, %v2027, 0
    %v2039 = vsel %vm531, %v2029, 0
    %v2042 = vsel %vm531, %v2031, 0
    %2044 = vmatpush.bf16.xpose.msra.mxu0 0
    %2045 = vmatpush.bf16.xpose.msra.mxu0 0
    %2046 = vmatpush.bf16.xpose.msra.mxu0 0
    %2047 = vmatpush.bf16.xpose.msra.mxu0 0
    %2048 = vmatpush.bf16.xpose.msra.mxu0 0
    %2049 = vmatpush.bf16.xpose.msra.mxu0 0
    %2050 = vmatpush.bf16.xpose.msra.mxu0 %v2042
    %2051 = vmatpush.bf16.xpose.msra.mxu0 %v2039
    %2052 = vmatmul.bf16.gmra.mxu0 %v2033
    %v2053 = vpop.f32.mrf.mxu0
    %v2054 = vadd.f32 %v449, %v2053
    %v2055 = vpop.f32.mrf.mxu0
    %v2056 = vadd.f32 %v450, %v2055
    %2057 = vmatmul.bf16.gmra.mxu0 %v2036
    %v2058 = vpop.f32.mrf.mxu0
    %v2059 = vadd.f32 %v451, %v2058
    %v2060 = vpop.f32.mrf.mxu0
    %v2061 = vadd.f32 %v452, %v2060
    %2062 = vdwg.mxu0
    %2063 = vrot.lane.b32.xlu0 %v731, 112
    %v2064 = vpop.permute.xlu0 %2063
    %2065 = vrot.lane.b32.xlu0 %v732, 112
    %v2066 = vpop.permute.xlu0 %2065
    %2067 = vrot.lane.b32.xlu0 %v731, 48
    %v2068 = vpop.permute.xlu0 %2067
    %2069 = vrot.lane.b32.xlu0 %v732, 48
    %v2070 = vpop.permute.xlu0 %2069
    %v2072 = vsel %vm531, %v2064, 0
    %v2075 = vsel %vm531, %v2066, 0
    %v2078 = vsel %vm531, %v2068, 0
    %v2081 = vsel %vm531, %v2070, 0
    %2083 = vmatpush.bf16.xpose.msra.mxu0 0
    %2084 = vmatpush.bf16.xpose.msra.mxu0 0
    %2085 = vmatpush.bf16.xpose.msra.mxu0 0
    %2086 = vmatpush.bf16.xpose.msra.mxu0 0
    %2087 = vmatpush.bf16.xpose.msra.mxu0 0
    %2088 = vmatpush.bf16.xpose.msra.mxu0 0
    %2089 = vmatpush.bf16.xpose.msra.mxu0 %v2081
    %2090 = vmatpush.bf16.xpose.msra.mxu0 %v2078
    %2091 = vmatmul.bf16.gmra.mxu0 %v2072
    %v2092 = vpop.f32.mrf.mxu0
    %v2093 = vadd.f32 %v449, %v2092
    %v2094 = vpop.f32.mrf.mxu0
    %v2095 = vadd.f32 %v450, %v2094
    %2096 = vmatmul.bf16.gmra.mxu0 %v2075
    %v2097 = vpop.f32.mrf.mxu0
    %v2098 = vadd.f32 %v451, %v2097
    %v2099 = vpop.f32.mrf.mxu0
    %v2100 = vadd.f32 %v452, %v2099
    %2101 = vdwg.mxu0
    %2102 = vrot.lane.b32.xlu0 %v772, 112
    %v2103 = vpop.permute.xlu0 %2102
    %2104 = vrot.lane.b32.xlu0 %v773, 112
    %v2105 = vpop.permute.xlu0 %2104
    %2106 = vrot.lane.b32.xlu0 %v772, 48
    %v2107 = vpop.permute.xlu0 %2106
    %2108 = vrot.lane.b32.xlu0 %v773, 48
    %v2109 = vpop.permute.xlu0 %2108
    %v2111 = vsel %vm531, %v2103, 0
    %v2114 = vsel %vm531, %v2105, 0
    %v2117 = vsel %vm531, %v2107, 0
    %v2120 = vsel %vm531, %v2109, 0
    %2122 = vmatpush.bf16.xpose.msra.mxu0 0
    %2123 = vmatpush.bf16.xpose.msra.mxu0 0
    %2124 = vmatpush.bf16.xpose.msra.mxu0 0
    %2125 = vmatpush.bf16.xpose.msra.mxu0 0
    %2126 = vmatpush.bf16.xpose.msra.mxu0 0
    %2127 = vmatpush.bf16.xpose.msra.mxu0 0
    %2128 = vmatpush.bf16.xpose.msra.mxu0 %v2120
    %2129 = vmatpush.bf16.xpose.msra.mxu0 %v2117
    %2130 = vmatmul.bf16.gmra.mxu0 %v2111
    %v2131 = vpop.f32.mrf.mxu0
    %v2132 = vadd.f32 %v449, %v2131
    %v2133 = vpop.f32.mrf.mxu0
    %v2134 = vadd.f32 %v450, %v2133
    %2135 = vmatmul.bf16.gmra.mxu0 %v2114
    %v2136 = vpop.f32.mrf.mxu0
    %v2137 = vadd.f32 %v451, %v2136
    %v2138 = vpop.f32.mrf.mxu0
    %v2139 = vadd.f32 %v452, %v2138
    %2140 = vdwg.mxu0
    %2141 = vrot.lane.b32.xlu0 %v813, 112
    %v2142 = vpop.permute.xlu0 %2141
    %2143 = vrot.lane.b32.xlu0 %v814, 112
    %v2144 = vpop.permute.xlu0 %2143
    %2145 = vrot.lane.b32.xlu0 %v813, 48
    %v2146 = vpop.permute.xlu0 %2145
    %2147 = vrot.lane.b32.xlu0 %v814, 48
    %v2148 = vpop.permute.xlu0 %2147
    %v2150 = vsel %vm531, %v2142, 0
    %v2153 = vsel %vm531, %v2144, 0
    %v2156 = vsel %vm531, %v2146, 0
    %v2159 = vsel %vm531, %v2148, 0
    %2161 = vmatpush.bf16.xpose.msra.mxu0 0
    %2162 = vmatpush.bf16.xpose.msra.mxu0 0
    %2163 = vmatpush.bf16.xpose.msra.mxu0 0
    %2164 = vmatpush.bf16.xpose.msra.mxu0 0
    %2165 = vmatpush.bf16.xpose.msra.mxu0 0
    %2166 = vmatpush.bf16.xpose.msra.mxu0 0
    %2167 = vmatpush.bf16.xpose.msra.mxu0 %v2159
    %2168 = vmatpush.bf16.xpose.msra.mxu0 %v2156
    %2169 = vmatmul.bf16.gmra.mxu0 %v2150
    %v2170 = vpop.f32.mrf.mxu0
    %v2171 = vadd.f32 %v449, %v2170
    %v2172 = vpop.f32.mrf.mxu0
    %v2173 = vadd.f32 %v450, %v2172
    %2174 = vmatmul.bf16.gmra.mxu0 %v2153
    %v2175 = vpop.f32.mrf.mxu0
    %v2176 = vadd.f32 %v451, %v2175
    %v2177 = vpop.f32.mrf.mxu0
    %v2178 = vadd.f32 %v452, %v2177
    %2179 = vdwg.mxu0
    %v2180 = vsel %vm850, %v1898, -inf
    %2181 = vmax.xlane.f32.xlu0 %v2180
    %v2182 = vpop.xlane.xlu0 %2181
    %v2183 = vsel %vm850, %v1900, -inf
    %2184 = vmax.xlane.f32.xlu0 %v2183
    %v2185 = vpop.xlane.xlu0 %2184
    %v2186 = vsel %vm850, %v1903, -inf
    %2187 = vmax.xlane.f32.xlu0 %v2186
    %v2188 = vpop.xlane.xlu0 %2187
    %v2189 = vsel %vm850, %v1905, -inf
    %2190 = vmax.xlane.f32.xlu0 %v2189
    %v2191 = vpop.xlane.xlu0 %2190
    %v2192 = vsel %vm850, %v1937, -inf
    %2193 = vmax.xlane.f32.xlu0 %v2192
    %v2194 = vpop.xlane.xlu0 %2193
    %v2195 = vsel %vm850, %v1939, -inf
    %2196 = vmax.xlane.f32.xlu0 %v2195
    %v2197 = vpop.xlane.xlu0 %2196
    %v2198 = vsel %vm850, %v1942, -inf
    %2199 = vmax.xlane.f32.xlu0 %v2198
    %v2200 = vpop.xlane.xlu0 %2199
    %v2201 = vsel %vm850, %v1944, -inf
    %2202 = vmax.xlane.f32.xlu0 %v2201
    %v2203 = vpop.xlane.xlu0 %2202
    %v2204 = vsel %vm850, %v1976, -inf
    %2205 = vmax.xlane.f32.xlu0 %v2204
    %v2206 = vpop.xlane.xlu0 %2205
    %v2207 = vsel %vm850, %v1978, -inf
    %2208 = vmax.xlane.f32.xlu0 %v2207
    %v2209 = vpop.xlane.xlu0 %2208
    %v2210 = vsel %vm850, %v1981, -inf
    %2211 = vmax.xlane.f32.xlu0 %v2210
    %v2212 = vpop.xlane.xlu0 %2211
    %v2213 = vsel %vm850, %v1983, -inf
    %2214 = vmax.xlane.f32.xlu0 %v2213
    %v2215 = vpop.xlane.xlu0 %2214
    %v2216 = vsel %vm850, %v2015, -inf
    %2217 = vmax.xlane.f32.xlu0 %v2216
    %v2218 = vpop.xlane.xlu0 %2217
    %v2219 = vsel %vm850, %v2017, -inf
    %2220 = vmax.xlane.f32.xlu0 %v2219
    %v2221 = vpop.xlane.xlu0 %2220
    %v2222 = vsel %vm850, %v2020, -inf
    %2223 = vmax.xlane.f32.xlu0 %v2222
    %v2224 = vpop.xlane.xlu0 %2223
    %v2225 = vsel %vm850, %v2022, -inf
    %2226 = vmax.xlane.f32.xlu0 %v2225
    %v2227 = vpop.xlane.xlu0 %2226
    %v2228 = vsel %vm850, %v2054, -inf
    %2229 = vmax.xlane.f32.xlu0 %v2228
    %v2230 = vpop.xlane.xlu0 %2229
    %v2231 = vsel %vm850, %v2056, -inf
    %2232 = vmax.xlane.f32.xlu0 %v2231
    %v2233 = vpop.xlane.xlu0 %2232
    %v2234 = vsel %vm850, %v2059, -inf
    %2235 = vmax.xlane.f32.xlu0 %v2234
    %v2236 = vpop.xlane.xlu0 %2235
    %v2237 = vsel %vm850, %v2061, -inf
    %2238 = vmax.xlane.f32.xlu0 %v2237
    %v2239 = vpop.xlane.xlu0 %2238
    %v2240 = vsel %vm850, %v2093, -inf
    %2241 = vmax.xlane.f32.xlu0 %v2240
    %v2242 = vpop.xlane.xlu0 %2241
    %v2243 = vsel %vm850, %v2095, -inf
    %2244 = vmax.xlane.f32.xlu0 %v2243
    %v2245 = vpop.xlane.xlu0 %2244
    %v2246 = vsel %vm850, %v2098, -inf
    %2247 = vmax.xlane.f32.xlu0 %v2246
    %v2248 = vpop.xlane.xlu0 %2247
    %v2249 = vsel %vm850, %v2100, -inf
    %2250 = vmax.xlane.f32.xlu0 %v2249
    %v2251 = vpop.xlane.xlu0 %2250
    %v2252 = vsel %vm850, %v2132, -inf
    %2253 = vmax.xlane.f32.xlu0 %v2252
    %v2254 = vpop.xlane.xlu0 %2253
    %v2255 = vsel %vm850, %v2134, -inf
    %2256 = vmax.xlane.f32.xlu0 %v2255
    %v2257 = vpop.xlane.xlu0 %2256
    %v2258 = vsel %vm850, %v2137, -inf
    %2259 = vmax.xlane.f32.xlu0 %v2258
    %v2260 = vpop.xlane.xlu0 %2259
    %v2261 = vsel %vm850, %v2139, -inf
    %2262 = vmax.xlane.f32.xlu0 %v2261
    %v2263 = vpop.xlane.xlu0 %2262
    %v2264 = vsel %vm850, %v2171, -inf
    %2265 = vmax.xlane.f32.xlu0 %v2264
    %v2266 = vpop.xlane.xlu0 %2265
    %v2267 = vsel %vm850, %v2173, -inf
    %2268 = vmax.xlane.f32.xlu0 %v2267
    %v2269 = vpop.xlane.xlu0 %2268
    %v2270 = vsel %vm850, %v2176, -inf
    %2271 = vmax.xlane.f32.xlu0 %v2270
    %v2272 = vpop.xlane.xlu0 %2271
    %v2273 = vsel %vm850, %v2178, -inf
    %2274 = vmax.xlane.f32.xlu0 %v2273
    %v2275 = vpop.xlane.xlu0 %2274
    %v2276 = vsub.f32 %v1898, %v2182
    %v2277 = vsub.f32 %v1900, %v2185
    %v2278 = vsub.f32 %v1903, %v2188
    %v2279 = vsub.f32 %v1905, %v2191
    %v2280 = vsub.f32 %v1937, %v2194
    %v2281 = vsub.f32 %v1939, %v2197
    %v2282 = vsub.f32 %v1942, %v2200
    %v2283 = vsub.f32 %v1944, %v2203
    %v2284 = vsub.f32 %v1976, %v2206
    %v2285 = vsub.f32 %v1978, %v2209
    %v2286 = vsub.f32 %v1981, %v2212
    %v2287 = vsub.f32 %v1983, %v2215
    %v2288 = vsub.f32 %v2015, %v2218
    %v2289 = vsub.f32 %v2017, %v2221
    %v2290 = vsub.f32 %v2020, %v2224
    %v2291 = vsub.f32 %v2022, %v2227
    %v2292 = vsub.f32 %v2054, %v2230
    %v2293 = vsub.f32 %v2056, %v2233
    %v2294 = vsub.f32 %v2059, %v2236
    %v2295 = vsub.f32 %v2061, %v2239
    %v2296 = vsub.f32 %v2093, %v2242
    %v2297 = vsub.f32 %v2095, %v2245
    %v2298 = vsub.f32 %v2098, %v2248
    %v2299 = vsub.f32 %v2100, %v2251
    %v2300 = vsub.f32 %v2132, %v2254
    %v2301 = vsub.f32 %v2134, %v2257
    %v2302 = vsub.f32 %v2137, %v2260
    %v2303 = vsub.f32 %v2139, %v2263
    %v2304 = vsub.f32 %v2171, %v2266
    %v2305 = vsub.f32 %v2173, %v2269
    %v2306 = vsub.f32 %v2176, %v2272
    %v2307 = vsub.f32 %v2178, %v2275
    %v2308 = vmul.f32 %v2276, 1.442695
    %v2309 = vpow.pop %v2308
    %v2310 = vmul.f32 %v2277, 1.442695
    %v2311 = vpow.pop %v2310
    %v2312 = vmul.f32 %v2278, 1.442695
    %v2313 = vpow.pop %v2312
    %v2314 = vmul.f32 %v2279, 1.442695
    %v2315 = vpow.pop %v2314
    %v2316 = vmul.f32 %v2280, 1.442695
    %v2317 = vpow.pop %v2316
    %v2318 = vmul.f32 %v2281, 1.442695
    %v2319 = vpow.pop %v2318
    %v2320 = vmul.f32 %v2282, 1.442695
    %v2321 = vpow.pop %v2320
    %v2322 = vmul.f32 %v2283, 1.442695
    %v2323 = vpow.pop %v2322
    %v2324 = vmul.f32 %v2284, 1.442695
    %v2325 = vpow.pop %v2324
    %v2326 = vmul.f32 %v2285, 1.442695
    %v2327 = vpow.pop %v2326
    %v2328 = vmul.f32 %v2286, 1.442695
    %v2329 = vpow.pop %v2328
    %v2330 = vmul.f32 %v2287, 1.442695
    %v2331 = vpow.pop %v2330
    %v2332 = vmul.f32 %v2288, 1.442695
    %v2333 = vpow.pop %v2332
    %v2334 = vmul.f32 %v2289, 1.442695
    %v2335 = vpow.pop %v2334
    %v2336 = vmul.f32 %v2290, 1.442695
    %v2337 = vpow.pop %v2336
    %v2338 = vmul.f32 %v2291, 1.442695
    %v2339 = vpow.pop %v2338
    %v2340 = vmul.f32 %v2292, 1.442695
    %v2341 = vpow.pop %v2340
    %v2342 = vmul.f32 %v2293, 1.442695
    %v2343 = vpow.pop %v2342
    %v2344 = vmul.f32 %v2294, 1.442695
    %v2345 = vpow.pop %v2344
    %v2346 = vmul.f32 %v2295, 1.442695
    %v2347 = vpow.pop %v2346
    %v2348 = vmul.f32 %v2296, 1.442695
    %v2349 = vpow.pop %v2348
    %v2350 = vmul.f32 %v2297, 1.442695
    %v2351 = vpow.pop %v2350
    %v2352 = vmul.f32 %v2298, 1.442695
    %v2353 = vpow.pop %v2352
    %v2354 = vmul.f32 %v2299, 1.442695
    %v2355 = vpow.pop %v2354
    %v2356 = vmul.f32 %v2300, 1.442695
    %v2357 = vpow.pop %v2356
    %v2358 = vmul.f32 %v2301, 1.442695
    %v2359 = vpow.pop %v2358
    %v2360 = vmul.f32 %v2302, 1.442695
    %v2361 = vpow.pop %v2360
    %v2362 = vmul.f32 %v2303, 1.442695
    %v2363 = vpow.pop %v2362
    %v2364 = vmul.f32 %v2304, 1.442695
    %v2365 = vpow.pop %v2364
    %v2366 = vmul.f32 %v2305, 1.442695
    %v2367 = vpow.pop %v2366
    %v2368 = vmul.f32 %v2306, 1.442695
    %v2369 = vpow.pop %v2368
    %v2370 = vmul.f32 %v2307, 1.442695
    %v2371 = vpow.pop %v2370
    %v2372 = vsel %vm850, %v2309, 0.0
    %2373 = vadd.xlane.f32.xlu0 %v2372
    %v2374 = vpop.xlane.xlu0 %2373
    %v2375 = vsel %vm850, %v2311, 0.0
    %2376 = vadd.xlane.f32.xlu0 %v2375
    %v2377 = vpop.xlane.xlu0 %2376
    %v2378 = vsel %vm850, %v2313, 0.0
    %2379 = vadd.xlane.f32.xlu0 %v2378
    %v2380 = vpop.xlane.xlu0 %2379
    %v2381 = vsel %vm850, %v2315, 0.0
    %2382 = vadd.xlane.f32.xlu0 %v2381
    %v2383 = vpop.xlane.xlu0 %2382
    %v2384 = vsel %vm850, %v2317, 0.0
    %2385 = vadd.xlane.f32.xlu0 %v2384
    %v2386 = vpop.xlane.xlu0 %2385
    %v2387 = vsel %vm850, %v2319, 0.0
    %2388 = vadd.xlane.f32.xlu0 %v2387
    %v2389 = vpop.xlane.xlu0 %2388
    %v2390 = vsel %vm850, %v2321, 0.0
    %2391 = vadd.xlane.f32.xlu0 %v2390
    %v2392 = vpop.xlane.xlu0 %2391
    %v2393 = vsel %vm850, %v2323, 0.0
    %2394 = vadd.xlane.f32.xlu0 %v2393
    %v2395 = vpop.xlane.xlu0 %2394
    %v2396 = vsel %vm850, %v2325, 0.0
    %2397 = vadd.xlane.f32.xlu0 %v2396
    %v2398 = vpop.xlane.xlu0 %2397
    %v2399 = vsel %vm850, %v2327, 0.0
    %2400 = vadd.xlane.f32.xlu0 %v2399
    %v2401 = vpop.xlane.xlu0 %2400
    %v2402 = vsel %vm850, %v2329, 0.0
    %2403 = vadd.xlane.f32.xlu0 %v2402
    %v2404 = vpop.xlane.xlu0 %2403
    %v2405 = vsel %vm850, %v2331, 0.0
    %2406 = vadd.xlane.f32.xlu0 %v2405
    %v2407 = vpop.xlane.xlu0 %2406
    %v2408 = vsel %vm850, %v2333, 0.0
    %2409 = vadd.xlane.f32.xlu0 %v2408
    %v2410 = vpop.xlane.xlu0 %2409
    %v2411 = vsel %vm850, %v2335, 0.0
    %2412 = vadd.xlane.f32.xlu0 %v2411
    %v2413 = vpop.xlane.xlu0 %2412
    %v2414 = vsel %vm850, %v2337, 0.0
    %2415 = vadd.xlane.f32.xlu0 %v2414
    %v2416 = vpop.xlane.xlu0 %2415
    %v2417 = vsel %vm850, %v2339, 0.0
    %2418 = vadd.xlane.f32.xlu0 %v2417
    %v2419 = vpop.xlane.xlu0 %2418
    %v2420 = vsel %vm850, %v2341, 0.0
    %2421 = vadd.xlane.f32.xlu0 %v2420
    %v2422 = vpop.xlane.xlu0 %2421
    %v2423 = vsel %vm850, %v2343, 0.0
    %2424 = vadd.xlane.f32.xlu0 %v2423
    %v2425 = vpop.xlane.xlu0 %2424
    %v2426 = vsel %vm850, %v2345, 0.0
    %2427 = vadd.xlane.f32.xlu0 %v2426
    %v2428 = vpop.xlane.xlu0 %2427
    %v2429 = vsel %vm850, %v2347, 0.0
    %2430 = vadd.xlane.f32.xlu0 %v2429
    %v2431 = vpop.xlane.xlu0 %2430
    %v2432 = vsel %vm850, %v2349, 0.0
    %2433 = vadd.xlane.f32.xlu0 %v2432
    %v2434 = vpop.xlane.xlu0 %2433
    %v2435 = vsel %vm850, %v2351, 0.0
    %2436 = vadd.xlane.f32.xlu0 %v2435
    %v2437 = vpop.xlane.xlu0 %2436
    %v2438 = vsel %vm850, %v2353, 0.0
    %2439 = vadd.xlane.f32.xlu0 %v2438
    %v2440 = vpop.xlane.xlu0 %2439
    %v2441 = vsel %vm850, %v2355, 0.0
    %2442 = vadd.xlane.f32.xlu0 %v2441
    %v2443 = vpop.xlane.xlu0 %2442
    %v2444 = vsel %vm850, %v2357, 0.0
    %2445 = vadd.xlane.f32.xlu0 %v2444
    %v2446 = vpop.xlane.xlu0 %2445
    %v2447 = vsel %vm850, %v2359, 0.0
    %2448 = vadd.xlane.f32.xlu0 %v2447
    %v2449 = vpop.xlane.xlu0 %2448
    %v2450 = vsel %vm850, %v2361, 0.0
    %2451 = vadd.xlane.f32.xlu0 %v2450
    %v2452 = vpop.xlane.xlu0 %2451
    %v2453 = vsel %vm850, %v2363, 0.0
    %2454 = vadd.xlane.f32.xlu0 %v2453
    %v2455 = vpop.xlane.xlu0 %2454
    %v2456 = vsel %vm850, %v2365, 0.0
    %2457 = vadd.xlane.f32.xlu0 %v2456
    %v2458 = vpop.xlane.xlu0 %2457
    %v2459 = vsel %vm850, %v2367, 0.0
    %2460 = vadd.xlane.f32.xlu0 %v2459
    %v2461 = vpop.xlane.xlu0 %2460
    %v2462 = vsel %vm850, %v2369, 0.0
    %2463 = vadd.xlane.f32.xlu0 %v2462
    %v2464 = vpop.xlane.xlu0 %2463
    %v2465 = vsel %vm850, %v2371, 0.0
    %2466 = vadd.xlane.f32.xlu0 %v2465
    %v2467 = vpop.xlane.xlu0 %2466
    %v2468 = vrcp.pop %v2374
    %v2469 = vrcp.pop %v2377
    %v2470 = vrcp.pop %v2380
    %v2471 = vrcp.pop %v2383
    %v2472 = vrcp.pop %v2386
    %v2473 = vrcp.pop %v2389
    %v2474 = vrcp.pop %v2392
    %v2475 = vrcp.pop %v2395
    %v2476 = vrcp.pop %v2398
    %v2477 = vrcp.pop %v2401
    %v2478 = vrcp.pop %v2404
    %v2479 = vrcp.pop %v2407
    %v2480 = vrcp.pop %v2410
    %v2481 = vrcp.pop %v2413
    %v2482 = vrcp.pop %v2416
    %v2483 = vrcp.pop %v2419
    %v2484 = vrcp.pop %v2422
    %v2485 = vrcp.pop %v2425
    %v2486 = vrcp.pop %v2428
    %v2487 = vrcp.pop %v2431
    %v2488 = vrcp.pop %v2434
    %v2489 = vrcp.pop %v2437
    %v2490 = vrcp.pop %v2440
    %v2491 = vrcp.pop %v2443
    %v2492 = vrcp.pop %v2446
    %v2493 = vrcp.pop %v2449
    %v2494 = vrcp.pop %v2452
    %v2495 = vrcp.pop %v2455
    %v2496 = vrcp.pop %v2458
    %v2497 = vrcp.pop %v2461
    %v2498 = vrcp.pop %v2464
    %v2499 = vrcp.pop %v2467
    %v2500 = vmul.f32 %v2309, %v2468
    %v2501 = vmul.f32 %v2311, %v2469
    %v2502 = vmul.f32 %v2313, %v2470
    %v2503 = vmul.f32 %v2315, %v2471
    %v2504 = vmul.f32 %v2317, %v2472
    %v2505 = vmul.f32 %v2319, %v2473
    %v2506 = vmul.f32 %v2321, %v2474
    %v2507 = vmul.f32 %v2323, %v2475
    %v2508 = vmul.f32 %v2325, %v2476
    %v2509 = vmul.f32 %v2327, %v2477
    %v2510 = vmul.f32 %v2329, %v2478
    %v2511 = vmul.f32 %v2331, %v2479
    %v2512 = vmul.f32 %v2333, %v2480
    %v2513 = vmul.f32 %v2335, %v2481
    %v2514 = vmul.f32 %v2337, %v2482
    %v2515 = vmul.f32 %v2339, %v2483
    %v2516 = vmul.f32 %v2341, %v2484
    %v2517 = vmul.f32 %v2343, %v2485
    %v2518 = vmul.f32 %v2345, %v2486
    %v2519 = vmul.f32 %v2347, %v2487
    %v2520 = vmul.f32 %v2349, %v2488
    %v2521 = vmul.f32 %v2351, %v2489
    %v2522 = vmul.f32 %v2353, %v2490
    %v2523 = vmul.f32 %v2355, %v2491
    %v2524 = vmul.f32 %v2357, %v2492
    %v2525 = vmul.f32 %v2359, %v2493
    %v2526 = vmul.f32 %v2361, %v2494
    %v2527 = vmul.f32 %v2363, %v2495
    %v2528 = vmul.f32 %v2365, %v2496
    %v2529 = vmul.f32 %v2367, %v2497
    %v2530 = vmul.f32 %v2369, %v2498
    %v2531 = vmul.f32 %v2371, %v2499
    %v2532 = vpack.c.bf16 %v2500, %v2500
    %v2533 = vpack.c.bf16 %v2501, %v2501
    %v2534 = vpack.c.bf16 %v2502, %v2502
    %v2535 = vpack.c.bf16 %v2503, %v2503
    %v2536 = vpack.c.bf16 %v2504, %v2504
    %v2537 = vpack.c.bf16 %v2505, %v2505
    %v2538 = vpack.c.bf16 %v2506, %v2506
    %v2539 = vpack.c.bf16 %v2507, %v2507
    %v2540 = vpack.c.bf16 %v2508, %v2508
    %v2541 = vpack.c.bf16 %v2509, %v2509
    %v2542 = vpack.c.bf16 %v2510, %v2510
    %v2543 = vpack.c.bf16 %v2511, %v2511
    %v2544 = vpack.c.bf16 %v2512, %v2512
    %v2545 = vpack.c.bf16 %v2513, %v2513
    %v2546 = vpack.c.bf16 %v2514, %v2514
    %v2547 = vpack.c.bf16 %v2515, %v2515
    %v2548 = vpack.c.bf16 %v2516, %v2516
    %v2549 = vpack.c.bf16 %v2517, %v2517
    %v2550 = vpack.c.bf16 %v2518, %v2518
    %v2551 = vpack.c.bf16 %v2519, %v2519
    %v2552 = vpack.c.bf16 %v2520, %v2520
    %v2553 = vpack.c.bf16 %v2521, %v2521
    %v2554 = vpack.c.bf16 %v2522, %v2522
    %v2555 = vpack.c.bf16 %v2523, %v2523
    %v2556 = vpack.c.bf16 %v2524, %v2524
    %v2557 = vpack.c.bf16 %v2525, %v2525
    %v2558 = vpack.c.bf16 %v2526, %v2526
    %v2559 = vpack.c.bf16 %v2527, %v2527
    %v2560 = vpack.c.bf16 %v2528, %v2528
    %v2561 = vpack.c.bf16 %v2529, %v2529
    %v2562 = vpack.c.bf16 %v2530, %v2530
    %v2563 = vpack.c.bf16 %v2531, %v2531
    %v2568 = vunpack.c.l.b16 %v2532
    %v2569 = vunpack.c.l.b16 %v2533
    %v2570 = vunpack.c.l.b16 %v2534
    %v2571 = vunpack.c.l.b16 %v2535
    %v2572 = vpack.c.b16 %v2569, %v2568
    %v2573 = vpack.c.b16 %v2571, %v2570
    %v2574 = vunpack.c.l.b16 %v1836
    %v2575 = vunpack.c.l.b16 %v1837
    %v2576 = vunpack.c.l.b16 %v1838
    %v2577 = vunpack.c.l.b16 %v1839
    %v2578 = vpack.c.b16 %v2575, %v2574
    %v2579 = vpack.c.b16 %v2577, %v2576
    %v2583 = vsel %vm850, %v2572, 0
    %v2586 = vsel %vm850, %v2573, 0
    %2588 = vmatpush.bf16.msra.mxu0 0
    %2589 = vmatpush.bf16.msra.mxu0 0
    %2590 = vmatpush.bf16.msra.mxu0 0
    %2591 = vmatpush.bf16.msra.mxu0 0
    %2592 = vmatpush.bf16.msra.mxu0 0
    %2593 = vmatpush.bf16.msra.mxu0 0
    %2594 = vmatpush.bf16.msra.mxu0 %v2579
    %2595 = vmatpush.bf16.msra.mxu0 %v2578
    %2596 = vmatmul.bf16.gmra.mxu0 %v2583
    %v2597 = vpop.f32.mrf.mxu0
    %v2598 = vadd.f32 0.0, %v2597
    %v2599 = vpop.f32.mrf.mxu0
    %v2600 = vadd.f32 0.0, %v2599
    %2601 = vmatmul.bf16.gmra.mxu0 %v2586
    %v2602 = vpop.f32.mrf.mxu0
    %v2603 = vadd.f32 0.0, %v2602
    %v2604 = vpop.f32.mrf.mxu0
    %v2605 = vadd.f32 0.0, %v2604
    %2606 = vdwg.mxu0
    %v2611 = vunpack.c.l.b16 %v2536
    %v2612 = vunpack.c.l.b16 %v2537
    %v2613 = vunpack.c.l.b16 %v2538
    %v2614 = vunpack.c.l.b16 %v2539
    %v2615 = vpack.c.b16 %v2612, %v2611
    %v2616 = vpack.c.b16 %v2614, %v2613
    %v2617 = vunpack.c.l.b16 %v1840
    %v2618 = vunpack.c.l.b16 %v1841
    %v2619 = vunpack.c.l.b16 %v1842
    %v2620 = vunpack.c.l.b16 %v1843
    %v2621 = vpack.c.b16 %v2618, %v2617
    %v2622 = vpack.c.b16 %v2620, %v2619
    %v2626 = vsel %vm850, %v2615, 0
    %v2629 = vsel %vm850, %v2616, 0
    %2631 = vmatpush.bf16.msra.mxu0 0
    %2632 = vmatpush.bf16.msra.mxu0 0
    %2633 = vmatpush.bf16.msra.mxu0 0
    %2634 = vmatpush.bf16.msra.mxu0 0
    %2635 = vmatpush.bf16.msra.mxu0 0
    %2636 = vmatpush.bf16.msra.mxu0 0
    %2637 = vmatpush.bf16.msra.mxu0 %v2622
    %2638 = vmatpush.bf16.msra.mxu0 %v2621
    %2639 = vmatmul.bf16.gmra.mxu0 %v2626
    %v2640 = vpop.f32.mrf.mxu0
    %v2641 = vadd.f32 0.0, %v2640
    %v2642 = vpop.f32.mrf.mxu0
    %v2643 = vadd.f32 0.0, %v2642
    %2644 = vmatmul.bf16.gmra.mxu0 %v2629
    %v2645 = vpop.f32.mrf.mxu0
    %v2646 = vadd.f32 0.0, %v2645
    %v2647 = vpop.f32.mrf.mxu0
    %v2648 = vadd.f32 0.0, %v2647
    %2649 = vdwg.mxu0
    %v2654 = vunpack.c.l.b16 %v2540
    %v2655 = vunpack.c.l.b16 %v2541
    %v2656 = vunpack.c.l.b16 %v2542
    %v2657 = vunpack.c.l.b16 %v2543
    %v2658 = vpack.c.b16 %v2655, %v2654
    %v2659 = vpack.c.b16 %v2657, %v2656
    %v2660 = vunpack.c.l.b16 %v1844
    %v2661 = vunpack.c.l.b16 %v1845
    %v2662 = vunpack.c.l.b16 %v1846
    %v2663 = vunpack.c.l.b16 %v1847
    %v2664 = vpack.c.b16 %v2661, %v2660
    %v2665 = vpack.c.b16 %v2663, %v2662
    %v2669 = vsel %vm850, %v2658, 0
    %v2672 = vsel %vm850, %v2659, 0
    %2674 = vmatpush.bf16.msra.mxu0 0
    %2675 = vmatpush.bf16.msra.mxu0 0
    %2676 = vmatpush.bf16.msra.mxu0 0
    %2677 = vmatpush.bf16.msra.mxu0 0
    %2678 = vmatpush.bf16.msra.mxu0 0
    %2679 = vmatpush.bf16.msra.mxu0 0
    %2680 = vmatpush.bf16.msra.mxu0 %v2665
    %2681 = vmatpush.bf16.msra.mxu0 %v2664
    %2682 = vmatmul.bf16.gmra.mxu0 %v2669
    %v2683 = vpop.f32.mrf.mxu0
    %v2684 = vadd.f32 0.0, %v2683
    %v2685 = vpop.f32.mrf.mxu0
    %v2686 = vadd.f32 0.0, %v2685
    %2687 = vmatmul.bf16.gmra.mxu0 %v2672
    %v2688 = vpop.f32.mrf.mxu0
    %v2689 = vadd.f32 0.0, %v2688
    %v2690 = vpop.f32.mrf.mxu0
    %v2691 = vadd.f32 0.0, %v2690
    %2692 = vdwg.mxu0
    %v2697 = vunpack.c.l.b16 %v2544
    %v2698 = vunpack.c.l.b16 %v2545
    %v2699 = vunpack.c.l.b16 %v2546
    %v2700 = vunpack.c.l.b16 %v2547
    %v2701 = vpack.c.b16 %v2698, %v2697
    %v2702 = vpack.c.b16 %v2700, %v2699
    %v2703 = vunpack.c.l.b16 %v1848
    %v2704 = vunpack.c.l.b16 %v1849
    %v2705 = vunpack.c.l.b16 %v1850
    %v2706 = vunpack.c.l.b16 %v1851
    %v2707 = vpack.c.b16 %v2704, %v2703
    %v2708 = vpack.c.b16 %v2706, %v2705
    %v2712 = vsel %vm850, %v2701, 0
    %v2715 = vsel %vm850, %v2702, 0
    %2717 = vmatpush.bf16.msra.mxu0 0
    %2718 = vmatpush.bf16.msra.mxu0 0
    %2719 = vmatpush.bf16.msra.mxu0 0
    %2720 = vmatpush.bf16.msra.mxu0 0
    %2721 = vmatpush.bf16.msra.mxu0 0
    %2722 = vmatpush.bf16.msra.mxu0 0
    %2723 = vmatpush.bf16.msra.mxu0 %v2708
    %2724 = vmatpush.bf16.msra.mxu0 %v2707
    %2725 = vmatmul.bf16.gmra.mxu0 %v2712
    %v2726 = vpop.f32.mrf.mxu0
    %v2727 = vadd.f32 0.0, %v2726
    %v2728 = vpop.f32.mrf.mxu0
    %v2729 = vadd.f32 0.0, %v2728
    %2730 = vmatmul.bf16.gmra.mxu0 %v2715
    %v2731 = vpop.f32.mrf.mxu0
    %v2732 = vadd.f32 0.0, %v2731
    %v2733 = vpop.f32.mrf.mxu0
    %v2734 = vadd.f32 0.0, %v2733
    %2735 = vdwg.mxu0
    %v2740 = vunpack.c.l.b16 %v2548
    %v2741 = vunpack.c.l.b16 %v2549
    %v2742 = vunpack.c.l.b16 %v2550
    %v2743 = vunpack.c.l.b16 %v2551
    %v2744 = vpack.c.b16 %v2741, %v2740
    %v2745 = vpack.c.b16 %v2743, %v2742
    %v2746 = vunpack.c.l.b16 %v1852
    %v2747 = vunpack.c.l.b16 %v1853
    %v2748 = vunpack.c.l.b16 %v1854
    %v2749 = vunpack.c.l.b16 %v1855
    %v2750 = vpack.c.b16 %v2747, %v2746
    %v2751 = vpack.c.b16 %v2749, %v2748
    %v2755 = vsel %vm850, %v2744, 0
    %v2758 = vsel %vm850, %v2745, 0
    %2760 = vmatpush.bf16.msra.mxu0 0
    %2761 = vmatpush.bf16.msra.mxu0 0
    %2762 = vmatpush.bf16.msra.mxu0 0
    %2763 = vmatpush.bf16.msra.mxu0 0
    %2764 = vmatpush.bf16.msra.mxu0 0
    %2765 = vmatpush.bf16.msra.mxu0 0
    %2766 = vmatpush.bf16.msra.mxu0 %v2751
    %2767 = vmatpush.bf16.msra.mxu0 %v2750
    %2768 = vmatmul.bf16.gmra.mxu0 %v2755
    %v2769 = vpop.f32.mrf.mxu0
    %v2770 = vadd.f32 0.0, %v2769
    %v2771 = vpop.f32.mrf.mxu0
    %v2772 = vadd.f32 0.0, %v2771
    %2773 = vmatmul.bf16.gmra.mxu0 %v2758
    %v2774 = vpop.f32.mrf.mxu0
    %v2775 = vadd.f32 0.0, %v2774
    %v2776 = vpop.f32.mrf.mxu0
    %v2777 = vadd.f32 0.0, %v2776
    %2778 = vdwg.mxu0
    %v2783 = vunpack.c.l.b16 %v2552
    %v2784 = vunpack.c.l.b16 %v2553
    %v2785 = vunpack.c.l.b16 %v2554
    %v2786 = vunpack.c.l.b16 %v2555
    %v2787 = vpack.c.b16 %v2784, %v2783
    %v2788 = vpack.c.b16 %v2786, %v2785
    %v2789 = vunpack.c.l.b16 %v1856
    %v2790 = vunpack.c.l.b16 %v1857
    %v2791 = vunpack.c.l.b16 %v1858
    %v2792 = vunpack.c.l.b16 %v1859
    %v2793 = vpack.c.b16 %v2790, %v2789
    %v2794 = vpack.c.b16 %v2792, %v2791
    %v2798 = vsel %vm850, %v2787, 0
    %v2801 = vsel %vm850, %v2788, 0
    %2803 = vmatpush.bf16.msra.mxu0 0
    %2804 = vmatpush.bf16.msra.mxu0 0
    %2805 = vmatpush.bf16.msra.mxu0 0
    %2806 = vmatpush.bf16.msra.mxu0 0
    %2807 = vmatpush.bf16.msra.mxu0 0
    %2808 = vmatpush.bf16.msra.mxu0 0
    %2809 = vmatpush.bf16.msra.mxu0 %v2794
    %2810 = vmatpush.bf16.msra.mxu0 %v2793
    %2811 = vmatmul.bf16.gmra.mxu0 %v2798
    %v2812 = vpop.f32.mrf.mxu0
    %v2813 = vadd.f32 0.0, %v2812
    %v2814 = vpop.f32.mrf.mxu0
    %v2815 = vadd.f32 0.0, %v2814
    %2816 = vmatmul.bf16.gmra.mxu0 %v2801
    %v2817 = vpop.f32.mrf.mxu0
    %v2818 = vadd.f32 0.0, %v2817
    %v2819 = vpop.f32.mrf.mxu0
    %v2820 = vadd.f32 0.0, %v2819
    %2821 = vdwg.mxu0
    %v2826 = vunpack.c.l.b16 %v2556
    %v2827 = vunpack.c.l.b16 %v2557
    %v2828 = vunpack.c.l.b16 %v2558
    %v2829 = vunpack.c.l.b16 %v2559
    %v2830 = vpack.c.b16 %v2827, %v2826
    %v2831 = vpack.c.b16 %v2829, %v2828
    %v2832 = vunpack.c.l.b16 %v1860
    %v2833 = vunpack.c.l.b16 %v1861
    %v2834 = vunpack.c.l.b16 %v1862
    %v2835 = vunpack.c.l.b16 %v1863
    %v2836 = vpack.c.b16 %v2833, %v2832
    %v2837 = vpack.c.b16 %v2835, %v2834
    %v2841 = vsel %vm850, %v2830, 0
    %v2844 = vsel %vm850, %v2831, 0
    %2846 = vmatpush.bf16.msra.mxu0 0
    %2847 = vmatpush.bf16.msra.mxu0 0
    %2848 = vmatpush.bf16.msra.mxu0 0
    %2849 = vmatpush.bf16.msra.mxu0 0
    %2850 = vmatpush.bf16.msra.mxu0 0
    %2851 = vmatpush.bf16.msra.mxu0 0
    %2852 = vmatpush.bf16.msra.mxu0 %v2837
    %2853 = vmatpush.bf16.msra.mxu0 %v2836
    %2854 = vmatmul.bf16.gmra.mxu0 %v2841
    %v2855 = vpop.f32.mrf.mxu0
    %v2856 = vadd.f32 0.0, %v2855
    %v2857 = vpop.f32.mrf.mxu0
    %v2858 = vadd.f32 0.0, %v2857
    %2859 = vmatmul.bf16.gmra.mxu0 %v2844
    %v2860 = vpop.f32.mrf.mxu0
    %v2861 = vadd.f32 0.0, %v2860
    %v2862 = vpop.f32.mrf.mxu0
    %v2863 = vadd.f32 0.0, %v2862
    %2864 = vdwg.mxu0
    %v2869 = vunpack.c.l.b16 %v2560
    %v2870 = vunpack.c.l.b16 %v2561
    %v2871 = vunpack.c.l.b16 %v2562
    %v2872 = vunpack.c.l.b16 %v2563
    %v2873 = vpack.c.b16 %v2870, %v2869
    %v2874 = vpack.c.b16 %v2872, %v2871
    %v2875 = vunpack.c.l.b16 %v1864
    %v2876 = vunpack.c.l.b16 %v1865
    %v2877 = vunpack.c.l.b16 %v1866
    %v2878 = vunpack.c.l.b16 %v1867
    %v2879 = vpack.c.b16 %v2876, %v2875
    %v2880 = vpack.c.b16 %v2878, %v2877
    %v2884 = vsel %vm850, %v2873, 0
    %v2887 = vsel %vm850, %v2874, 0
    %2889 = vmatpush.bf16.msra.mxu0 0
    %2890 = vmatpush.bf16.msra.mxu0 0
    %2891 = vmatpush.bf16.msra.mxu0 0
    %2892 = vmatpush.bf16.msra.mxu0 0
    %2893 = vmatpush.bf16.msra.mxu0 0
    %2894 = vmatpush.bf16.msra.mxu0 0
    %2895 = vmatpush.bf16.msra.mxu0 %v2880
    %2896 = vmatpush.bf16.msra.mxu0 %v2879
    %2897 = vmatmul.bf16.gmra.mxu0 %v2884
    %v2898 = vpop.f32.mrf.mxu0
    %v2899 = vadd.f32 0.0, %v2898
    %v2900 = vpop.f32.mrf.mxu0
    %v2901 = vadd.f32 0.0, %v2900
    %2902 = vmatmul.bf16.gmra.mxu0 %v2887
    %v2903 = vpop.f32.mrf.mxu0
    %v2904 = vadd.f32 0.0, %v2903
    %v2905 = vpop.f32.mrf.mxu0
    %v2906 = vadd.f32 0.0, %v2905
    %2907 = vdwg.mxu0
    %v2908 = vpack.c.bf16 %v2600, %v2598
    %v2909 = vpack.c.bf16 %v2605, %v2603
    %v2910 = vpack.c.bf16 %v2643, %v2641
    %v2911 = vpack.c.bf16 %v2648, %v2646
    %v2912 = vpack.c.bf16 %v2686, %v2684
    %v2913 = vpack.c.bf16 %v2691, %v2689
    %v2914 = vpack.c.bf16 %v2729, %v2727
    %v2915 = vpack.c.bf16 %v2734, %v2732
    %v2916 = vpack.c.bf16 %v2772, %v2770
    %v2917 = vpack.c.bf16 %v2777, %v2775
    %v2918 = vpack.c.bf16 %v2815, %v2813
    %v2919 = vpack.c.bf16 %v2820, %v2818
    %v2920 = vpack.c.bf16 %v2858, %v2856
    %v2921 = vpack.c.bf16 %v2863, %v2861
    %v2922 = vpack.c.bf16 %v2901, %v2899
    %v2923 = vpack.c.bf16 %v2906, %v2904
    %v2924 = vld [vmem:[%s2 + $0x8] sm:$0xf]
    %v2925 = vld [vmem:[%s2 + $0xc] sm:$0xf]
    %v2928 = vunpack.c.l.b16 %v2924
    %v2929 = vunpack.c.l.b16 %v2925
    %v2930 = vpack.c.b16 %v2929, %v2928
    %v2933 = vsel %vm531, %v2908, 0
    %v2936 = vsel %vm531, %v2909, 0
    %v2939 = vsel %vm531, %v2910, 0
    %v2942 = vsel %vm531, %v2911, 0
    %v2945 = vsel %vm531, %v2912, 0
    %v2948 = vsel %vm531, %v2913, 0
    %v2951 = vsel %vm531, %v2914, 0
    %v2954 = vsel %vm531, %v2915, 0
    %v2957 = vsel %vm531, %v2916, 0
    %v2960 = vsel %vm531, %v2917, 0
    %v2963 = vsel %vm531, %v2918, 0
    %v2966 = vsel %vm531, %v2919, 0
    %v2969 = vsel %vm531, %v2920, 0
    %v2972 = vsel %vm531, %v2921, 0
    %v2975 = vsel %vm531, %v2922, 0
    %v2978 = vsel %vm531, %v2923, 0
    %2980 = vmatpush.bf16.msra.mxu0 0
    %2981 = vmatpush.bf16.msra.mxu0 0
    %2982 = vmatpush.bf16.msra.mxu0 0
    %2983 = vmatpush.bf16.msra.mxu0 0
    %2984 = vmatpush.bf16.msra.mxu0 0
    %2985 = vmatpush.bf16.msra.mxu0 0
    %2986 = vmatpush.bf16.msra.mxu0 0
    %2987 = vmatpush.bf16.msra.mxu0 %v2930
    %2988 = vmatmul.bf16.gmra.mxu0 %v2933
    %v2989 = vpop.f32.mrf.mxu0
    %v2990 = vadd.f32 0.0, %v2989
    %v2991 = vpop.f32.mrf.mxu0
    %v2992 = vadd.f32 0.0, %v2991
    %2993 = vmatmul.bf16.gmra.mxu0 %v2936
    %v2994 = vpop.f32.mrf.mxu0
    %v2995 = vadd.f32 0.0, %v2994
    %v2996 = vpop.f32.mrf.mxu0
    %v2997 = vadd.f32 0.0, %v2996
    %2998 = vmatmul.bf16.gmra.mxu0 %v2939
    %v2999 = vpop.f32.mrf.mxu0
    %v3000 = vadd.f32 0.0, %v2999
    %v3001 = vpop.f32.mrf.mxu0
    %v3002 = vadd.f32 0.0, %v3001
    %3003 = vmatmul.bf16.gmra.mxu0 %v2942
    %v3004 = vpop.f32.mrf.mxu0
    %v3005 = vadd.f32 0.0, %v3004
    %v3006 = vpop.f32.mrf.mxu0
    %v3007 = vadd.f32 0.0, %v3006
    %3008 = vmatmul.bf16.gmra.mxu0 %v2945
    %v3009 = vpop.f32.mrf.mxu0
    %v3010 = vadd.f32 0.0, %v3009
    %v3011 = vpop.f32.mrf.mxu0
    %v3012 = vadd.f32 0.0, %v3011
    %3013 = vmatmul.bf16.gmra.mxu0 %v2948
    %v3014 = vpop.f32.mrf.mxu0
    %v3015 = vadd.f32 0.0, %v3014
    %v3016 = vpop.f32.mrf.mxu0
    %v3017 = vadd.f32 0.0, %v3016
    %3018 = vmatmul.bf16.gmra.mxu0 %v2951
    %v3019 = vpop.f32.mrf.mxu0
    %v3020 = vadd.f32 0.0, %v3019
    %v3021 = vpop.f32.mrf.mxu0
    %v3022 = vadd.f32 0.0, %v3021
    %3023 = vmatmul.bf16.gmra.mxu0 %v2954
    %v3024 = vpop.f32.mrf.mxu0
    %v3025 = vadd.f32 0.0, %v3024
    %v3026 = vpop.f32.mrf.mxu0
    %v3027 = vadd.f32 0.0, %v3026
    %3028 = vmatmul.bf16.gmra.mxu0 %v2957
    %v3029 = vpop.f32.mrf.mxu0
    %v3030 = vadd.f32 0.0, %v3029
    %v3031 = vpop.f32.mrf.mxu0
    %v3032 = vadd.f32 0.0, %v3031
    %3033 = vmatmul.bf16.gmra.mxu0 %v2960
    %v3034 = vpop.f32.mrf.mxu0
    %v3035 = vadd.f32 0.0, %v3034
    %v3036 = vpop.f32.mrf.mxu0
    %v3037 = vadd.f32 0.0, %v3036
    %3038 = vmatmul.bf16.gmra.mxu0 %v2963
    %v3039 = vpop.f32.mrf.mxu0
    %v3040 = vadd.f32 0.0, %v3039
    %v3041 = vpop.f32.mrf.mxu0
    %v3042 = vadd.f32 0.0, %v3041
    %3043 = vmatmul.bf16.gmra.mxu0 %v2966
    %v3044 = vpop.f32.mrf.mxu0
    %v3045 = vadd.f32 0.0, %v3044
    %v3046 = vpop.f32.mrf.mxu0
    %v3047 = vadd.f32 0.0, %v3046
    %3048 = vmatmul.bf16.gmra.mxu0 %v2969
    %v3049 = vpop.f32.mrf.mxu0
    %v3050 = vadd.f32 0.0, %v3049
    %v3051 = vpop.f32.mrf.mxu0
    %v3052 = vadd.f32 0.0, %v3051
    %3053 = vmatmul.bf16.gmra.mxu0 %v2972
    %v3054 = vpop.f32.mrf.mxu0
    %v3055 = vadd.f32 0.0, %v3054
    %v3056 = vpop.f32.mrf.mxu0
    %v3057 = vadd.f32 0.0, %v3056
    %3058 = vmatmul.bf16.gmra.mxu0 %v2975
    %v3059 = vpop.f32.mrf.mxu0
    %v3060 = vadd.f32 0.0, %v3059
    %v3061 = vpop.f32.mrf.mxu0
    %v3062 = vadd.f32 0.0, %v3061
    %3063 = vmatmul.bf16.gmra.mxu0 %v2978
    %v3064 = vpop.f32.mrf.mxu0
    %v3065 = vadd.f32 0.0, %v3064
    %v3066 = vpop.f32.mrf.mxu0
    %v3067 = vadd.f32 0.0, %v3066
    %3068 = vdwg.mxu0
    %v3069 = vadd.f32 %v1740, %v2990
    %v3070 = vadd.f32 %v1741, %v2992
    %v3071 = vadd.f32 %v1742, %v2995
    %v3072 = vadd.f32 %v1743, %v2997
    %v3073 = vadd.f32 %v1744, %v3000
    %v3074 = vadd.f32 %v1745, %v3002
    %v3075 = vadd.f32 %v1746, %v3005
    %v3076 = vadd.f32 %v1747, %v3007
    %v3077 = vadd.f32 %v1748, %v3010
    %v3078 = vadd.f32 %v1749, %v3012
    %v3079 = vadd.f32 %v1750, %v3015
    %v3080 = vadd.f32 %v1751, %v3017
    %v3081 = vadd.f32 %v1752, %v3020
    %v3082 = vadd.f32 %v1753, %v3022
    %v3083 = vadd.f32 %v1754, %v3025
    %v3084 = vadd.f32 %v1755, %v3027
    %v3085 = vadd.f32 %v1756, %v3030
    %v3086 = vadd.f32 %v1757, %v3032
    %v3087 = vadd.f32 %v1758, %v3035
    %v3088 = vadd.f32 %v1759, %v3037
    %v3089 = vadd.f32 %v1760, %v3040
    %v3090 = vadd.f32 %v1761, %v3042
    %v3091 = vadd.f32 %v1762, %v3045
    %v3092 = vadd.f32 %v1763, %v3047
    %v3093 = vadd.f32 %v1764, %v3050
    %v3094 = vadd.f32 %v1765, %v3052
    %v3095 = vadd.f32 %v1766, %v3055
    %v3096 = vadd.f32 %v1767, %v3057
    %v3097 = vadd.f32 %v1768, %v3060
    %v3098 = vadd.f32 %v1769, %v3062
    %v3099 = vadd.f32 %v1770, %v3065
    %v3100 = vadd.f32 %v1771, %v3067
    %3101 = vrot.lane.b32.xlu0 %v406, 96
    %v3102 = vpop.permute.xlu0 %3101
    %3103 = vrot.lane.b32.xlu0 %v407, 96
    %v3104 = vpop.permute.xlu0 %3103
    %3105 = vrot.lane.b32.xlu0 %v408, 96
    %v3106 = vpop.permute.xlu0 %3105
    %3107 = vrot.lane.b32.xlu0 %v409, 96
    %v3108 = vpop.permute.xlu0 %3107
    %3109 = vrot.lane.b32.xlu0 %v410, 96
    %v3110 = vpop.permute.xlu0 %3109
    %3111 = vrot.lane.b32.xlu0 %v411, 96
    %v3112 = vpop.permute.xlu0 %3111
    %3113 = vrot.lane.b32.xlu0 %v412, 96
    %v3114 = vpop.permute.xlu0 %3113
    %3115 = vrot.lane.b32.xlu0 %v413, 96
    %v3116 = vpop.permute.xlu0 %3115
    %3117 = vrot.lane.b32.xlu0 %v414, 96
    %v3118 = vpop.permute.xlu0 %3117
    %3119 = vrot.lane.b32.xlu0 %v415, 96
    %v3120 = vpop.permute.xlu0 %3119
    %3121 = vrot.lane.b32.xlu0 %v416, 96
    %v3122 = vpop.permute.xlu0 %3121
    %3123 = vrot.lane.b32.xlu0 %v417, 96
    %v3124 = vpop.permute.xlu0 %3123
    %3125 = vrot.lane.b32.xlu0 %v418, 96
    %v3126 = vpop.permute.xlu0 %3125
    %3127 = vrot.lane.b32.xlu0 %v419, 96
    %v3128 = vpop.permute.xlu0 %3127
    %3129 = vrot.lane.b32.xlu0 %v420, 96
    %v3130 = vpop.permute.xlu0 %3129
    %3131 = vrot.lane.b32.xlu0 %v421, 96
    %v3132 = vpop.permute.xlu0 %3131
    %3133 = vrot.lane.b32.xlu0 %v422, 96
    %v3134 = vpop.permute.xlu0 %3133
    %3135 = vrot.lane.b32.xlu0 %v423, 96
    %v3136 = vpop.permute.xlu0 %3135
    %3137 = vrot.lane.b32.xlu0 %v424, 96
    %v3138 = vpop.permute.xlu0 %3137
    %3139 = vrot.lane.b32.xlu0 %v425, 96
    %v3140 = vpop.permute.xlu0 %3139
    %3141 = vrot.lane.b32.xlu0 %v426, 96
    %v3142 = vpop.permute.xlu0 %3141
    %3143 = vrot.lane.b32.xlu0 %v427, 96
    %v3144 = vpop.permute.xlu0 %3143
    %3145 = vrot.lane.b32.xlu0 %v428, 96
    %v3146 = vpop.permute.xlu0 %3145
    %3147 = vrot.lane.b32.xlu0 %v429, 96
    %v3148 = vpop.permute.xlu0 %3147
    %3149 = vrot.lane.b32.xlu0 %v430, 96
    %v3150 = vpop.permute.xlu0 %3149
    %3151 = vrot.lane.b32.xlu0 %v431, 96
    %v3152 = vpop.permute.xlu0 %3151
    %3153 = vrot.lane.b32.xlu0 %v432, 96
    %v3154 = vpop.permute.xlu0 %3153
    %3155 = vrot.lane.b32.xlu0 %v433, 96
    %v3156 = vpop.permute.xlu0 %3155
    %3157 = vrot.lane.b32.xlu0 %v434, 96
    %v3158 = vpop.permute.xlu0 %3157
    %3159 = vrot.lane.b32.xlu0 %v435, 96
    %v3160 = vpop.permute.xlu0 %3159
    %3161 = vrot.lane.b32.xlu0 %v436, 96
    %v3162 = vpop.permute.xlu0 %3161
    %3163 = vrot.lane.b32.xlu0 %v437, 96
    %v3164 = vpop.permute.xlu0 %3163
    %v3165 = vrot.slane %v3102, 4
    %v3166 = vrot.slane %v3104, 4
    %v3167 = vrot.slane %v3106, 4
    %v3168 = vrot.slane %v3108, 4
    %v3169 = vrot.slane %v3110, 4
    %v3170 = vrot.slane %v3112, 4
    %v3171 = vrot.slane %v3114, 4
    %v3172 = vrot.slane %v3116, 4
    %v3173 = vrot.slane %v3118, 4
    %v3174 = vrot.slane %v3120, 4
    %v3175 = vrot.slane %v3122, 4
    %v3176 = vrot.slane %v3124, 4
    %v3177 = vrot.slane %v3126, 4
    %v3178 = vrot.slane %v3128, 4
    %v3179 = vrot.slane %v3130, 4
    %v3180 = vrot.slane %v3132, 4
    %v3181 = vrot.slane %v3134, 4
    %v3182 = vrot.slane %v3136, 4
    %v3183 = vrot.slane %v3138, 4
    %v3184 = vrot.slane %v3140, 4
    %v3185 = vrot.slane %v3142, 4
    %v3186 = vrot.slane %v3144, 4
    %v3187 = vrot.slane %v3146, 4
    %v3188 = vrot.slane %v3148, 4
    %v3189 = vrot.slane %v3150, 4
    %v3190 = vrot.slane %v3152, 4
    %v3191 = vrot.slane %v3154, 4
    %v3192 = vrot.slane %v3156, 4
    %v3193 = vrot.slane %v3158, 4
    %v3194 = vrot.slane %v3160, 4
    %v3195 = vrot.slane %v3162, 4
    %v3196 = vrot.slane %v3164, 4
    %3197 = vrot.lane.b32.xlu0 %v525, 96
    %v3198 = vpop.permute.xlu0 %3197
    %3199 = vrot.lane.b32.xlu0 %v526, 96
    %v3200 = vpop.permute.xlu0 %3199
    %3201 = vrot.lane.b32.xlu0 %v525, 32
    %v3202 = vpop.permute.xlu0 %3201
    %3203 = vrot.lane.b32.xlu0 %v526, 32
    %v3204 = vpop.permute.xlu0 %3203
    %v3206 = vsel %vm531, %v3198, 0
    %v3209 = vsel %vm531, %v3200, 0
    %v3212 = vsel %vm531, %v3202, 0
    %v3215 = vsel %vm531, %v3204, 0
    %3217 = vmatpush.bf16.xpose.msra.mxu0 0
    %3218 = vmatpush.bf16.xpose.msra.mxu0 0
    %3219 = vmatpush.bf16.xpose.msra.mxu0 0
    %3220 = vmatpush.bf16.xpose.msra.mxu0 0
    %3221 = vmatpush.bf16.xpose.msra.mxu0 0
    %3222 = vmatpush.bf16.xpose.msra.mxu0 0
    %3223 = vmatpush.bf16.xpose.msra.mxu0 %v3215
    %3224 = vmatpush.bf16.xpose.msra.mxu0 %v3212
    %3225 = vmatmul.bf16.gmra.mxu0 %v3206
    %v3226 = vpop.f32.mrf.mxu0
    %v3227 = vadd.f32 %v449, %v3226
    %v3228 = vpop.f32.mrf.mxu0
    %v3229 = vadd.f32 %v450, %v3228
    %3230 = vmatmul.bf16.gmra.mxu0 %v3209
    %v3231 = vpop.f32.mrf.mxu0
    %v3232 = vadd.f32 %v451, %v3231
    %v3233 = vpop.f32.mrf.mxu0
    %v3234 = vadd.f32 %v452, %v3233
    %3235 = vdwg.mxu0
    %3236 = vrot.lane.b32.xlu0 %v567, 96
    %v3237 = vpop.permute.xlu0 %3236
    %3238 = vrot.lane.b32.xlu0 %v568, 96
    %v3239 = vpop.permute.xlu0 %3238
    %3240 = vrot.lane.b32.xlu0 %v567, 32
    %v3241 = vpop.permute.xlu0 %3240
    %3242 = vrot.lane.b32.xlu0 %v568, 32
    %v3243 = vpop.permute.xlu0 %3242
    %v3245 = vsel %vm531, %v3237, 0
    %v3248 = vsel %vm531, %v3239, 0
    %v3251 = vsel %vm531, %v3241, 0
    %v3254 = vsel %vm531, %v3243, 0
    %3256 = vmatpush.bf16.xpose.msra.mxu0 0
    %3257 = vmatpush.bf16.xpose.msra.mxu0 0
    %3258 = vmatpush.bf16.xpose.msra.mxu0 0
    %3259 = vmatpush.bf16.xpose.msra.mxu0 0
    %3260 = vmatpush.bf16.xpose.msra.mxu0 0
    %3261 = vmatpush.bf16.xpose.msra.mxu0 0
    %3262 = vmatpush.bf16.xpose.msra.mxu0 %v3254
    %3263 = vmatpush.bf16.xpose.msra.mxu0 %v3251
    %3264 = vmatmul.bf16.gmra.mxu0 %v3245
    %v3265 = vpop.f32.mrf.mxu0
    %v3266 = vadd.f32 %v449, %v3265
    %v3267 = vpop.f32.mrf.mxu0
    %v3268 = vadd.f32 %v450, %v3267
    %3269 = vmatmul.bf16.gmra.mxu0 %v3248
    %v3270 = vpop.f32.mrf.mxu0
    %v3271 = vadd.f32 %v451, %v3270
    %v3272 = vpop.f32.mrf.mxu0
    %v3273 = vadd.f32 %v452, %v3272
    %3274 = vdwg.mxu0
    %3275 = vrot.lane.b32.xlu0 %v608, 96
    %v3276 = vpop.permute.xlu0 %3275
    %3277 = vrot.lane.b32.xlu0 %v609, 96
    %v3278 = vpop.permute.xlu0 %3277
    %3279 = vrot.lane.b32.xlu0 %v608, 32
    %v3280 = vpop.permute.xlu0 %3279
    %3281 = vrot.lane.b32.xlu0 %v609, 32
    %v3282 = vpop.permute.xlu0 %3281
    %v3284 = vsel %vm531, %v3276, 0
    %v3287 = vsel %vm531, %v3278, 0
    %v3290 = vsel %vm531, %v3280, 0
    %v3293 = vsel %vm531, %v3282, 0
    %3295 = vmatpush.bf16.xpose.msra.mxu0 0
    %3296 = vmatpush.bf16.xpose.msra.mxu0 0
    %3297 = vmatpush.bf16.xpose.msra.mxu0 0
    %3298 = vmatpush.bf16.xpose.msra.mxu0 0
    %3299 = vmatpush.bf16.xpose.msra.mxu0 0
    %3300 = vmatpush.bf16.xpose.msra.mxu0 0
    %3301 = vmatpush.bf16.xpose.msra.mxu0 %v3293
    %3302 = vmatpush.bf16.xpose.msra.mxu0 %v3290
    %3303 = vmatmul.bf16.gmra.mxu0 %v3284
    %v3304 = vpop.f32.mrf.mxu0
    %v3305 = vadd.f32 %v449, %v3304
    %v3306 = vpop.f32.mrf.mxu0
    %v3307 = vadd.f32 %v450, %v3306
    %3308 = vmatmul.bf16.gmra.mxu0 %v3287
    %v3309 = vpop.f32.mrf.mxu0
    %v3310 = vadd.f32 %v451, %v3309
    %v3311 = vpop.f32.mrf.mxu0
    %v3312 = vadd.f32 %v452, %v3311
    %3313 = vdwg.mxu0
    %3314 = vrot.lane.b32.xlu0 %v649, 96
    %v3315 = vpop.permute.xlu0 %3314
    %3316 = vrot.lane.b32.xlu0 %v650, 96
    %v3317 = vpop.permute.xlu0 %3316
    %3318 = vrot.lane.b32.xlu0 %v649, 32
    %v3319 = vpop.permute.xlu0 %3318
    %3320 = vrot.lane.b32.xlu0 %v650, 32
    %v3321 = vpop.permute.xlu0 %3320
    %v3323 = vsel %vm531, %v3315, 0
    %v3326 = vsel %vm531, %v3317, 0
    %v3329 = vsel %vm531, %v3319, 0
    %v3332 = vsel %vm531, %v3321, 0
    %3334 = vmatpush.bf16.xpose.msra.mxu0 0
    %3335 = vmatpush.bf16.xpose.msra.mxu0 0
    %3336 = vmatpush.bf16.xpose.msra.mxu0 0
    %3337 = vmatpush.bf16.xpose.msra.mxu0 0
    %3338 = vmatpush.bf16.xpose.msra.mxu0 0
    %3339 = vmatpush.bf16.xpose.msra.mxu0 0
    %3340 = vmatpush.bf16.xpose.msra.mxu0 %v3332
    %3341 = vmatpush.bf16.xpose.msra.mxu0 %v3329
    %3342 = vmatmul.bf16.gmra.mxu0 %v3323
    %v3343 = vpop.f32.mrf.mxu0
    %v3344 = vadd.f32 %v449, %v3343
    %v3345 = vpop.f32.mrf.mxu0
    %v3346 = vadd.f32 %v450, %v3345
    %3347 = vmatmul.bf16.gmra.mxu0 %v3326
    %v3348 = vpop.f32.mrf.mxu0
    %v3349 = vadd.f32 %v451, %v3348
    %v3350 = vpop.f32.mrf.mxu0
    %v3351 = vadd.f32 %v452, %v3350
    %3352 = vdwg.mxu0
    %3353 = vrot.lane.b32.xlu0 %v690, 96
    %v3354 = vpop.permute.xlu0 %3353
    %3355 = vrot.lane.b32.xlu0 %v691, 96
    %v3356 = vpop.permute.xlu0 %3355
    %3357 = vrot.lane.b32.xlu0 %v690, 32
    %v3358 = vpop.permute.xlu0 %3357
    %3359 = vrot.lane.b32.xlu0 %v691, 32
    %v3360 = vpop.permute.xlu0 %3359
    %v3362 = vsel %vm531, %v3354, 0
    %v3365 = vsel %vm531, %v3356, 0
    %v3368 = vsel %vm531, %v3358, 0
    %v3371 = vsel %vm531, %v3360, 0
    %3373 = vmatpush.bf16.xpose.msra.mxu0 0
    %3374 = vmatpush.bf16.xpose.msra.mxu0 0
    %3375 = vmatpush.bf16.xpose.msra.mxu0 0
    %3376 = vmatpush.bf16.xpose.msra.mxu0 0
    %3377 = vmatpush.bf16.xpose.msra.mxu0 0
    %3378 = vmatpush.bf16.xpose.msra.mxu0 0
    %3379 = vmatpush.bf16.xpose.msra.mxu0 %v3371
    %3380 = vmatpush.bf16.xpose.msra.mxu0 %v3368
    %3381 = vmatmul.bf16.gmra.mxu0 %v3362
    %v3382 = vpop.f32.mrf.mxu0
    %v3383 = vadd.f32 %v449, %v3382
    %v3384 = vpop.f32.mrf.mxu0
    %v3385 = vadd.f32 %v450, %v3384
    %3386 = vmatmul.bf16.gmra.mxu0 %v3365
    %v3387 = vpop.f32.mrf.mxu0
    %v3388 = vadd.f32 %v451, %v3387
    %v3389 = vpop.f32.mrf.mxu0
    %v3390 = vadd.f32 %v452, %v3389
    %3391 = vdwg.mxu0
    %3392 = vrot.lane.b32.xlu0 %v731, 96
    %v3393 = vpop.permute.xlu0 %3392
    %3394 = vrot.lane.b32.xlu0 %v732, 96
    %v3395 = vpop.permute.xlu0 %3394
    %3396 = vrot.lane.b32.xlu0 %v731, 32
    %v3397 = vpop.permute.xlu0 %3396
    %3398 = vrot.lane.b32.xlu0 %v732, 32
    %v3399 = vpop.permute.xlu0 %3398
    %v3401 = vsel %vm531, %v3393, 0
    %v3404 = vsel %vm531, %v3395, 0
    %v3407 = vsel %vm531, %v3397, 0
    %v3410 = vsel %vm531, %v3399, 0
    %3412 = vmatpush.bf16.xpose.msra.mxu0 0
    %3413 = vmatpush.bf16.xpose.msra.mxu0 0
    %3414 = vmatpush.bf16.xpose.msra.mxu0 0
    %3415 = vmatpush.bf16.xpose.msra.mxu0 0
    %3416 = vmatpush.bf16.xpose.msra.mxu0 0
    %3417 = vmatpush.bf16.xpose.msra.mxu0 0
    %3418 = vmatpush.bf16.xpose.msra.mxu0 %v3410
    %3419 = vmatpush.bf16.xpose.msra.mxu0 %v3407
    %3420 = vmatmul.bf16.gmra.mxu0 %v3401
    %v3421 = vpop.f32.mrf.mxu0
    %v3422 = vadd.f32 %v449, %v3421
    %v3423 = vpop.f32.mrf.mxu0
    %v3424 = vadd.f32 %v450, %v3423
    %3425 = vmatmul.bf16.gmra.mxu0 %v3404
    %v3426 = vpop.f32.mrf.mxu0
    %v3427 = vadd.f32 %v451, %v3426
    %v3428 = vpop.f32.mrf.mxu0
    %v3429 = vadd.f32 %v452, %v3428
    %3430 = vdwg.mxu0
    %3431 = vrot.lane.b32.xlu0 %v772, 96
    %v3432 = vpop.permute.xlu0 %3431
    %3433 = vrot.lane.b32.xlu0 %v773, 96
    %v3434 = vpop.permute.xlu0 %3433
    %3435 = vrot.lane.b32.xlu0 %v772, 32
    %v3436 = vpop.permute.xlu0 %3435
    %3437 = vrot.lane.b32.xlu0 %v773, 32
    %v3438 = vpop.permute.xlu0 %3437
    %v3440 = vsel %vm531, %v3432, 0
    %v3443 = vsel %vm531, %v3434, 0
    %v3446 = vsel %vm531, %v3436, 0
    %v3449 = vsel %vm531, %v3438, 0
    %3451 = vmatpush.bf16.xpose.msra.mxu0 0
    %3452 = vmatpush.bf16.xpose.msra.mxu0 0
    %3453 = vmatpush.bf16.xpose.msra.mxu0 0
    %3454 = vmatpush.bf16.xpose.msra.mxu0 0
    %3455 = vmatpush.bf16.xpose.msra.mxu0 0
    %3456 = vmatpush.bf16.xpose.msra.mxu0 0
    %3457 = vmatpush.bf16.xpose.msra.mxu0 %v3449
    %3458 = vmatpush.bf16.xpose.msra.mxu0 %v3446
    %3459 = vmatmul.bf16.gmra.mxu0 %v3440
    %v3460 = vpop.f32.mrf.mxu0
    %v3461 = vadd.f32 %v449, %v3460
    %v3462 = vpop.f32.mrf.mxu0
    %v3463 = vadd.f32 %v450, %v3462
    %3464 = vmatmul.bf16.gmra.mxu0 %v3443
    %v3465 = vpop.f32.mrf.mxu0
    %v3466 = vadd.f32 %v451, %v3465
    %v3467 = vpop.f32.mrf.mxu0
    %v3468 = vadd.f32 %v452, %v3467
    %3469 = vdwg.mxu0
    %3470 = vrot.lane.b32.xlu0 %v813, 96
    %v3471 = vpop.permute.xlu0 %3470
    %3472 = vrot.lane.b32.xlu0 %v814, 96
    %v3473 = vpop.permute.xlu0 %3472
    %3474 = vrot.lane.b32.xlu0 %v813, 32
    %v3475 = vpop.permute.xlu0 %3474
    %3476 = vrot.lane.b32.xlu0 %v814, 32
    %v3477 = vpop.permute.xlu0 %3476
    %v3479 = vsel %vm531, %v3471, 0
    %v3482 = vsel %vm531, %v3473, 0
    %v3485 = vsel %vm531, %v3475, 0
    %v3488 = vsel %vm531, %v3477, 0
    %3490 = vmatpush.bf16.xpose.msra.mxu0 0
    %3491 = vmatpush.bf16.xpose.msra.mxu0 0
    %3492 = vmatpush.bf16.xpose.msra.mxu0 0
    %3493 = vmatpush.bf16.xpose.msra.mxu0 0
    %3494 = vmatpush.bf16.xpose.msra.mxu0 0
    %3495 = vmatpush.bf16.xpose.msra.mxu0 0
    %3496 = vmatpush.bf16.xpose.msra.mxu0 %v3488
    %3497 = vmatpush.bf16.xpose.msra.mxu0 %v3485
    %3498 = vmatmul.bf16.gmra.mxu0 %v3479
    %v3499 = vpop.f32.mrf.mxu0
    %v3500 = vadd.f32 %v449, %v3499
    %v3501 = vpop.f32.mrf.mxu0
    %v3502 = vadd.f32 %v450, %v3501
    %3503 = vmatmul.bf16.gmra.mxu0 %v3482
    %v3504 = vpop.f32.mrf.mxu0
    %v3505 = vadd.f32 %v451, %v3504
    %v3506 = vpop.f32.mrf.mxu0
    %v3507 = vadd.f32 %v452, %v3506
    %3508 = vdwg.mxu0
    %v3509 = vsel %vm850, %v3227, -inf
    %3510 = vmax.xlane.f32.xlu0 %v3509
    %v3511 = vpop.xlane.xlu0 %3510
    %v3512 = vsel %vm850, %v3229, -inf
    %3513 = vmax.xlane.f32.xlu0 %v3512
    %v3514 = vpop.xlane.xlu0 %3513
    %v3515 = vsel %vm850, %v3232, -inf
    %3516 = vmax.xlane.f32.xlu0 %v3515
    %v3517 = vpop.xlane.xlu0 %3516
    %v3518 = vsel %vm850, %v3234, -inf
    %3519 = vmax.xlane.f32.xlu0 %v3518
    %v3520 = vpop.xlane.xlu0 %3519
    %v3521 = vsel %vm850, %v3266, -inf
    %3522 = vmax.xlane.f32.xlu0 %v3521
    %v3523 = vpop.xlane.xlu0 %3522
    %v3524 = vsel %vm850, %v3268, -inf
    %3525 = vmax.xlane.f32.xlu0 %v3524
    %v3526 = vpop.xlane.xlu0 %3525
    %v3527 = vsel %vm850, %v3271, -inf
    %3528 = vmax.xlane.f32.xlu0 %v3527
    %v3529 = vpop.xlane.xlu0 %3528
    %v3530 = vsel %vm850, %v3273, -inf
    %3531 = vmax.xlane.f32.xlu0 %v3530
    %v3532 = vpop.xlane.xlu0 %3531
    %v3533 = vsel %vm850, %v3305, -inf
    %3534 = vmax.xlane.f32.xlu0 %v3533
    %v3535 = vpop.xlane.xlu0 %3534
    %v3536 = vsel %vm850, %v3307, -inf
    %3537 = vmax.xlane.f32.xlu0 %v3536
    %v3538 = vpop.xlane.xlu0 %3537
    %v3539 = vsel %vm850, %v3310, -inf
    %3540 = vmax.xlane.f32.xlu0 %v3539
    %v3541 = vpop.xlane.xlu0 %3540
    %v3542 = vsel %vm850, %v3312, -inf
    %3543 = vmax.xlane.f32.xlu0 %v3542
    %v3544 = vpop.xlane.xlu0 %3543
    %v3545 = vsel %vm850, %v3344, -inf
    %3546 = vmax.xlane.f32.xlu0 %v3545
    %v3547 = vpop.xlane.xlu0 %3546
    %v3548 = vsel %vm850, %v3346, -inf
    %3549 = vmax.xlane.f32.xlu0 %v3548
    %v3550 = vpop.xlane.xlu0 %3549
    %v3551 = vsel %vm850, %v3349, -inf
    %3552 = vmax.xlane.f32.xlu0 %v3551
    %v3553 = vpop.xlane.xlu0 %3552
    %v3554 = vsel %vm850, %v3351, -inf
    %3555 = vmax.xlane.f32.xlu0 %v3554
    %v3556 = vpop.xlane.xlu0 %3555
    %v3557 = vsel %vm850, %v3383, -inf
    %3558 = vmax.xlane.f32.xlu0 %v3557
    %v3559 = vpop.xlane.xlu0 %3558
    %v3560 = vsel %vm850, %v3385, -inf
    %3561 = vmax.xlane.f32.xlu0 %v3560
    %v3562 = vpop.xlane.xlu0 %3561
    %v3563 = vsel %vm850, %v3388, -inf
    %3564 = vmax.xlane.f32.xlu0 %v3563
    %v3565 = vpop.xlane.xlu0 %3564
    %v3566 = vsel %vm850, %v3390, -inf
    %3567 = vmax.xlane.f32.xlu0 %v3566
    %v3568 = vpop.xlane.xlu0 %3567
    %v3569 = vsel %vm850, %v3422, -inf
    %3570 = vmax.xlane.f32.xlu0 %v3569
    %v3571 = vpop.xlane.xlu0 %3570
    %v3572 = vsel %vm850, %v3424, -inf
    %3573 = vmax.xlane.f32.xlu0 %v3572
    %v3574 = vpop.xlane.xlu0 %3573
    %v3575 = vsel %vm850, %v3427, -inf
    %3576 = vmax.xlane.f32.xlu0 %v3575
    %v3577 = vpop.xlane.xlu0 %3576
    %v3578 = vsel %vm850, %v3429, -inf
    %3579 = vmax.xlane.f32.xlu0 %v3578
    %v3580 = vpop.xlane.xlu0 %3579
    %v3581 = vsel %vm850, %v3461, -inf
    %3582 = vmax.xlane.f32.xlu0 %v3581
    %v3583 = vpop.xlane.xlu0 %3582
    %v3584 = vsel %vm850, %v3463, -inf
    %3585 = vmax.xlane.f32.xlu0 %v3584
    %v3586 = vpop.xlane.xlu0 %3585
    %v3587 = vsel %vm850, %v3466, -inf
    %3588 = vmax.xlane.f32.xlu0 %v3587
    %v3589 = vpop.xlane.xlu0 %3588
    %v3590 = vsel %vm850, %v3468, -inf
    %3591 = vmax.xlane.f32.xlu0 %v3590
    %v3592 = vpop.xlane.xlu0 %3591
    %v3593 = vsel %vm850, %v3500, -inf
    %3594 = vmax.xlane.f32.xlu0 %v3593
    %v3595 = vpop.xlane.xlu0 %3594
    %v3596 = vsel %vm850, %v3502, -inf
    %3597 = vmax.xlane.f32.xlu0 %v3596
    %v3598 = vpop.xlane.xlu0 %3597
    %v3599 = vsel %vm850, %v3505, -inf
    %3600 = vmax.xlane.f32.xlu0 %v3599
    %v3601 = vpop.xlane.xlu0 %3600
    %v3602 = vsel %vm850, %v3507, -inf
    %3603 = vmax.xlane.f32.xlu0 %v3602
    %v3604 = vpop.xlane.xlu0 %3603
    %v3605 = vsub.f32 %v3227, %v3511
    %v3606 = vsub.f32 %v3229, %v3514
    %v3607 = vsub.f32 %v3232, %v3517
    %v3608 = vsub.f32 %v3234, %v3520
    %v3609 = vsub.f32 %v3266, %v3523
    %v3610 = vsub.f32 %v3268, %v3526
    %v3611 = vsub.f32 %v3271, %v3529
    %v3612 = vsub.f32 %v3273, %v3532
    %v3613 = vsub.f32 %v3305, %v3535
    %v3614 = vsub.f32 %v3307, %v3538
    %v3615 = vsub.f32 %v3310, %v3541
    %v3616 = vsub.f32 %v3312, %v3544
    %v3617 = vsub.f32 %v3344, %v3547
    %v3618 = vsub.f32 %v3346, %v3550
    %v3619 = vsub.f32 %v3349, %v3553
    %v3620 = vsub.f32 %v3351, %v3556
    %v3621 = vsub.f32 %v3383, %v3559
    %v3622 = vsub.f32 %v3385, %v3562
    %v3623 = vsub.f32 %v3388, %v3565
    %v3624 = vsub.f32 %v3390, %v3568
    %v3625 = vsub.f32 %v3422, %v3571
    %v3626 = vsub.f32 %v3424, %v3574
    %v3627 = vsub.f32 %v3427, %v3577
    %v3628 = vsub.f32 %v3429, %v3580
    %v3629 = vsub.f32 %v3461, %v3583
    %v3630 = vsub.f32 %v3463, %v3586
    %v3631 = vsub.f32 %v3466, %v3589
    %v3632 = vsub.f32 %v3468, %v3592
    %v3633 = vsub.f32 %v3500, %v3595
    %v3634 = vsub.f32 %v3502, %v3598
    %v3635 = vsub.f32 %v3505, %v3601
    %v3636 = vsub.f32 %v3507, %v3604
    %v3637 = vmul.f32 %v3605, 1.442695
    %v3638 = vpow.pop %v3637
    %v3639 = vmul.f32 %v3606, 1.442695
    %v3640 = vpow.pop %v3639
    %v3641 = vmul.f32 %v3607, 1.442695
    %v3642 = vpow.pop %v3641
    %v3643 = vmul.f32 %v3608, 1.442695
    %v3644 = vpow.pop %v3643
    %v3645 = vmul.f32 %v3609, 1.442695
    %v3646 = vpow.pop %v3645
    %v3647 = vmul.f32 %v3610, 1.442695
    %v3648 = vpow.pop %v3647
    %v3649 = vmul.f32 %v3611, 1.442695
    %v3650 = vpow.pop %v3649
    %v3651 = vmul.f32 %v3612, 1.442695
    %v3652 = vpow.pop %v3651
    %v3653 = vmul.f32 %v3613, 1.442695
    %v3654 = vpow.pop %v3653
    %v3655 = vmul.f32 %v3614, 1.442695
    %v3656 = vpow.pop %v3655
    %v3657 = vmul.f32 %v3615, 1.442695
    %v3658 = vpow.pop %v3657
    %v3659 = vmul.f32 %v3616, 1.442695
    %v3660 = vpow.pop %v3659
    %v3661 = vmul.f32 %v3617, 1.442695
    %v3662 = vpow.pop %v3661
    %v3663 = vmul.f32 %v3618, 1.442695
    %v3664 = vpow.pop %v3663
    %v3665 = vmul.f32 %v3619, 1.442695
    %v3666 = vpow.pop %v3665
    %v3667 = vmul.f32 %v3620, 1.442695
    %v3668 = vpow.pop %v3667
    %v3669 = vmul.f32 %v3621, 1.442695
    %v3670 = vpow.pop %v3669
    %v3671 = vmul.f32 %v3622, 1.442695
    %v3672 = vpow.pop %v3671
    %v3673 = vmul.f32 %v3623, 1.442695
    %v3674 = vpow.pop %v3673
    %v3675 = vmul.f32 %v3624, 1.442695
    %v3676 = vpow.pop %v3675
    %v3677 = vmul.f32 %v3625, 1.442695
    %v3678 = vpow.pop %v3677
    %v3679 = vmul.f32 %v3626, 1.442695
    %v3680 = vpow.pop %v3679
    %v3681 = vmul.f32 %v3627, 1.442695
    %v3682 = vpow.pop %v3681
    %v3683 = vmul.f32 %v3628, 1.442695
    %v3684 = vpow.pop %v3683
    %v3685 = vmul.f32 %v3629, 1.442695
    %v3686 = vpow.pop %v3685
    %v3687 = vmul.f32 %v3630, 1.442695
    %v3688 = vpow.pop %v3687
    %v3689 = vmul.f32 %v3631, 1.442695
    %v3690 = vpow.pop %v3689
    %v3691 = vmul.f32 %v3632, 1.442695
    %v3692 = vpow.pop %v3691
    %v3693 = vmul.f32 %v3633, 1.442695
    %v3694 = vpow.pop %v3693
    %v3695 = vmul.f32 %v3634, 1.442695
    %v3696 = vpow.pop %v3695
    %v3697 = vmul.f32 %v3635, 1.442695
    %v3698 = vpow.pop %v3697
    %v3699 = vmul.f32 %v3636, 1.442695
    %v3700 = vpow.pop %v3699
    %v3701 = vsel %vm850, %v3638, 0.0
    %3702 = vadd.xlane.f32.xlu0 %v3701
    %v3703 = vpop.xlane.xlu0 %3702
    %v3704 = vsel %vm850, %v3640, 0.0
    %3705 = vadd.xlane.f32.xlu0 %v3704
    %v3706 = vpop.xlane.xlu0 %3705
    %v3707 = vsel %vm850, %v3642, 0.0
    %3708 = vadd.xlane.f32.xlu0 %v3707
    %v3709 = vpop.xlane.xlu0 %3708
    %v3710 = vsel %vm850, %v3644, 0.0
    %3711 = vadd.xlane.f32.xlu0 %v3710
    %v3712 = vpop.xlane.xlu0 %3711
    %v3713 = vsel %vm850, %v3646, 0.0
    %3714 = vadd.xlane.f32.xlu0 %v3713
    %v3715 = vpop.xlane.xlu0 %3714
    %v3716 = vsel %vm850, %v3648, 0.0
    %3717 = vadd.xlane.f32.xlu0 %v3716
    %v3718 = vpop.xlane.xlu0 %3717
    %v3719 = vsel %vm850, %v3650, 0.0
    %3720 = vadd.xlane.f32.xlu0 %v3719
    %v3721 = vpop.xlane.xlu0 %3720
    %v3722 = vsel %vm850, %v3652, 0.0
    %3723 = vadd.xlane.f32.xlu0 %v3722
    %v3724 = vpop.xlane.xlu0 %3723
    %v3725 = vsel %vm850, %v3654, 0.0
    %3726 = vadd.xlane.f32.xlu0 %v3725
    %v3727 = vpop.xlane.xlu0 %3726
    %v3728 = vsel %vm850, %v3656, 0.0
    %3729 = vadd.xlane.f32.xlu0 %v3728
    %v3730 = vpop.xlane.xlu0 %3729
    %v3731 = vsel %vm850, %v3658, 0.0
    %3732 = vadd.xlane.f32.xlu0 %v3731
    %v3733 = vpop.xlane.xlu0 %3732
    %v3734 = vsel %vm850, %v3660, 0.0
    %3735 = vadd.xlane.f32.xlu0 %v3734
    %v3736 = vpop.xlane.xlu0 %3735
    %v3737 = vsel %vm850, %v3662, 0.0
    %3738 = vadd.xlane.f32.xlu0 %v3737
    %v3739 = vpop.xlane.xlu0 %3738
    %v3740 = vsel %vm850, %v3664, 0.0
    %3741 = vadd.xlane.f32.xlu0 %v3740
    %v3742 = vpop.xlane.xlu0 %3741
    %v3743 = vsel %vm850, %v3666, 0.0
    %3744 = vadd.xlane.f32.xlu0 %v3743
    %v3745 = vpop.xlane.xlu0 %3744
    %v3746 = vsel %vm850, %v3668, 0.0
    %3747 = vadd.xlane.f32.xlu0 %v3746
    %v3748 = vpop.xlane.xlu0 %3747
    %v3749 = vsel %vm850, %v3670, 0.0
    %3750 = vadd.xlane.f32.xlu0 %v3749
    %v3751 = vpop.xlane.xlu0 %3750
    %v3752 = vsel %vm850, %v3672, 0.0
    %3753 = vadd.xlane.f32.xlu0 %v3752
    %v3754 = vpop.xlane.xlu0 %3753
    %v3755 = vsel %vm850, %v3674, 0.0
    %3756 = vadd.xlane.f32.xlu0 %v3755
    %v3757 = vpop.xlane.xlu0 %3756
    %v3758 = vsel %vm850, %v3676, 0.0
    %3759 = vadd.xlane.f32.xlu0 %v3758
    %v3760 = vpop.xlane.xlu0 %3759
    %v3761 = vsel %vm850, %v3678, 0.0
    %3762 = vadd.xlane.f32.xlu0 %v3761
    %v3763 = vpop.xlane.xlu0 %3762
    %v3764 = vsel %vm850, %v3680, 0.0
    %3765 = vadd.xlane.f32.xlu0 %v3764
    %v3766 = vpop.xlane.xlu0 %3765
    %v3767 = vsel %vm850, %v3682, 0.0
    %3768 = vadd.xlane.f32.xlu0 %v3767
    %v3769 = vpop.xlane.xlu0 %3768
    %v3770 = vsel %vm850, %v3684, 0.0
    %3771 = vadd.xlane.f32.xlu0 %v3770
    %v3772 = vpop.xlane.xlu0 %3771
    %v3773 = vsel %vm850, %v3686, 0.0
    %3774 = vadd.xlane.f32.xlu0 %v3773
    %v3775 = vpop.xlane.xlu0 %3774
    %v3776 = vsel %vm850, %v3688, 0.0
    %3777 = vadd.xlane.f32.xlu0 %v3776
    %v3778 = vpop.xlane.xlu0 %3777
    %v3779 = vsel %vm850, %v3690, 0.0
    %3780 = vadd.xlane.f32.xlu0 %v3779
    %v3781 = vpop.xlane.xlu0 %3780
    %v3782 = vsel %vm850, %v3692, 0.0
    %3783 = vadd.xlane.f32.xlu0 %v3782
    %v3784 = vpop.xlane.xlu0 %3783
    %v3785 = vsel %vm850, %v3694, 0.0
    %3786 = vadd.xlane.f32.xlu0 %v3785
    %v3787 = vpop.xlane.xlu0 %3786
    %v3788 = vsel %vm850, %v3696, 0.0
    %3789 = vadd.xlane.f32.xlu0 %v3788
    %v3790 = vpop.xlane.xlu0 %3789
    %v3791 = vsel %vm850, %v3698, 0.0
    %3792 = vadd.xlane.f32.xlu0 %v3791
    %v3793 = vpop.xlane.xlu0 %3792
    %v3794 = vsel %vm850, %v3700, 0.0
    %3795 = vadd.xlane.f32.xlu0 %v3794
    %v3796 = vpop.xlane.xlu0 %3795
    %v3797 = vrcp.pop %v3703
    %v3798 = vrcp.pop %v3706
    %v3799 = vrcp.pop %v3709
    %v3800 = vrcp.pop %v3712
    %v3801 = vrcp.pop %v3715
    %v3802 = vrcp.pop %v3718
    %v3803 = vrcp.pop %v3721
    %v3804 = vrcp.pop %v3724
    %v3805 = vrcp.pop %v3727
    %v3806 = vrcp.pop %v3730
    %v3807 = vrcp.pop %v3733
    %v3808 = vrcp.pop %v3736
    %v3809 = vrcp.pop %v3739
    %v3810 = vrcp.pop %v3742
    %v3811 = vrcp.pop %v3745
    %v3812 = vrcp.pop %v3748
    %v3813 = vrcp.pop %v3751
    %v3814 = vrcp.pop %v3754
    %v3815 = vrcp.pop %v3757
    %v3816 = vrcp.pop %v3760
    %v3817 = vrcp.pop %v3763
    %v3818 = vrcp.pop %v3766
    %v3819 = vrcp.pop %v3769
    %v3820 = vrcp.pop %v3772
    %v3821 = vrcp.pop %v3775
    %v3822 = vrcp.pop %v3778
    %v3823 = vrcp.pop %v3781
    %v3824 = vrcp.pop %v3784
    %v3825 = vrcp.pop %v3787
    %v3826 = vrcp.pop %v3790
    %v3827 = vrcp.pop %v3793
    %v3828 = vrcp.pop %v3796
    %v3829 = vmul.f32 %v3638, %v3797
    %v3830 = vmul.f32 %v3640, %v3798
    %v3831 = vmul.f32 %v3642, %v3799
    %v3832 = vmul.f32 %v3644, %v3800
    %v3833 = vmul.f32 %v3646, %v3801
    %v3834 = vmul.f32 %v3648, %v3802
    %v3835 = vmul.f32 %v3650, %v3803
    %v3836 = vmul.f32 %v3652, %v3804
    %v3837 = vmul.f32 %v3654, %v3805
    %v3838 = vmul.f32 %v3656, %v3806
    %v3839 = vmul.f32 %v3658, %v3807
    %v3840 = vmul.f32 %v3660, %v3808
    %v3841 = vmul.f32 %v3662, %v3809
    %v3842 = vmul.f32 %v3664, %v3810
    %v3843 = vmul.f32 %v3666, %v3811
    %v3844 = vmul.f32 %v3668, %v3812
    %v3845 = vmul.f32 %v3670, %v3813
    %v3846 = vmul.f32 %v3672, %v3814
    %v3847 = vmul.f32 %v3674, %v3815
    %v3848 = vmul.f32 %v3676, %v3816
    %v3849 = vmul.f32 %v3678, %v3817
    %v3850 = vmul.f32 %v3680, %v3818
    %v3851 = vmul.f32 %v3682, %v3819
    %v3852 = vmul.f32 %v3684, %v3820
    %v3853 = vmul.f32 %v3686, %v3821
    %v3854 = vmul.f32 %v3688, %v3822
    %v3855 = vmul.f32 %v3690, %v3823
    %v3856 = vmul.f32 %v3692, %v3824
    %v3857 = vmul.f32 %v3694, %v3825
    %v3858 = vmul.f32 %v3696, %v3826
    %v3859 = vmul.f32 %v3698, %v3827
    %v3860 = vmul.f32 %v3700, %v3828
    %v3861 = vpack.c.bf16 %v3829, %v3829
    %v3862 = vpack.c.bf16 %v3830, %v3830
    %v3863 = vpack.c.bf16 %v3831, %v3831
    %v3864 = vpack.c.bf16 %v3832, %v3832
    %v3865 = vpack.c.bf16 %v3833, %v3833
    %v3866 = vpack.c.bf16 %v3834, %v3834
    %v3867 = vpack.c.bf16 %v3835, %v3835
    %v3868 = vpack.c.bf16 %v3836, %v3836
    %v3869 = vpack.c.bf16 %v3837, %v3837
    %v3870 = vpack.c.bf16 %v3838, %v3838
    %v3871 = vpack.c.bf16 %v3839, %v3839
    %v3872 = vpack.c.bf16 %v3840, %v3840
    %v3873 = vpack.c.bf16 %v3841, %v3841
    %v3874 = vpack.c.bf16 %v3842, %v3842
    %v3875 = vpack.c.bf16 %v3843, %v3843
    %v3876 = vpack.c.bf16 %v3844, %v3844
    %v3877 = vpack.c.bf16 %v3845, %v3845
    %v3878 = vpack.c.bf16 %v3846, %v3846
    %v3879 = vpack.c.bf16 %v3847, %v3847
    %v3880 = vpack.c.bf16 %v3848, %v3848
    %v3881 = vpack.c.bf16 %v3849, %v3849
    %v3882 = vpack.c.bf16 %v3850, %v3850
    %v3883 = vpack.c.bf16 %v3851, %v3851
    %v3884 = vpack.c.bf16 %v3852, %v3852
    %v3885 = vpack.c.bf16 %v3853, %v3853
    %v3886 = vpack.c.bf16 %v3854, %v3854
    %v3887 = vpack.c.bf16 %v3855, %v3855
    %v3888 = vpack.c.bf16 %v3856, %v3856
    %v3889 = vpack.c.bf16 %v3857, %v3857
    %v3890 = vpack.c.bf16 %v3858, %v3858
    %v3891 = vpack.c.bf16 %v3859, %v3859
    %v3892 = vpack.c.bf16 %v3860, %v3860
    %v3897 = vunpack.c.l.b16 %v3861
    %v3898 = vunpack.c.l.b16 %v3862
    %v3899 = vunpack.c.l.b16 %v3863
    %v3900 = vunpack.c.l.b16 %v3864
    %v3901 = vpack.c.b16 %v3898, %v3897
    %v3902 = vpack.c.b16 %v3900, %v3899
    %v3903 = vunpack.c.l.b16 %v3165
    %v3904 = vunpack.c.l.b16 %v3166
    %v3905 = vunpack.c.l.b16 %v3167
    %v3906 = vunpack.c.l.b16 %v3168
    %v3907 = vpack.c.b16 %v3904, %v3903
    %v3908 = vpack.c.b16 %v3906, %v3905
    %v3912 = vsel %vm850, %v3901, 0
    %v3915 = vsel %vm850, %v3902, 0
    %3917 = vmatpush.bf16.msra.mxu0 0
    %3918 = vmatpush.bf16.msra.mxu0 0
    %3919 = vmatpush.bf16.msra.mxu0 0
    %3920 = vmatpush.bf16.msra.mxu0 0
    %3921 = vmatpush.bf16.msra.mxu0 0
    %3922 = vmatpush.bf16.msra.mxu0 0
    %3923 = vmatpush.bf16.msra.mxu0 %v3908
    %3924 = vmatpush.bf16.msra.mxu0 %v3907
    %3925 = vmatmul.bf16.gmra.mxu0 %v3912
    %v3926 = vpop.f32.mrf.mxu0
    %v3927 = vadd.f32 0.0, %v3926
    %v3928 = vpop.f32.mrf.mxu0
    %v3929 = vadd.f32 0.0, %v3928
    %3930 = vmatmul.bf16.gmra.mxu0 %v3915
    %v3931 = vpop.f32.mrf.mxu0
    %v3932 = vadd.f32 0.0, %v3931
    %v3933 = vpop.f32.mrf.mxu0
    %v3934 = vadd.f32 0.0, %v3933
    %3935 = vdwg.mxu0
    %v3940 = vunpack.c.l.b16 %v3865
    %v3941 = vunpack.c.l.b16 %v3866
    %v3942 = vunpack.c.l.b16 %v3867
    %v3943 = vunpack.c.l.b16 %v3868
    %v3944 = vpack.c.b16 %v3941, %v3940
    %v3945 = vpack.c.b16 %v3943, %v3942
    %v3946 = vunpack.c.l.b16 %v3169
    %v3947 = vunpack.c.l.b16 %v3170
    %v3948 = vunpack.c.l.b16 %v3171
    %v3949 = vunpack.c.l.b16 %v3172
    %v3950 = vpack.c.b16 %v3947, %v3946
    %v3951 = vpack.c.b16 %v3949, %v3948
    %v3955 = vsel %vm850, %v3944, 0
    %v3958 = vsel %vm850, %v3945, 0
    %3960 = vmatpush.bf16.msra.mxu0 0
    %3961 = vmatpush.bf16.msra.mxu0 0
    %3962 = vmatpush.bf16.msra.mxu0 0
    %3963 = vmatpush.bf16.msra.mxu0 0
    %3964 = vmatpush.bf16.msra.mxu0 0
    %3965 = vmatpush.bf16.msra.mxu0 0
    %3966 = vmatpush.bf16.msra.mxu0 %v3951
    %3967 = vmatpush.bf16.msra.mxu0 %v3950
    %3968 = vmatmul.bf16.gmra.mxu0 %v3955
    %v3969 = vpop.f32.mrf.mxu0
    %v3970 = vadd.f32 0.0, %v3969
    %v3971 = vpop.f32.mrf.mxu0
    %v3972 = vadd.f32 0.0, %v3971
    %3973 = vmatmul.bf16.gmra.mxu0 %v3958
    %v3974 = vpop.f32.mrf.mxu0
    %v3975 = vadd.f32 0.0, %v3974
    %v3976 = vpop.f32.mrf.mxu0
    %v3977 = vadd.f32 0.0, %v3976
    %3978 = vdwg.mxu0
    %v3983 = vunpack.c.l.b16 %v3869
    %v3984 = vunpack.c.l.b16 %v3870
    %v3985 = vunpack.c.l.b16 %v3871
    %v3986 = vunpack.c.l.b16 %v3872
    %v3987 = vpack.c.b16 %v3984, %v3983
    %v3988 = vpack.c.b16 %v3986, %v3985
    %v3989 = vunpack.c.l.b16 %v3173
    %v3990 = vunpack.c.l.b16 %v3174
    %v3991 = vunpack.c.l.b16 %v3175
    %v3992 = vunpack.c.l.b16 %v3176
    %v3993 = vpack.c.b16 %v3990, %v3989
    %v3994 = vpack.c.b16 %v3992, %v3991
    %v3998 = vsel %vm850, %v3987, 0
    %v4001 = vsel %vm850, %v3988, 0
    %4003 = vmatpush.bf16.msra.mxu0 0
    %4004 = vmatpush.bf16.msra.mxu0 0
    %4005 = vmatpush.bf16.msra.mxu0 0
    %4006 = vmatpush.bf16.msra.mxu0 0
    %4007 = vmatpush.bf16.msra.mxu0 0
    %4008 = vmatpush.bf16.msra.mxu0 0
    %4009 = vmatpush.bf16.msra.mxu0 %v3994
    %4010 = vmatpush.bf16.msra.mxu0 %v3993
    %4011 = vmatmul.bf16.gmra.mxu0 %v3998
    %v4012 = vpop.f32.mrf.mxu0
    %v4013 = vadd.f32 0.0, %v4012
    %v4014 = vpop.f32.mrf.mxu0
    %v4015 = vadd.f32 0.0, %v4014
    %4016 = vmatmul.bf16.gmra.mxu0 %v4001
    %v4017 = vpop.f32.mrf.mxu0
    %v4018 = vadd.f32 0.0, %v4017
    %v4019 = vpop.f32.mrf.mxu0
    %v4020 = vadd.f32 0.0, %v4019
    %4021 = vdwg.mxu0
    %v4026 = vunpack.c.l.b16 %v3873
    %v4027 = vunpack.c.l.b16 %v3874
    %v4028 = vunpack.c.l.b16 %v3875
    %v4029 = vunpack.c.l.b16 %v3876
    %v4030 = vpack.c.b16 %v4027, %v4026
    %v4031 = vpack.c.b16 %v4029, %v4028
    %v4032 = vunpack.c.l.b16 %v3177
    %v4033 = vunpack.c.l.b16 %v3178
    %v4034 = vunpack.c.l.b16 %v3179
    %v4035 = vunpack.c.l.b16 %v3180
    %v4036 = vpack.c.b16 %v4033, %v4032
    %v4037 = vpack.c.b16 %v4035, %v4034
    %v4041 = vsel %vm850, %v4030, 0
    %v4044 = vsel %vm850, %v4031, 0
    %4046 = vmatpush.bf16.msra.mxu0 0
    %4047 = vmatpush.bf16.msra.mxu0 0
    %4048 = vmatpush.bf16.msra.mxu0 0
    %4049 = vmatpush.bf16.msra.mxu0 0
    %4050 = vmatpush.bf16.msra.mxu0 0
    %4051 = vmatpush.bf16.msra.mxu0 0
    %4052 = vmatpush.bf16.msra.mxu0 %v4037
    %4053 = vmatpush.bf16.msra.mxu0 %v4036
    %4054 = vmatmul.bf16.gmra.mxu0 %v4041
    %v4055 = vpop.f32.mrf.mxu0
    %v4056 = vadd.f32 0.0, %v4055
    %v4057 = vpop.f32.mrf.mxu0
    %v4058 = vadd.f32 0.0, %v4057
    %4059 = vmatmul.bf16.gmra.mxu0 %v4044
    %v4060 = vpop.f32.mrf.mxu0
    %v4061 = vadd.f32 0.0, %v4060
    %v4062 = vpop.f32.mrf.mxu0
    %v4063 = vadd.f32 0.0, %v4062
    %4064 = vdwg.mxu0
    %v4069 = vunpack.c.l.b16 %v3877
    %v4070 = vunpack.c.l.b16 %v3878
    %v4071 = vunpack.c.l.b16 %v3879
    %v4072 = vunpack.c.l.b16 %v3880
    %v4073 = vpack.c.b16 %v4070, %v4069
    %v4074 = vpack.c.b16 %v4072, %v4071
    %v4075 = vunpack.c.l.b16 %v3181
    %v4076 = vunpack.c.l.b16 %v3182
    %v4077 = vunpack.c.l.b16 %v3183
    %v4078 = vunpack.c.l.b16 %v3184
    %v4079 = vpack.c.b16 %v4076, %v4075
    %v4080 = vpack.c.b16 %v4078, %v4077
    %v4084 = vsel %vm850, %v4073, 0
    %v4087 = vsel %vm850, %v4074, 0
    %4089 = vmatpush.bf16.msra.mxu0 0
    %4090 = vmatpush.bf16.msra.mxu0 0
    %4091 = vmatpush.bf16.msra.mxu0 0
    %4092 = vmatpush.bf16.msra.mxu0 0
    %4093 = vmatpush.bf16.msra.mxu0 0
    %4094 = vmatpush.bf16.msra.mxu0 0
    %4095 = vmatpush.bf16.msra.mxu0 %v4080
    %4096 = vmatpush.bf16.msra.mxu0 %v4079
    %4097 = vmatmul.bf16.gmra.mxu0 %v4084
    %v4098 = vpop.f32.mrf.mxu0
    %v4099 = vadd.f32 0.0, %v4098
    %v4100 = vpop.f32.mrf.mxu0
    %v4101 = vadd.f32 0.0, %v4100
    %4102 = vmatmul.bf16.gmra.mxu0 %v4087
    %v4103 = vpop.f32.mrf.mxu0
    %v4104 = vadd.f32 0.0, %v4103
    %v4105 = vpop.f32.mrf.mxu0
    %v4106 = vadd.f32 0.0, %v4105
    %4107 = vdwg.mxu0
    %v4112 = vunpack.c.l.b16 %v3881
    %v4113 = vunpack.c.l.b16 %v3882
    %v4114 = vunpack.c.l.b16 %v3883
    %v4115 = vunpack.c.l.b16 %v3884
    %v4116 = vpack.c.b16 %v4113, %v4112
    %v4117 = vpack.c.b16 %v4115, %v4114
    %v4118 = vunpack.c.l.b16 %v3185
    %v4119 = vunpack.c.l.b16 %v3186
    %v4120 = vunpack.c.l.b16 %v3187
    %v4121 = vunpack.c.l.b16 %v3188
    %v4122 = vpack.c.b16 %v4119, %v4118
    %v4123 = vpack.c.b16 %v4121, %v4120
    %v4127 = vsel %vm850, %v4116, 0
    %v4130 = vsel %vm850, %v4117, 0
    %4132 = vmatpush.bf16.msra.mxu0 0
    %4133 = vmatpush.bf16.msra.mxu0 0
    %4134 = vmatpush.bf16.msra.mxu0 0
    %4135 = vmatpush.bf16.msra.mxu0 0
    %4136 = vmatpush.bf16.msra.mxu0 0
    %4137 = vmatpush.bf16.msra.mxu0 0
    %4138 = vmatpush.bf16.msra.mxu0 %v4123
    %4139 = vmatpush.bf16.msra.mxu0 %v4122
    %4140 = vmatmul.bf16.gmra.mxu0 %v4127
    %v4141 = vpop.f32.mrf.mxu0
    %v4142 = vadd.f32 0.0, %v4141
    %v4143 = vpop.f32.mrf.mxu0
    %v4144 = vadd.f32 0.0, %v4143
    %4145 = vmatmul.bf16.gmra.mxu0 %v4130
    %v4146 = vpop.f32.mrf.mxu0
    %v4147 = vadd.f32 0.0, %v4146
    %v4148 = vpop.f32.mrf.mxu0
    %v4149 = vadd.f32 0.0, %v4148
    %4150 = vdwg.mxu0
    %v4155 = vunpack.c.l.b16 %v3885
    %v4156 = vunpack.c.l.b16 %v3886
    %v4157 = vunpack.c.l.b16 %v3887
    %v4158 = vunpack.c.l.b16 %v3888
    %v4159 = vpack.c.b16 %v4156, %v4155
    %v4160 = vpack.c.b16 %v4158, %v4157
    %v4161 = vunpack.c.l.b16 %v3189
    %v4162 = vunpack.c.l.b16 %v3190
    %v4163 = vunpack.c.l.b16 %v3191
    %v4164 = vunpack.c.l.b16 %v3192
    %v4165 = vpack.c.b16 %v4162, %v4161
    %v4166 = vpack.c.b16 %v4164, %v4163
    %v4170 = vsel %vm850, %v4159, 0
    %v4173 = vsel %vm850, %v4160, 0
    %4175 = vmatpush.bf16.msra.mxu0 0
    %4176 = vmatpush.bf16.msra.mxu0 0
    %4177 = vmatpush.bf16.msra.mxu0 0
    %4178 = vmatpush.bf16.msra.mxu0 0
    %4179 = vmatpush.bf16.msra.mxu0 0
    %4180 = vmatpush.bf16.msra.mxu0 0
    %4181 = vmatpush.bf16.msra.mxu0 %v4166
    %4182 = vmatpush.bf16.msra.mxu0 %v4165
    %4183 = vmatmul.bf16.gmra.mxu0 %v4170
    %v4184 = vpop.f32.mrf.mxu0
    %v4185 = vadd.f32 0.0, %v4184
    %v4186 = vpop.f32.mrf.mxu0
    %v4187 = vadd.f32 0.0, %v4186
    %4188 = vmatmul.bf16.gmra.mxu0 %v4173
    %v4189 = vpop.f32.mrf.mxu0
    %v4190 = vadd.f32 0.0, %v4189
    %v4191 = vpop.f32.mrf.mxu0
    %v4192 = vadd.f32 0.0, %v4191
    %4193 = vdwg.mxu0
    %v4198 = vunpack.c.l.b16 %v3889
    %v4199 = vunpack.c.l.b16 %v3890
    %v4200 = vunpack.c.l.b16 %v3891
    %v4201 = vunpack.c.l.b16 %v3892
    %v4202 = vpack.c.b16 %v4199, %v4198
    %v4203 = vpack.c.b16 %v4201, %v4200
    %v4204 = vunpack.c.l.b16 %v3193
    %v4205 = vunpack.c.l.b16 %v3194
    %v4206 = vunpack.c.l.b16 %v3195
    %v4207 = vunpack.c.l.b16 %v3196
    %v4208 = vpack.c.b16 %v4205, %v4204
    %v4209 = vpack.c.b16 %v4207, %v4206
    %v4213 = vsel %vm850, %v4202, 0
    %v4216 = vsel %vm850, %v4203, 0
    %4218 = vmatpush.bf16.msra.mxu0 0
    %4219 = vmatpush.bf16.msra.mxu0 0
    %4220 = vmatpush.bf16.msra.mxu0 0
    %4221 = vmatpush.bf16.msra.mxu0 0
    %4222 = vmatpush.bf16.msra.mxu0 0
    %4223 = vmatpush.bf16.msra.mxu0 0
    %4224 = vmatpush.bf16.msra.mxu0 %v4209
    %4225 = vmatpush.bf16.msra.mxu0 %v4208
    %4226 = vmatmul.bf16.gmra.mxu0 %v4213
    %v4227 = vpop.f32.mrf.mxu0
    %v4228 = vadd.f32 0.0, %v4227
    %v4229 = vpop.f32.mrf.mxu0
    %v4230 = vadd.f32 0.0, %v4229
    %4231 = vmatmul.bf16.gmra.mxu0 %v4216
    %v4232 = vpop.f32.mrf.mxu0
    %v4233 = vadd.f32 0.0, %v4232
    %v4234 = vpop.f32.mrf.mxu0
    %v4235 = vadd.f32 0.0, %v4234
    %4236 = vdwg.mxu0
    %v4237 = vpack.c.bf16 %v3929, %v3927
    %v4238 = vpack.c.bf16 %v3934, %v3932
    %v4239 = vpack.c.bf16 %v3972, %v3970
    %v4240 = vpack.c.bf16 %v3977, %v3975
    %v4241 = vpack.c.bf16 %v4015, %v4013
    %v4242 = vpack.c.bf16 %v4020, %v4018
    %v4243 = vpack.c.bf16 %v4058, %v4056
    %v4244 = vpack.c.bf16 %v4063, %v4061
    %v4245 = vpack.c.bf16 %v4101, %v4099
    %v4246 = vpack.c.bf16 %v4106, %v4104
    %v4247 = vpack.c.bf16 %v4144, %v4142
    %v4248 = vpack.c.bf16 %v4149, %v4147
    %v4249 = vpack.c.bf16 %v4187, %v4185
    %v4250 = vpack.c.bf16 %v4192, %v4190
    %v4251 = vpack.c.bf16 %v4230, %v4228
    %v4252 = vpack.c.bf16 %v4235, %v4233
    %v4253 = vld [vmem:[%s2 + $0x10] sm:$0xf]
    %v4254 = vld [vmem:[%s2 + $0x14] sm:$0xf]
    %v4257 = vunpack.c.l.b16 %v4253
    %v4258 = vunpack.c.l.b16 %v4254
    %v4259 = vpack.c.b16 %v4258, %v4257
    %v4262 = vsel %vm531, %v4237, 0
    %v4265 = vsel %vm531, %v4238, 0
    %v4268 = vsel %vm531, %v4239, 0
    %v4271 = vsel %vm531, %v4240, 0
    %v4274 = vsel %vm531, %v4241, 0
    %v4277 = vsel %vm531, %v4242, 0
    %v4280 = vsel %vm531, %v4243, 0
    %v4283 = vsel %vm531, %v4244, 0
    %v4286 = vsel %vm531, %v4245, 0
    %v4289 = vsel %vm531, %v4246, 0
    %v4292 = vsel %vm531, %v4247, 0
    %v4295 = vsel %vm531, %v4248, 0
    %v4298 = vsel %vm531, %v4249, 0
    %v4301 = vsel %vm531, %v4250, 0
    %v4304 = vsel %vm531, %v4251, 0
    %v4307 = vsel %vm531, %v4252, 0
    %4309 = vmatpush.bf16.msra.mxu0 0
    %4310 = vmatpush.bf16.msra.mxu0 0
    %4311 = vmatpush.bf16.msra.mxu0 0
    %4312 = vmatpush.bf16.msra.mxu0 0
    %4313 = vmatpush.bf16.msra.mxu0 0
    %4314 = vmatpush.bf16.msra.mxu0 0
    %4315 = vmatpush.bf16.msra.mxu0 0
    %4316 = vmatpush.bf16.msra.mxu0 %v4259
    %4317 = vmatmul.bf16.gmra.mxu0 %v4262
    %v4318 = vpop.f32.mrf.mxu0
    %v4319 = vadd.f32 0.0, %v4318
    %v4320 = vpop.f32.mrf.mxu0
    %v4321 = vadd.f32 0.0, %v4320
    %4322 = vmatmul.bf16.gmra.mxu0 %v4265
    %v4323 = vpop.f32.mrf.mxu0
    %v4324 = vadd.f32 0.0, %v4323
    %v4325 = vpop.f32.mrf.mxu0
    %v4326 = vadd.f32 0.0, %v4325
    %4327 = vmatmul.bf16.gmra.mxu0 %v4268
    %v4328 = vpop.f32.mrf.mxu0
    %v4329 = vadd.f32 0.0, %v4328
    %v4330 = vpop.f32.mrf.mxu0
    %v4331 = vadd.f32 0.0, %v4330
    %4332 = vmatmul.bf16.gmra.mxu0 %v4271
    %v4333 = vpop.f32.mrf.mxu0
    %v4334 = vadd.f32 0.0, %v4333
    %v4335 = vpop.f32.mrf.mxu0
    %v4336 = vadd.f32 0.0, %v4335
    %4337 = vmatmul.bf16.gmra.mxu0 %v4274
    %v4338 = vpop.f32.mrf.mxu0
    %v4339 = vadd.f32 0.0, %v4338
    %v4340 = vpop.f32.mrf.mxu0
    %v4341 = vadd.f32 0.0, %v4340
    %4342 = vmatmul.bf16.gmra.mxu0 %v4277
    %v4343 = vpop.f32.mrf.mxu0
    %v4344 = vadd.f32 0.0, %v4343
    %v4345 = vpop.f32.mrf.mxu0
    %v4346 = vadd.f32 0.0, %v4345
    %4347 = vmatmul.bf16.gmra.mxu0 %v4280
    %v4348 = vpop.f32.mrf.mxu0
    %v4349 = vadd.f32 0.0, %v4348
    %v4350 = vpop.f32.mrf.mxu0
    %v4351 = vadd.f32 0.0, %v4350
    %4352 = vmatmul.bf16.gmra.mxu0 %v4283
    %v4353 = vpop.f32.mrf.mxu0
    %v4354 = vadd.f32 0.0, %v4353
    %v4355 = vpop.f32.mrf.mxu0
    %v4356 = vadd.f32 0.0, %v4355
    %4357 = vmatmul.bf16.gmra.mxu0 %v4286
    %v4358 = vpop.f32.mrf.mxu0
    %v4359 = vadd.f32 0.0, %v4358
    %v4360 = vpop.f32.mrf.mxu0
    %v4361 = vadd.f32 0.0, %v4360
    %4362 = vmatmul.bf16.gmra.mxu0 %v4289
    %v4363 = vpop.f32.mrf.mxu0
    %v4364 = vadd.f32 0.0, %v4363
    %v4365 = vpop.f32.mrf.mxu0
    %v4366 = vadd.f32 0.0, %v4365
    %4367 = vmatmul.bf16.gmra.mxu0 %v4292
    %v4368 = vpop.f32.mrf.mxu0
    %v4369 = vadd.f32 0.0, %v4368
    %v4370 = vpop.f32.mrf.mxu0
    %v4371 = vadd.f32 0.0, %v4370
    %4372 = vmatmul.bf16.gmra.mxu0 %v4295
    %v4373 = vpop.f32.mrf.mxu0
    %v4374 = vadd.f32 0.0, %v4373
    %v4375 = vpop.f32.mrf.mxu0
    %v4376 = vadd.f32 0.0, %v4375
    %4377 = vmatmul.bf16.gmra.mxu0 %v4298
    %v4378 = vpop.f32.mrf.mxu0
    %v4379 = vadd.f32 0.0, %v4378
    %v4380 = vpop.f32.mrf.mxu0
    %v4381 = vadd.f32 0.0, %v4380
    %4382 = vmatmul.bf16.gmra.mxu0 %v4301
    %v4383 = vpop.f32.mrf.mxu0
    %v4384 = vadd.f32 0.0, %v4383
    %v4385 = vpop.f32.mrf.mxu0
    %v4386 = vadd.f32 0.0, %v4385
    %4387 = vmatmul.bf16.gmra.mxu0 %v4304
    %v4388 = vpop.f32.mrf.mxu0
    %v4389 = vadd.f32 0.0, %v4388
    %v4390 = vpop.f32.mrf.mxu0
    %v4391 = vadd.f32 0.0, %v4390
    %4392 = vmatmul.bf16.gmra.mxu0 %v4307
    %v4393 = vpop.f32.mrf.mxu0
    %v4394 = vadd.f32 0.0, %v4393
    %v4395 = vpop.f32.mrf.mxu0
    %v4396 = vadd.f32 0.0, %v4395
    %4397 = vdwg.mxu0
    %v4398 = vadd.f32 %v3069, %v4319
    %v4399 = vadd.f32 %v3070, %v4321
    %v4400 = vadd.f32 %v3071, %v4324
    %v4401 = vadd.f32 %v3072, %v4326
    %v4402 = vadd.f32 %v3073, %v4329
    %v4403 = vadd.f32 %v3074, %v4331
    %v4404 = vadd.f32 %v3075, %v4334
    %v4405 = vadd.f32 %v3076, %v4336
    %v4406 = vadd.f32 %v3077, %v4339
    %v4407 = vadd.f32 %v3078, %v4341
    %v4408 = vadd.f32 %v3079, %v4344
    %v4409 = vadd.f32 %v3080, %v4346
    %v4410 = vadd.f32 %v3081, %v4349
    %v4411 = vadd.f32 %v3082, %v4351
    %v4412 = vadd.f32 %v3083, %v4354
    %v4413 = vadd.f32 %v3084, %v4356
    %v4414 = vadd.f32 %v3085, %v4359
    %v4415 = vadd.f32 %v3086, %v4361
    %v4416 = vadd.f32 %v3087, %v4364
    %v4417 = vadd.f32 %v3088, %v4366
    %v4418 = vadd.f32 %v3089, %v4369
    %v4419 = vadd.f32 %v3090, %v4371
    %v4420 = vadd.f32 %v3091, %v4374
    %v4421 = vadd.f32 %v3092, %v4376
    %v4422 = vadd.f32 %v3093, %v4379
    %v4423 = vadd.f32 %v3094, %v4381
    %v4424 = vadd.f32 %v3095, %v4384
    %v4425 = vadd.f32 %v3096, %v4386
    %v4426 = vadd.f32 %v3097, %v4389
    %v4427 = vadd.f32 %v3098, %v4391
    %v4428 = vadd.f32 %v3099, %v4394
    %v4429 = vadd.f32 %v3100, %v4396
    %4430 = vrot.lane.b32.xlu0 %v406, 80
    %v4431 = vpop.permute.xlu0 %4430
    %4432 = vrot.lane.b32.xlu0 %v407, 80
    %v4433 = vpop.permute.xlu0 %4432
    %4434 = vrot.lane.b32.xlu0 %v408, 80
    %v4435 = vpop.permute.xlu0 %4434
    %4436 = vrot.lane.b32.xlu0 %v409, 80
    %v4437 = vpop.permute.xlu0 %4436
    %4438 = vrot.lane.b32.xlu0 %v410, 80
    %v4439 = vpop.permute.xlu0 %4438
    %4440 = vrot.lane.b32.xlu0 %v411, 80
    %v4441 = vpop.permute.xlu0 %4440
    %4442 = vrot.lane.b32.xlu0 %v412, 80
    %v4443 = vpop.permute.xlu0 %4442
    %4444 = vrot.lane.b32.xlu0 %v413, 80
    %v4445 = vpop.permute.xlu0 %4444
    %4446 = vrot.lane.b32.xlu0 %v414, 80
    %v4447 = vpop.permute.xlu0 %4446
    %4448 = vrot.lane.b32.xlu0 %v415, 80
    %v4449 = vpop.permute.xlu0 %4448
    %4450 = vrot.lane.b32.xlu0 %v416, 80
    %v4451 = vpop.permute.xlu0 %4450
    %4452 = vrot.lane.b32.xlu0 %v417, 80
    %v4453 = vpop.permute.xlu0 %4452
    %4454 = vrot.lane.b32.xlu0 %v418, 80
    %v4455 = vpop.permute.xlu0 %4454
    %4456 = vrot.lane.b32.xlu0 %v419, 80
    %v4457 = vpop.permute.xlu0 %4456
    %4458 = vrot.lane.b32.xlu0 %v420, 80
    %v4459 = vpop.permute.xlu0 %4458
    %4460 = vrot.lane.b32.xlu0 %v421, 80
    %v4461 = vpop.permute.xlu0 %4460
    %4462 = vrot.lane.b32.xlu0 %v422, 80
    %v4463 = vpop.permute.xlu0 %4462
    %4464 = vrot.lane.b32.xlu0 %v423, 80
    %v4465 = vpop.permute.xlu0 %4464
    %4466 = vrot.lane.b32.xlu0 %v424, 80
    %v4467 = vpop.permute.xlu0 %4466
    %4468 = vrot.lane.b32.xlu0 %v425, 80
    %v4469 = vpop.permute.xlu0 %4468
    %4470 = vrot.lane.b32.xlu0 %v426, 80
    %v4471 = vpop.permute.xlu0 %4470
    %4472 = vrot.lane.b32.xlu0 %v427, 80
    %v4473 = vpop.permute.xlu0 %4472
    %4474 = vrot.lane.b32.xlu0 %v428, 80
    %v4475 = vpop.permute.xlu0 %4474
    %4476 = vrot.lane.b32.xlu0 %v429, 80
    %v4477 = vpop.permute.xlu0 %4476
    %4478 = vrot.lane.b32.xlu0 %v430, 80
    %v4479 = vpop.permute.xlu0 %4478
    %4480 = vrot.lane.b32.xlu0 %v431, 80
    %v4481 = vpop.permute.xlu0 %4480
    %4482 = vrot.lane.b32.xlu0 %v432, 80
    %v4483 = vpop.permute.xlu0 %4482
    %4484 = vrot.lane.b32.xlu0 %v433, 80
    %v4485 = vpop.permute.xlu0 %4484
    %4486 = vrot.lane.b32.xlu0 %v434, 80
    %v4487 = vpop.permute.xlu0 %4486
    %4488 = vrot.lane.b32.xlu0 %v435, 80
    %v4489 = vpop.permute.xlu0 %4488
    %4490 = vrot.lane.b32.xlu0 %v436, 80
    %v4491 = vpop.permute.xlu0 %4490
    %4492 = vrot.lane.b32.xlu0 %v437, 80
    %v4493 = vpop.permute.xlu0 %4492
    %v4494 = vrot.slane %v4431, 4
    %v4495 = vrot.slane %v4433, 4
    %v4496 = vrot.slane %v4435, 4
    %v4497 = vrot.slane %v4437, 4
    %v4498 = vrot.slane %v4439, 4
    %v4499 = vrot.slane %v4441, 4
    %v4500 = vrot.slane %v4443, 4
    %v4501 = vrot.slane %v4445, 4
    %v4502 = vrot.slane %v4447, 4
    %v4503 = vrot.slane %v4449, 4
    %v4504 = vrot.slane %v4451, 4
    %v4505 = vrot.slane %v4453, 4
    %v4506 = vrot.slane %v4455, 4
    %v4507 = vrot.slane %v4457, 4
    %v4508 = vrot.slane %v4459, 4
    %v4509 = vrot.slane %v4461, 4
    %v4510 = vrot.slane %v4463, 4
    %v4511 = vrot.slane %v4465, 4
    %v4512 = vrot.slane %v4467, 4
    %v4513 = vrot.slane %v4469, 4
    %v4514 = vrot.slane %v4471, 4
    %v4515 = vrot.slane %v4473, 4
    %v4516 = vrot.slane %v4475, 4
    %v4517 = vrot.slane %v4477, 4
    %v4518 = vrot.slane %v4479, 4
    %v4519 = vrot.slane %v4481, 4
    %v4520 = vrot.slane %v4483, 4
    %v4521 = vrot.slane %v4485, 4
    %v4522 = vrot.slane %v4487, 4
    %v4523 = vrot.slane %v4489, 4
    %v4524 = vrot.slane %v4491, 4
    %v4525 = vrot.slane %v4493, 4
    %4526 = vrot.lane.b32.xlu0 %v525, 80
    %v4527 = vpop.permute.xlu0 %4526
    %4528 = vrot.lane.b32.xlu0 %v526, 80
    %v4529 = vpop.permute.xlu0 %4528
    %4530 = vrot.lane.b32.xlu0 %v525, 16
    %v4531 = vpop.permute.xlu0 %4530
    %4532 = vrot.lane.b32.xlu0 %v526, 16
    %v4533 = vpop.permute.xlu0 %4532
    %v4535 = vsel %vm531, %v4527, 0
    %v4538 = vsel %vm531, %v4529, 0
    %v4541 = vsel %vm531, %v4531, 0
    %v4544 = vsel %vm531, %v4533, 0
    %4546 = vmatpush.bf16.xpose.msra.mxu0 0
    %4547 = vmatpush.bf16.xpose.msra.mxu0 0
    %4548 = vmatpush.bf16.xpose.msra.mxu0 0
    %4549 = vmatpush.bf16.xpose.msra.mxu0 0
    %4550 = vmatpush.bf16.xpose.msra.mxu0 0
    %4551 = vmatpush.bf16.xpose.msra.mxu0 0
    %4552 = vmatpush.bf16.xpose.msra.mxu0 %v4544
    %4553 = vmatpush.bf16.xpose.msra.mxu0 %v4541
    %4554 = vmatmul.bf16.gmra.mxu0 %v4535
    %v4555 = vpop.f32.mrf.mxu0
    %v4556 = vadd.f32 %v449, %v4555
    %v4557 = vpop.f32.mrf.mxu0
    %v4558 = vadd.f32 %v450, %v4557
    %4559 = vmatmul.bf16.gmra.mxu0 %v4538
    %v4560 = vpop.f32.mrf.mxu0
    %v4561 = vadd.f32 %v451, %v4560
    %v4562 = vpop.f32.mrf.mxu0
    %v4563 = vadd.f32 %v452, %v4562
    %4564 = vdwg.mxu0
    %4565 = vrot.lane.b32.xlu0 %v567, 80
    %v4566 = vpop.permute.xlu0 %4565
    %4567 = vrot.lane.b32.xlu0 %v568, 80
    %v4568 = vpop.permute.xlu0 %4567
    %4569 = vrot.lane.b32.xlu0 %v567, 16
    %v4570 = vpop.permute.xlu0 %4569
    %4571 = vrot.lane.b32.xlu0 %v568, 16
    %v4572 = vpop.permute.xlu0 %4571
    %v4574 = vsel %vm531, %v4566, 0
    %v4577 = vsel %vm531, %v4568, 0
    %v4580 = vsel %vm531, %v4570, 0
    %v4583 = vsel %vm531, %v4572, 0
    %4585 = vmatpush.bf16.xpose.msra.mxu0 0
    %4586 = vmatpush.bf16.xpose.msra.mxu0 0
    %4587 = vmatpush.bf16.xpose.msra.mxu0 0
    %4588 = vmatpush.bf16.xpose.msra.mxu0 0
    %4589 = vmatpush.bf16.xpose.msra.mxu0 0
    %4590 = vmatpush.bf16.xpose.msra.mxu0 0
    %4591 = vmatpush.bf16.xpose.msra.mxu0 %v4583
    %4592 = vmatpush.bf16.xpose.msra.mxu0 %v4580
    %4593 = vmatmul.bf16.gmra.mxu0 %v4574
    %v4594 = vpop.f32.mrf.mxu0
    %v4595 = vadd.f32 %v449, %v4594
    %v4596 = vpop.f32.mrf.mxu0
    %v4597 = vadd.f32 %v450, %v4596
    %4598 = vmatmul.bf16.gmra.mxu0 %v4577
    %v4599 = vpop.f32.mrf.mxu0
    %v4600 = vadd.f32 %v451, %v4599
    %v4601 = vpop.f32.mrf.mxu0
    %v4602 = vadd.f32 %v452, %v4601
    %4603 = vdwg.mxu0
    %4604 = vrot.lane.b32.xlu0 %v608, 80
    %v4605 = vpop.permute.xlu0 %4604
    %4606 = vrot.lane.b32.xlu0 %v609, 80
    %v4607 = vpop.permute.xlu0 %4606
    %4608 = vrot.lane.b32.xlu0 %v608, 16
    %v4609 = vpop.permute.xlu0 %4608
    %4610 = vrot.lane.b32.xlu0 %v609, 16
    %v4611 = vpop.permute.xlu0 %4610
    %v4613 = vsel %vm531, %v4605, 0
    %v4616 = vsel %vm531, %v4607, 0
    %v4619 = vsel %vm531, %v4609, 0
    %v4622 = vsel %vm531, %v4611, 0
    %4624 = vmatpush.bf16.xpose.msra.mxu0 0
    %4625 = vmatpush.bf16.xpose.msra.mxu0 0
    %4626 = vmatpush.bf16.xpose.msra.mxu0 0
    %4627 = vmatpush.bf16.xpose.msra.mxu0 0
    %4628 = vmatpush.bf16.xpose.msra.mxu0 0
    %4629 = vmatpush.bf16.xpose.msra.mxu0 0
    %4630 = vmatpush.bf16.xpose.msra.mxu0 %v4622
    %4631 = vmatpush.bf16.xpose.msra.mxu0 %v4619
    %4632 = vmatmul.bf16.gmra.mxu0 %v4613
    %v4633 = vpop.f32.mrf.mxu0
    %v4634 = vadd.f32 %v449, %v4633
    %v4635 = vpop.f32.mrf.mxu0
    %v4636 = vadd.f32 %v450, %v4635
    %4637 = vmatmul.bf16.gmra.mxu0 %v4616
    %v4638 = vpop.f32.mrf.mxu0
    %v4639 = vadd.f32 %v451, %v4638
    %v4640 = vpop.f32.mrf.mxu0
    %v4641 = vadd.f32 %v452, %v4640
    %4642 = vdwg.mxu0
    %4643 = vrot.lane.b32.xlu0 %v649, 80
    %v4644 = vpop.permute.xlu0 %4643
    %4645 = vrot.lane.b32.xlu0 %v650, 80
    %v4646 = vpop.permute.xlu0 %4645
    %4647 = vrot.lane.b32.xlu0 %v649, 16
    %v4648 = vpop.permute.xlu0 %4647
    %4649 = vrot.lane.b32.xlu0 %v650, 16
    %v4650 = vpop.permute.xlu0 %4649
    %v4652 = vsel %vm531, %v4644, 0
    %v4655 = vsel %vm531, %v4646, 0
    %v4658 = vsel %vm531, %v4648, 0
    %v4661 = vsel %vm531, %v4650, 0
    %4663 = vmatpush.bf16.xpose.msra.mxu0 0
    %4664 = vmatpush.bf16.xpose.msra.mxu0 0
    %4665 = vmatpush.bf16.xpose.msra.mxu0 0
    %4666 = vmatpush.bf16.xpose.msra.mxu0 0
    %4667 = vmatpush.bf16.xpose.msra.mxu0 0
    %4668 = vmatpush.bf16.xpose.msra.mxu0 0
    %4669 = vmatpush.bf16.xpose.msra.mxu0 %v4661
    %4670 = vmatpush.bf16.xpose.msra.mxu0 %v4658
    %4671 = vmatmul.bf16.gmra.mxu0 %v4652
    %v4672 = vpop.f32.mrf.mxu0
    %v4673 = vadd.f32 %v449, %v4672
    %v4674 = vpop.f32.mrf.mxu0
    %v4675 = vadd.f32 %v450, %v4674
    %4676 = vmatmul.bf16.gmra.mxu0 %v4655
    %v4677 = vpop.f32.mrf.mxu0
    %v4678 = vadd.f32 %v451, %v4677
    %v4679 = vpop.f32.mrf.mxu0
    %v4680 = vadd.f32 %v452, %v4679
    %4681 = vdwg.mxu0
    %4682 = vrot.lane.b32.xlu0 %v690, 80
    %v4683 = vpop.permute.xlu0 %4682
    %4684 = vrot.lane.b32.xlu0 %v691, 80
    %v4685 = vpop.permute.xlu0 %4684
    %4686 = vrot.lane.b32.xlu0 %v690, 16
    %v4687 = vpop.permute.xlu0 %4686
    %4688 = vrot.lane.b32.xlu0 %v691, 16
    %v4689 = vpop.permute.xlu0 %4688
    %v4691 = vsel %vm531, %v4683, 0
    %v4694 = vsel %vm531, %v4685, 0
    %v4697 = vsel %vm531, %v4687, 0
    %v4700 = vsel %vm531, %v4689, 0
    %4702 = vmatpush.bf16.xpose.msra.mxu0 0
    %4703 = vmatpush.bf16.xpose.msra.mxu0 0
    %4704 = vmatpush.bf16.xpose.msra.mxu0 0
    %4705 = vmatpush.bf16.xpose.msra.mxu0 0
    %4706 = vmatpush.bf16.xpose.msra.mxu0 0
    %4707 = vmatpush.bf16.xpose.msra.mxu0 0
    %4708 = vmatpush.bf16.xpose.msra.mxu0 %v4700
    %4709 = vmatpush.bf16.xpose.msra.mxu0 %v4697
    %4710 = vmatmul.bf16.gmra.mxu0 %v4691
    %v4711 = vpop.f32.mrf.mxu0
    %v4712 = vadd.f32 %v449, %v4711
    %v4713 = vpop.f32.mrf.mxu0
    %v4714 = vadd.f32 %v450, %v4713
    %4715 = vmatmul.bf16.gmra.mxu0 %v4694
    %v4716 = vpop.f32.mrf.mxu0
    %v4717 = vadd.f32 %v451, %v4716
    %v4718 = vpop.f32.mrf.mxu0
    %v4719 = vadd.f32 %v452, %v4718
    %4720 = vdwg.mxu0
    %4721 = vrot.lane.b32.xlu0 %v731, 80
    %v4722 = vpop.permute.xlu0 %4721
    %4723 = vrot.lane.b32.xlu0 %v732, 80
    %v4724 = vpop.permute.xlu0 %4723
    %4725 = vrot.lane.b32.xlu0 %v731, 16
    %v4726 = vpop.permute.xlu0 %4725
    %4727 = vrot.lane.b32.xlu0 %v732, 16
    %v4728 = vpop.permute.xlu0 %4727
    %v4730 = vsel %vm531, %v4722, 0
    %v4733 = vsel %vm531, %v4724, 0
    %v4736 = vsel %vm531, %v4726, 0
    %v4739 = vsel %vm531, %v4728, 0
    %4741 = vmatpush.bf16.xpose.msra.mxu0 0
    %4742 = vmatpush.bf16.xpose.msra.mxu0 0
    %4743 = vmatpush.bf16.xpose.msra.mxu0 0
    %4744 = vmatpush.bf16.xpose.msra.mxu0 0
    %4745 = vmatpush.bf16.xpose.msra.mxu0 0
    %4746 = vmatpush.bf16.xpose.msra.mxu0 0
    %4747 = vmatpush.bf16.xpose.msra.mxu0 %v4739
    %4748 = vmatpush.bf16.xpose.msra.mxu0 %v4736
    %4749 = vmatmul.bf16.gmra.mxu0 %v4730
    %v4750 = vpop.f32.mrf.mxu0
    %v4751 = vadd.f32 %v449, %v4750
    %v4752 = vpop.f32.mrf.mxu0
    %v4753 = vadd.f32 %v450, %v4752
    %4754 = vmatmul.bf16.gmra.mxu0 %v4733
    %v4755 = vpop.f32.mrf.mxu0
    %v4756 = vadd.f32 %v451, %v4755
    %v4757 = vpop.f32.mrf.mxu0
    %v4758 = vadd.f32 %v452, %v4757
    %4759 = vdwg.mxu0
    %4760 = vrot.lane.b32.xlu0 %v772, 80
    %v4761 = vpop.permute.xlu0 %4760
    %4762 = vrot.lane.b32.xlu0 %v773, 80
    %v4763 = vpop.permute.xlu0 %4762
    %4764 = vrot.lane.b32.xlu0 %v772, 16
    %v4765 = vpop.permute.xlu0 %4764
    %4766 = vrot.lane.b32.xlu0 %v773, 16
    %v4767 = vpop.permute.xlu0 %4766
    %v4769 = vsel %vm531, %v4761, 0
    %v4772 = vsel %vm531, %v4763, 0
    %v4775 = vsel %vm531, %v4765, 0
    %v4778 = vsel %vm531, %v4767, 0
    %4780 = vmatpush.bf16.xpose.msra.mxu0 0
    %4781 = vmatpush.bf16.xpose.msra.mxu0 0
    %4782 = vmatpush.bf16.xpose.msra.mxu0 0
    %4783 = vmatpush.bf16.xpose.msra.mxu0 0
    %4784 = vmatpush.bf16.xpose.msra.mxu0 0
    %4785 = vmatpush.bf16.xpose.msra.mxu0 0
    %4786 = vmatpush.bf16.xpose.msra.mxu0 %v4778
    %4787 = vmatpush.bf16.xpose.msra.mxu0 %v4775
    %4788 = vmatmul.bf16.gmra.mxu0 %v4769
    %v4789 = vpop.f32.mrf.mxu0
    %v4790 = vadd.f32 %v449, %v4789
    %v4791 = vpop.f32.mrf.mxu0
    %v4792 = vadd.f32 %v450, %v4791
    %4793 = vmatmul.bf16.gmra.mxu0 %v4772
    %v4794 = vpop.f32.mrf.mxu0
    %v4795 = vadd.f32 %v451, %v4794
    %v4796 = vpop.f32.mrf.mxu0
    %v4797 = vadd.f32 %v452, %v4796
    %4798 = vdwg.mxu0
    %4799 = vrot.lane.b32.xlu0 %v813, 80
    %v4800 = vpop.permute.xlu0 %4799
    %4801 = vrot.lane.b32.xlu0 %v814, 80
    %v4802 = vpop.permute.xlu0 %4801
    %4803 = vrot.lane.b32.xlu0 %v813, 16
    %v4804 = vpop.permute.xlu0 %4803
    %4805 = vrot.lane.b32.xlu0 %v814, 16
    %v4806 = vpop.permute.xlu0 %4805
    %v4808 = vsel %vm531, %v4800, 0
    %v4811 = vsel %vm531, %v4802, 0
    %v4814 = vsel %vm531, %v4804, 0
    %v4817 = vsel %vm531, %v4806, 0
    %4819 = vmatpush.bf16.xpose.msra.mxu0 0
    %4820 = vmatpush.bf16.xpose.msra.mxu0 0
    %4821 = vmatpush.bf16.xpose.msra.mxu0 0
    %4822 = vmatpush.bf16.xpose.msra.mxu0 0
    %4823 = vmatpush.bf16.xpose.msra.mxu0 0
    %4824 = vmatpush.bf16.xpose.msra.mxu0 0
    %4825 = vmatpush.bf16.xpose.msra.mxu0 %v4817
    %4826 = vmatpush.bf16.xpose.msra.mxu0 %v4814
    %4827 = vmatmul.bf16.gmra.mxu0 %v4808
    %v4828 = vpop.f32.mrf.mxu0
    %v4829 = vadd.f32 %v449, %v4828
    %v4830 = vpop.f32.mrf.mxu0
    %v4831 = vadd.f32 %v450, %v4830
    %4832 = vmatmul.bf16.gmra.mxu0 %v4811
    %v4833 = vpop.f32.mrf.mxu0
    %v4834 = vadd.f32 %v451, %v4833
    %v4835 = vpop.f32.mrf.mxu0
    %v4836 = vadd.f32 %v452, %v4835
    %4837 = vdwg.mxu0
    %v4838 = vsel %vm850, %v4556, -inf
    %4839 = vmax.xlane.f32.xlu0 %v4838
    %v4840 = vpop.xlane.xlu0 %4839
    %v4841 = vsel %vm850, %v4558, -inf
    %4842 = vmax.xlane.f32.xlu0 %v4841
    %v4843 = vpop.xlane.xlu0 %4842
    %v4844 = vsel %vm850, %v4561, -inf
    %4845 = vmax.xlane.f32.xlu0 %v4844
    %v4846 = vpop.xlane.xlu0 %4845
    %v4847 = vsel %vm850, %v4563, -inf
    %4848 = vmax.xlane.f32.xlu0 %v4847
    %v4849 = vpop.xlane.xlu0 %4848
    %v4850 = vsel %vm850, %v4595, -inf
    %4851 = vmax.xlane.f32.xlu0 %v4850
    %v4852 = vpop.xlane.xlu0 %4851
    %v4853 = vsel %vm850, %v4597, -inf
    %4854 = vmax.xlane.f32.xlu0 %v4853
    %v4855 = vpop.xlane.xlu0 %4854
    %v4856 = vsel %vm850, %v4600, -inf
    %4857 = vmax.xlane.f32.xlu0 %v4856
    %v4858 = vpop.xlane.xlu0 %4857
    %v4859 = vsel %vm850, %v4602, -inf
    %4860 = vmax.xlane.f32.xlu0 %v4859
    %v4861 = vpop.xlane.xlu0 %4860
    %v4862 = vsel %vm850, %v4634, -inf
    %4863 = vmax.xlane.f32.xlu0 %v4862
    %v4864 = vpop.xlane.xlu0 %4863
    %v4865 = vsel %vm850, %v4636, -inf
    %4866 = vmax.xlane.f32.xlu0 %v4865
    %v4867 = vpop.xlane.xlu0 %4866
    %v4868 = vsel %vm850, %v4639, -inf
    %4869 = vmax.xlane.f32.xlu0 %v4868
    %v4870 = vpop.xlane.xlu0 %4869
    %v4871 = vsel %vm850, %v4641, -inf
    %4872 = vmax.xlane.f32.xlu0 %v4871
    %v4873 = vpop.xlane.xlu0 %4872
    %v4874 = vsel %vm850, %v4673, -inf
    %4875 = vmax.xlane.f32.xlu0 %v4874
    %v4876 = vpop.xlane.xlu0 %4875
    %v4877 = vsel %vm850, %v4675, -inf
    %4878 = vmax.xlane.f32.xlu0 %v4877
    %v4879 = vpop.xlane.xlu0 %4878
    %v4880 = vsel %vm850, %v4678, -inf
    %4881 = vmax.xlane.f32.xlu0 %v4880
    %v4882 = vpop.xlane.xlu0 %4881
    %v4883 = vsel %vm850, %v4680, -inf
    %4884 = vmax.xlane.f32.xlu0 %v4883
    %v4885 = vpop.xlane.xlu0 %4884
    %v4886 = vsel %vm850, %v4712, -inf
    %4887 = vmax.xlane.f32.xlu0 %v4886
    %v4888 = vpop.xlane.xlu0 %4887
    %v4889 = vsel %vm850, %v4714, -inf
    %4890 = vmax.xlane.f32.xlu0 %v4889
    %v4891 = vpop.xlane.xlu0 %4890
    %v4892 = vsel %vm850, %v4717, -inf
    %4893 = vmax.xlane.f32.xlu0 %v4892
    %v4894 = vpop.xlane.xlu0 %4893
    %v4895 = vsel %vm850, %v4719, -inf
    %4896 = vmax.xlane.f32.xlu0 %v4895
    %v4897 = vpop.xlane.xlu0 %4896
    %v4898 = vsel %vm850, %v4751, -inf
    %4899 = vmax.xlane.f32.xlu0 %v4898
    %v4900 = vpop.xlane.xlu0 %4899
    %v4901 = vsel %vm850, %v4753, -inf
    %4902 = vmax.xlane.f32.xlu0 %v4901
    %v4903 = vpop.xlane.xlu0 %4902
    %v4904 = vsel %vm850, %v4756, -inf
    %4905 = vmax.xlane.f32.xlu0 %v4904
    %v4906 = vpop.xlane.xlu0 %4905
    %v4907 = vsel %vm850, %v4758, -inf
    %4908 = vmax.xlane.f32.xlu0 %v4907
    %v4909 = vpop.xlane.xlu0 %4908
    %v4910 = vsel %vm850, %v4790, -inf
    %4911 = vmax.xlane.f32.xlu0 %v4910
    %v4912 = vpop.xlane.xlu0 %4911
    %v4913 = vsel %vm850, %v4792, -inf
    %4914 = vmax.xlane.f32.xlu0 %v4913
    %v4915 = vpop.xlane.xlu0 %4914
    %v4916 = vsel %vm850, %v4795, -inf
    %4917 = vmax.xlane.f32.xlu0 %v4916
    %v4918 = vpop.xlane.xlu0 %4917
    %v4919 = vsel %vm850, %v4797, -inf
    %4920 = vmax.xlane.f32.xlu0 %v4919
    %v4921 = vpop.xlane.xlu0 %4920
    %v4922 = vsel %vm850, %v4829, -inf
    %4923 = vmax.xlane.f32.xlu0 %v4922
    %v4924 = vpop.xlane.xlu0 %4923
    %v4925 = vsel %vm850, %v4831, -inf
    %4926 = vmax.xlane.f32.xlu0 %v4925
    %v4927 = vpop.xlane.xlu0 %4926
    %v4928 = vsel %vm850, %v4834, -inf
    %4929 = vmax.xlane.f32.xlu0 %v4928
    %v4930 = vpop.xlane.xlu0 %4929
    %v4931 = vsel %vm850, %v4836, -inf
    %4932 = vmax.xlane.f32.xlu0 %v4931
    %v4933 = vpop.xlane.xlu0 %4932
    %v4934 = vsub.f32 %v4556, %v4840
    %v4935 = vsub.f32 %v4558, %v4843
    %v4936 = vsub.f32 %v4561, %v4846
    %v4937 = vsub.f32 %v4563, %v4849
    %v4938 = vsub.f32 %v4595, %v4852
    %v4939 = vsub.f32 %v4597, %v4855
    %v4940 = vsub.f32 %v4600, %v4858
    %v4941 = vsub.f32 %v4602, %v4861
    %v4942 = vsub.f32 %v4634, %v4864
    %v4943 = vsub.f32 %v4636, %v4867
    %v4944 = vsub.f32 %v4639, %v4870
    %v4945 = vsub.f32 %v4641, %v4873
    %v4946 = vsub.f32 %v4673, %v4876
    %v4947 = vsub.f32 %v4675, %v4879
    %v4948 = vsub.f32 %v4678, %v4882
    %v4949 = vsub.f32 %v4680, %v4885
    %v4950 = vsub.f32 %v4712, %v4888
    %v4951 = vsub.f32 %v4714, %v4891
    %v4952 = vsub.f32 %v4717, %v4894
    %v4953 = vsub.f32 %v4719, %v4897
    %v4954 = vsub.f32 %v4751, %v4900
    %v4955 = vsub.f32 %v4753, %v4903
    %v4956 = vsub.f32 %v4756, %v4906
    %v4957 = vsub.f32 %v4758, %v4909
    %v4958 = vsub.f32 %v4790, %v4912
    %v4959 = vsub.f32 %v4792, %v4915
    %v4960 = vsub.f32 %v4795, %v4918
    %v4961 = vsub.f32 %v4797, %v4921
    %v4962 = vsub.f32 %v4829, %v4924
    %v4963 = vsub.f32 %v4831, %v4927
    %v4964 = vsub.f32 %v4834, %v4930
    %v4965 = vsub.f32 %v4836, %v4933
    %v4966 = vmul.f32 %v4934, 1.442695
    %v4967 = vpow.pop %v4966
    %v4968 = vmul.f32 %v4935, 1.442695
    %v4969 = vpow.pop %v4968
    %v4970 = vmul.f32 %v4936, 1.442695
    %v4971 = vpow.pop %v4970
    %v4972 = vmul.f32 %v4937, 1.442695
    %v4973 = vpow.pop %v4972
    %v4974 = vmul.f32 %v4938, 1.442695
    %v4975 = vpow.pop %v4974
    %v4976 = vmul.f32 %v4939, 1.442695
    %v4977 = vpow.pop %v4976
    %v4978 = vmul.f32 %v4940, 1.442695
    %v4979 = vpow.pop %v4978
    %v4980 = vmul.f32 %v4941, 1.442695
    %v4981 = vpow.pop %v4980
    %v4982 = vmul.f32 %v4942, 1.442695
    %v4983 = vpow.pop %v4982
    %v4984 = vmul.f32 %v4943, 1.442695
    %v4985 = vpow.pop %v4984
    %v4986 = vmul.f32 %v4944, 1.442695
    %v4987 = vpow.pop %v4986
    %v4988 = vmul.f32 %v4945, 1.442695
    %v4989 = vpow.pop %v4988
    %v4990 = vmul.f32 %v4946, 1.442695
    %v4991 = vpow.pop %v4990
    %v4992 = vmul.f32 %v4947, 1.442695
    %v4993 = vpow.pop %v4992
    %v4994 = vmul.f32 %v4948, 1.442695
    %v4995 = vpow.pop %v4994
    %v4996 = vmul.f32 %v4949, 1.442695
    %v4997 = vpow.pop %v4996
    %v4998 = vmul.f32 %v4950, 1.442695
    %v4999 = vpow.pop %v4998
    %v5000 = vmul.f32 %v4951, 1.442695
    %v5001 = vpow.pop %v5000
    %v5002 = vmul.f32 %v4952, 1.442695
    %v5003 = vpow.pop %v5002
    %v5004 = vmul.f32 %v4953, 1.442695
    %v5005 = vpow.pop %v5004
    %v5006 = vmul.f32 %v4954, 1.442695
    %v5007 = vpow.pop %v5006
    %v5008 = vmul.f32 %v4955, 1.442695
    %v5009 = vpow.pop %v5008
    %v5010 = vmul.f32 %v4956, 1.442695
    %v5011 = vpow.pop %v5010
    %v5012 = vmul.f32 %v4957, 1.442695
    %v5013 = vpow.pop %v5012
    %v5014 = vmul.f32 %v4958, 1.442695
    %v5015 = vpow.pop %v5014
    %v5016 = vmul.f32 %v4959, 1.442695
    %v5017 = vpow.pop %v5016
    %v5018 = vmul.f32 %v4960, 1.442695
    %v5019 = vpow.pop %v5018
    %v5020 = vmul.f32 %v4961, 1.442695
    %v5021 = vpow.pop %v5020
    %v5022 = vmul.f32 %v4962, 1.442695
    %v5023 = vpow.pop %v5022
    %v5024 = vmul.f32 %v4963, 1.442695
    %v5025 = vpow.pop %v5024
    %v5026 = vmul.f32 %v4964, 1.442695
    %v5027 = vpow.pop %v5026
    %v5028 = vmul.f32 %v4965, 1.442695
    %v5029 = vpow.pop %v5028
    %v5030 = vsel %vm850, %v4967, 0.0
    %5031 = vadd.xlane.f32.xlu0 %v5030
    %v5032 = vpop.xlane.xlu0 %5031
    %v5033 = vsel %vm850, %v4969, 0.0
    %5034 = vadd.xlane.f32.xlu0 %v5033
    %v5035 = vpop.xlane.xlu0 %5034
    %v5036 = vsel %vm850, %v4971, 0.0
    %5037 = vadd.xlane.f32.xlu0 %v5036
    %v5038 = vpop.xlane.xlu0 %5037
    %v5039 = vsel %vm850, %v4973, 0.0
    %5040 = vadd.xlane.f32.xlu0 %v5039
    %v5041 = vpop.xlane.xlu0 %5040
    %v5042 = vsel %vm850, %v4975, 0.0
    %5043 = vadd.xlane.f32.xlu0 %v5042
    %v5044 = vpop.xlane.xlu0 %5043
    %v5045 = vsel %vm850, %v4977, 0.0
    %5046 = vadd.xlane.f32.xlu0 %v5045
    %v5047 = vpop.xlane.xlu0 %5046
    %v5048 = vsel %vm850, %v4979, 0.0
    %5049 = vadd.xlane.f32.xlu0 %v5048
    %v5050 = vpop.xlane.xlu0 %5049
    %v5051 = vsel %vm850, %v4981, 0.0
    %5052 = vadd.xlane.f32.xlu0 %v5051
    %v5053 = vpop.xlane.xlu0 %5052
    %v5054 = vsel %vm850, %v4983, 0.0
    %5055 = vadd.xlane.f32.xlu0 %v5054
    %v5056 = vpop.xlane.xlu0 %5055
    %v5057 = vsel %vm850, %v4985, 0.0
    %5058 = vadd.xlane.f32.xlu0 %v5057
    %v5059 = vpop.xlane.xlu0 %5058
    %v5060 = vsel %vm850, %v4987, 0.0
    %5061 = vadd.xlane.f32.xlu0 %v5060
    %v5062 = vpop.xlane.xlu0 %5061
    %v5063 = vsel %vm850, %v4989, 0.0
    %5064 = vadd.xlane.f32.xlu0 %v5063
    %v5065 = vpop.xlane.xlu0 %5064
    %v5066 = vsel %vm850, %v4991, 0.0
    %5067 = vadd.xlane.f32.xlu0 %v5066
    %v5068 = vpop.xlane.xlu0 %5067
    %v5069 = vsel %vm850, %v4993, 0.0
    %5070 = vadd.xlane.f32.xlu0 %v5069
    %v5071 = vpop.xlane.xlu0 %5070
    %v5072 = vsel %vm850, %v4995, 0.0
    %5073 = vadd.xlane.f32.xlu0 %v5072
    %v5074 = vpop.xlane.xlu0 %5073
    %v5075 = vsel %vm850, %v4997, 0.0
    %5076 = vadd.xlane.f32.xlu0 %v5075
    %v5077 = vpop.xlane.xlu0 %5076
    %v5078 = vsel %vm850, %v4999, 0.0
    %5079 = vadd.xlane.f32.xlu0 %v5078
    %v5080 = vpop.xlane.xlu0 %5079
    %v5081 = vsel %vm850, %v5001, 0.0
    %5082 = vadd.xlane.f32.xlu0 %v5081
    %v5083 = vpop.xlane.xlu0 %5082
    %v5084 = vsel %vm850, %v5003, 0.0
    %5085 = vadd.xlane.f32.xlu0 %v5084
    %v5086 = vpop.xlane.xlu0 %5085
    %v5087 = vsel %vm850, %v5005, 0.0
    %5088 = vadd.xlane.f32.xlu0 %v5087
    %v5089 = vpop.xlane.xlu0 %5088
    %v5090 = vsel %vm850, %v5007, 0.0
    %5091 = vadd.xlane.f32.xlu0 %v5090
    %v5092 = vpop.xlane.xlu0 %5091
    %v5093 = vsel %vm850, %v5009, 0.0
    %5094 = vadd.xlane.f32.xlu0 %v5093
    %v5095 = vpop.xlane.xlu0 %5094
    %v5096 = vsel %vm850, %v5011, 0.0
    %5097 = vadd.xlane.f32.xlu0 %v5096
    %v5098 = vpop.xlane.xlu0 %5097
    %v5099 = vsel %vm850, %v5013, 0.0
    %5100 = vadd.xlane.f32.xlu0 %v5099
    %v5101 = vpop.xlane.xlu0 %5100
    %v5102 = vsel %vm850, %v5015, 0.0
    %5103 = vadd.xlane.f32.xlu0 %v5102
    %v5104 = vpop.xlane.xlu0 %5103
    %v5105 = vsel %vm850, %v5017, 0.0
    %5106 = vadd.xlane.f32.xlu0 %v5105
    %v5107 = vpop.xlane.xlu0 %5106
    %v5108 = vsel %vm850, %v5019, 0.0
    %5109 = vadd.xlane.f32.xlu0 %v5108
    %v5110 = vpop.xlane.xlu0 %5109
    %v5111 = vsel %vm850, %v5021, 0.0
    %5112 = vadd.xlane.f32.xlu0 %v5111
    %v5113 = vpop.xlane.xlu0 %5112
    %v5114 = vsel %vm850, %v5023, 0.0
    %5115 = vadd.xlane.f32.xlu0 %v5114
    %v5116 = vpop.xlane.xlu0 %5115
    %v5117 = vsel %vm850, %v5025, 0.0
    %5118 = vadd.xlane.f32.xlu0 %v5117
    %v5119 = vpop.xlane.xlu0 %5118
    %v5120 = vsel %vm850, %v5027, 0.0
    %5121 = vadd.xlane.f32.xlu0 %v5120
    %v5122 = vpop.xlane.xlu0 %5121
    %v5123 = vsel %vm850, %v5029, 0.0
    %5124 = vadd.xlane.f32.xlu0 %v5123
    %v5125 = vpop.xlane.xlu0 %5124
    %v5126 = vrcp.pop %v5032
    %v5127 = vrcp.pop %v5035
    %v5128 = vrcp.pop %v5038
    %v5129 = vrcp.pop %v5041
    %v5130 = vrcp.pop %v5044
    %v5131 = vrcp.pop %v5047
    %v5132 = vrcp.pop %v5050
    %v5133 = vrcp.pop %v5053
    %v5134 = vrcp.pop %v5056
    %v5135 = vrcp.pop %v5059
    %v5136 = vrcp.pop %v5062
    %v5137 = vrcp.pop %v5065
    %v5138 = vrcp.pop %v5068
    %v5139 = vrcp.pop %v5071
    %v5140 = vrcp.pop %v5074
    %v5141 = vrcp.pop %v5077
    %v5142 = vrcp.pop %v5080
    %v5143 = vrcp.pop %v5083
    %v5144 = vrcp.pop %v5086
    %v5145 = vrcp.pop %v5089
    %v5146 = vrcp.pop %v5092
    %v5147 = vrcp.pop %v5095
    %v5148 = vrcp.pop %v5098
    %v5149 = vrcp.pop %v5101
    %v5150 = vrcp.pop %v5104
    %v5151 = vrcp.pop %v5107
    %v5152 = vrcp.pop %v5110
    %v5153 = vrcp.pop %v5113
    %v5154 = vrcp.pop %v5116
    %v5155 = vrcp.pop %v5119
    %v5156 = vrcp.pop %v5122
    %v5157 = vrcp.pop %v5125
    %v5158 = vmul.f32 %v4967, %v5126
    %v5159 = vmul.f32 %v4969, %v5127
    %v5160 = vmul.f32 %v4971, %v5128
    %v5161 = vmul.f32 %v4973, %v5129
    %v5162 = vmul.f32 %v4975, %v5130
    %v5163 = vmul.f32 %v4977, %v5131
    %v5164 = vmul.f32 %v4979, %v5132
    %v5165 = vmul.f32 %v4981, %v5133
    %v5166 = vmul.f32 %v4983, %v5134
    %v5167 = vmul.f32 %v4985, %v5135
    %v5168 = vmul.f32 %v4987, %v5136
    %v5169 = vmul.f32 %v4989, %v5137
    %v5170 = vmul.f32 %v4991, %v5138
    %v5171 = vmul.f32 %v4993, %v5139
    %v5172 = vmul.f32 %v4995, %v5140
    %v5173 = vmul.f32 %v4997, %v5141
    %v5174 = vmul.f32 %v4999, %v5142
    %v5175 = vmul.f32 %v5001, %v5143
    %v5176 = vmul.f32 %v5003, %v5144
    %v5177 = vmul.f32 %v5005, %v5145
    %v5178 = vmul.f32 %v5007, %v5146
    %v5179 = vmul.f32 %v5009, %v5147
    %v5180 = vmul.f32 %v5011, %v5148
    %v5181 = vmul.f32 %v5013, %v5149
    %v5182 = vmul.f32 %v5015, %v5150
    %v5183 = vmul.f32 %v5017, %v5151
    %v5184 = vmul.f32 %v5019, %v5152
    %v5185 = vmul.f32 %v5021, %v5153
    %v5186 = vmul.f32 %v5023, %v5154
    %v5187 = vmul.f32 %v5025, %v5155
    %v5188 = vmul.f32 %v5027, %v5156
    %v5189 = vmul.f32 %v5029, %v5157
    %v5190 = vpack.c.bf16 %v5158, %v5158
    %v5191 = vpack.c.bf16 %v5159, %v5159
    %v5192 = vpack.c.bf16 %v5160, %v5160
    %v5193 = vpack.c.bf16 %v5161, %v5161
    %v5194 = vpack.c.bf16 %v5162, %v5162
    %v5195 = vpack.c.bf16 %v5163, %v5163
    %v5196 = vpack.c.bf16 %v5164, %v5164
    %v5197 = vpack.c.bf16 %v5165, %v5165
    %v5198 = vpack.c.bf16 %v5166, %v5166
    %v5199 = vpack.c.bf16 %v5167, %v5167
    %v5200 = vpack.c.bf16 %v5168, %v5168
    %v5201 = vpack.c.bf16 %v5169, %v5169
    %v5202 = vpack.c.bf16 %v5170, %v5170
    %v5203 = vpack.c.bf16 %v5171, %v5171
    %v5204 = vpack.c.bf16 %v5172, %v5172
    %v5205 = vpack.c.bf16 %v5173, %v5173
    %v5206 = vpack.c.bf16 %v5174, %v5174
    %v5207 = vpack.c.bf16 %v5175, %v5175
    %v5208 = vpack.c.bf16 %v5176, %v5176
    %v5209 = vpack.c.bf16 %v5177, %v5177
    %v5210 = vpack.c.bf16 %v5178, %v5178
    %v5211 = vpack.c.bf16 %v5179, %v5179
    %v5212 = vpack.c.bf16 %v5180, %v5180
    %v5213 = vpack.c.bf16 %v5181, %v5181
    %v5214 = vpack.c.bf16 %v5182, %v5182
    %v5215 = vpack.c.bf16 %v5183, %v5183
    %v5216 = vpack.c.bf16 %v5184, %v5184
    %v5217 = vpack.c.bf16 %v5185, %v5185
    %v5218 = vpack.c.bf16 %v5186, %v5186
    %v5219 = vpack.c.bf16 %v5187, %v5187
    %v5220 = vpack.c.bf16 %v5188, %v5188
    %v5221 = vpack.c.bf16 %v5189, %v5189
    %v5226 = vunpack.c.l.b16 %v5190
    %v5227 = vunpack.c.l.b16 %v5191
    %v5228 = vunpack.c.l.b16 %v5192
    %v5229 = vunpack.c.l.b16 %v5193
    %v5230 = vpack.c.b16 %v5227, %v5226
    %v5231 = vpack.c.b16 %v5229, %v5228
    %v5232 = vunpack.c.l.b16 %v4494
    %v5233 = vunpack.c.l.b16 %v4495
    %v5234 = vunpack.c.l.b16 %v4496
    %v5235 = vunpack.c.l.b16 %v4497
    %v5236 = vpack.c.b16 %v5233, %v5232
    %v5237 = vpack.c.b16 %v5235, %v5234
    %v5241 = vsel %vm850, %v5230, 0
    %v5244 = vsel %vm850, %v5231, 0
    %5246 = vmatpush.bf16.msra.mxu0 0
    %5247 = vmatpush.bf16.msra.mxu0 0
    %5248 = vmatpush.bf16.msra.mxu0 0
    %5249 = vmatpush.bf16.msra.mxu0 0
    %5250 = vmatpush.bf16.msra.mxu0 0
    %5251 = vmatpush.bf16.msra.mxu0 0
    %5252 = vmatpush.bf16.msra.mxu0 %v5237
    %5253 = vmatpush.bf16.msra.mxu0 %v5236
    %5254 = vmatmul.bf16.gmra.mxu0 %v5241
    %v5255 = vpop.f32.mrf.mxu0
    %v5256 = vadd.f32 0.0, %v5255
    %v5257 = vpop.f32.mrf.mxu0
    %v5258 = vadd.f32 0.0, %v5257
    %5259 = vmatmul.bf16.gmra.mxu0 %v5244
    %v5260 = vpop.f32.mrf.mxu0
    %v5261 = vadd.f32 0.0, %v5260
    %v5262 = vpop.f32.mrf.mxu0
    %v5263 = vadd.f32 0.0, %v5262
    %5264 = vdwg.mxu0
    %v5269 = vunpack.c.l.b16 %v5194
    %v5270 = vunpack.c.l.b16 %v5195
    %v5271 = vunpack.c.l.b16 %v5196
    %v5272 = vunpack.c.l.b16 %v5197
    %v5273 = vpack.c.b16 %v5270, %v5269
    %v5274 = vpack.c.b16 %v5272, %v5271
    %v5275 = vunpack.c.l.b16 %v4498
    %v5276 = vunpack.c.l.b16 %v4499
    %v5277 = vunpack.c.l.b16 %v4500
    %v5278 = vunpack.c.l.b16 %v4501
    %v5279 = vpack.c.b16 %v5276, %v5275
    %v5280 = vpack.c.b16 %v5278, %v5277
    %v5284 = vsel %vm850, %v5273, 0
    %v5287 = vsel %vm850, %v5274, 0
    %5289 = vmatpush.bf16.msra.mxu0 0
    %5290 = vmatpush.bf16.msra.mxu0 0
    %5291 = vmatpush.bf16.msra.mxu0 0
    %5292 = vmatpush.bf16.msra.mxu0 0
    %5293 = vmatpush.bf16.msra.mxu0 0
    %5294 = vmatpush.bf16.msra.mxu0 0
    %5295 = vmatpush.bf16.msra.mxu0 %v5280
    %5296 = vmatpush.bf16.msra.mxu0 %v5279
    %5297 = vmatmul.bf16.gmra.mxu0 %v5284
    %v5298 = vpop.f32.mrf.mxu0
    %v5299 = vadd.f32 0.0, %v5298
    %v5300 = vpop.f32.mrf.mxu0
    %v5301 = vadd.f32 0.0, %v5300
    %5302 = vmatmul.bf16.gmra.mxu0 %v5287
    %v5303 = vpop.f32.mrf.mxu0
    %v5304 = vadd.f32 0.0, %v5303
    %v5305 = vpop.f32.mrf.mxu0
    %v5306 = vadd.f32 0.0, %v5305
    %5307 = vdwg.mxu0
    %v5312 = vunpack.c.l.b16 %v5198
    %v5313 = vunpack.c.l.b16 %v5199
    %v5314 = vunpack.c.l.b16 %v5200
    %v5315 = vunpack.c.l.b16 %v5201
    %v5316 = vpack.c.b16 %v5313, %v5312
    %v5317 = vpack.c.b16 %v5315, %v5314
    %v5318 = vunpack.c.l.b16 %v4502
    %v5319 = vunpack.c.l.b16 %v4503
    %v5320 = vunpack.c.l.b16 %v4504
    %v5321 = vunpack.c.l.b16 %v4505
    %v5322 = vpack.c.b16 %v5319, %v5318
    %v5323 = vpack.c.b16 %v5321, %v5320
    %v5327 = vsel %vm850, %v5316, 0
    %v5330 = vsel %vm850, %v5317, 0
    %5332 = vmatpush.bf16.msra.mxu0 0
    %5333 = vmatpush.bf16.msra.mxu0 0
    %5334 = vmatpush.bf16.msra.mxu0 0
    %5335 = vmatpush.bf16.msra.mxu0 0
    %5336 = vmatpush.bf16.msra.mxu0 0
    %5337 = vmatpush.bf16.msra.mxu0 0
    %5338 = vmatpush.bf16.msra.mxu0 %v5323
    %5339 = vmatpush.bf16.msra.mxu0 %v5322
    %5340 = vmatmul.bf16.gmra.mxu0 %v5327
    %v5341 = vpop.f32.mrf.mxu0
    %v5342 = vadd.f32 0.0, %v5341
    %v5343 = vpop.f32.mrf.mxu0
    %v5344 = vadd.f32 0.0, %v5343
    %5345 = vmatmul.bf16.gmra.mxu0 %v5330
    %v5346 = vpop.f32.mrf.mxu0
    %v5347 = vadd.f32 0.0, %v5346
    %v5348 = vpop.f32.mrf.mxu0
    %v5349 = vadd.f32 0.0, %v5348
    %5350 = vdwg.mxu0
    %v5355 = vunpack.c.l.b16 %v5202
    %v5356 = vunpack.c.l.b16 %v5203
    %v5357 = vunpack.c.l.b16 %v5204
    %v5358 = vunpack.c.l.b16 %v5205
    %v5359 = vpack.c.b16 %v5356, %v5355
    %v5360 = vpack.c.b16 %v5358, %v5357
    %v5361 = vunpack.c.l.b16 %v4506
    %v5362 = vunpack.c.l.b16 %v4507
    %v5363 = vunpack.c.l.b16 %v4508
    %v5364 = vunpack.c.l.b16 %v4509
    %v5365 = vpack.c.b16 %v5362, %v5361
    %v5366 = vpack.c.b16 %v5364, %v5363
    %v5370 = vsel %vm850, %v5359, 0
    %v5373 = vsel %vm850, %v5360, 0
    %5375 = vmatpush.bf16.msra.mxu0 0
    %5376 = vmatpush.bf16.msra.mxu0 0
    %5377 = vmatpush.bf16.msra.mxu0 0
    %5378 = vmatpush.bf16.msra.mxu0 0
    %5379 = vmatpush.bf16.msra.mxu0 0
    %5380 = vmatpush.bf16.msra.mxu0 0
    %5381 = vmatpush.bf16.msra.mxu0 %v5366
    %5382 = vmatpush.bf16.msra.mxu0 %v5365
    %5383 = vmatmul.bf16.gmra.mxu0 %v5370
    %v5384 = vpop.f32.mrf.mxu0
    %v5385 = vadd.f32 0.0, %v5384
    %v5386 = vpop.f32.mrf.mxu0
    %v5387 = vadd.f32 0.0, %v5386
    %5388 = vmatmul.bf16.gmra.mxu0 %v5373
    %v5389 = vpop.f32.mrf.mxu0
    %v5390 = vadd.f32 0.0, %v5389
    %v5391 = vpop.f32.mrf.mxu0
    %v5392 = vadd.f32 0.0, %v5391
    %5393 = vdwg.mxu0
    %v5398 = vunpack.c.l.b16 %v5206
    %v5399 = vunpack.c.l.b16 %v5207
    %v5400 = vunpack.c.l.b16 %v5208
    %v5401 = vunpack.c.l.b16 %v5209
    %v5402 = vpack.c.b16 %v5399, %v5398
    %v5403 = vpack.c.b16 %v5401, %v5400
    %v5404 = vunpack.c.l.b16 %v4510
    %v5405 = vunpack.c.l.b16 %v4511
    %v5406 = vunpack.c.l.b16 %v4512
    %v5407 = vunpack.c.l.b16 %v4513
    %v5408 = vpack.c.b16 %v5405, %v5404
    %v5409 = vpack.c.b16 %v5407, %v5406
    %v5413 = vsel %vm850, %v5402, 0
    %v5416 = vsel %vm850, %v5403, 0
    %5418 = vmatpush.bf16.msra.mxu0 0
    %5419 = vmatpush.bf16.msra.mxu0 0
    %5420 = vmatpush.bf16.msra.mxu0 0
    %5421 = vmatpush.bf16.msra.mxu0 0
    %5422 = vmatpush.bf16.msra.mxu0 0
    %5423 = vmatpush.bf16.msra.mxu0 0
    %5424 = vmatpush.bf16.msra.mxu0 %v5409
    %5425 = vmatpush.bf16.msra.mxu0 %v5408
    %5426 = vmatmul.bf16.gmra.mxu0 %v5413
    %v5427 = vpop.f32.mrf.mxu0
    %v5428 = vadd.f32 0.0, %v5427
    %v5429 = vpop.f32.mrf.mxu0
    %v5430 = vadd.f32 0.0, %v5429
    %5431 = vmatmul.bf16.gmra.mxu0 %v5416
    %v5432 = vpop.f32.mrf.mxu0
    %v5433 = vadd.f32 0.0, %v5432
    %v5434 = vpop.f32.mrf.mxu0
    %v5435 = vadd.f32 0.0, %v5434
    %5436 = vdwg.mxu0
    %v5441 = vunpack.c.l.b16 %v5210
    %v5442 = vunpack.c.l.b16 %v5211
    %v5443 = vunpack.c.l.b16 %v5212
    %v5444 = vunpack.c.l.b16 %v5213
    %v5445 = vpack.c.b16 %v5442, %v5441
    %v5446 = vpack.c.b16 %v5444, %v5443
    %v5447 = vunpack.c.l.b16 %v4514
    %v5448 = vunpack.c.l.b16 %v4515
    %v5449 = vunpack.c.l.b16 %v4516
    %v5450 = vunpack.c.l.b16 %v4517
    %v5451 = vpack.c.b16 %v5448, %v5447
    %v5452 = vpack.c.b16 %v5450, %v5449
    %v5456 = vsel %vm850, %v5445, 0
    %v5459 = vsel %vm850, %v5446, 0
    %5461 = vmatpush.bf16.msra.mxu0 0
    %5462 = vmatpush.bf16.msra.mxu0 0
    %5463 = vmatpush.bf16.msra.mxu0 0
    %5464 = vmatpush.bf16.msra.mxu0 0
    %5465 = vmatpush.bf16.msra.mxu0 0
    %5466 = vmatpush.bf16.msra.mxu0 0
    %5467 = vmatpush.bf16.msra.mxu0 %v5452
    %5468 = vmatpush.bf16.msra.mxu0 %v5451
    %5469 = vmatmul.bf16.gmra.mxu0 %v5456
    %v5470 = vpop.f32.mrf.mxu0
    %v5471 = vadd.f32 0.0, %v5470
    %v5472 = vpop.f32.mrf.mxu0
    %v5473 = vadd.f32 0.0, %v5472
    %5474 = vmatmul.bf16.gmra.mxu0 %v5459
    %v5475 = vpop.f32.mrf.mxu0
    %v5476 = vadd.f32 0.0, %v5475
    %v5477 = vpop.f32.mrf.mxu0
    %v5478 = vadd.f32 0.0, %v5477
    %5479 = vdwg.mxu0
    %v5484 = vunpack.c.l.b16 %v5214
    %v5485 = vunpack.c.l.b16 %v5215
    %v5486 = vunpack.c.l.b16 %v5216
    %v5487 = vunpack.c.l.b16 %v5217
    %v5488 = vpack.c.b16 %v5485, %v5484
    %v5489 = vpack.c.b16 %v5487, %v5486
    %v5490 = vunpack.c.l.b16 %v4518
    %v5491 = vunpack.c.l.b16 %v4519
    %v5492 = vunpack.c.l.b16 %v4520
    %v5493 = vunpack.c.l.b16 %v4521
    %v5494 = vpack.c.b16 %v5491, %v5490
    %v5495 = vpack.c.b16 %v5493, %v5492
    %v5499 = vsel %vm850, %v5488, 0
    %v5502 = vsel %vm850, %v5489, 0
    %5504 = vmatpush.bf16.msra.mxu0 0
    %5505 = vmatpush.bf16.msra.mxu0 0
    %5506 = vmatpush.bf16.msra.mxu0 0
    %5507 = vmatpush.bf16.msra.mxu0 0
    %5508 = vmatpush.bf16.msra.mxu0 0
    %5509 = vmatpush.bf16.msra.mxu0 0
    %5510 = vmatpush.bf16.msra.mxu0 %v5495
    %5511 = vmatpush.bf16.msra.mxu0 %v5494
    %5512 = vmatmul.bf16.gmra.mxu0 %v5499
    %v5513 = vpop.f32.mrf.mxu0
    %v5514 = vadd.f32 0.0, %v5513
    %v5515 = vpop.f32.mrf.mxu0
    %v5516 = vadd.f32 0.0, %v5515
    %5517 = vmatmul.bf16.gmra.mxu0 %v5502
    %v5518 = vpop.f32.mrf.mxu0
    %v5519 = vadd.f32 0.0, %v5518
    %v5520 = vpop.f32.mrf.mxu0
    %v5521 = vadd.f32 0.0, %v5520
    %5522 = vdwg.mxu0
    %v5527 = vunpack.c.l.b16 %v5218
    %v5528 = vunpack.c.l.b16 %v5219
    %v5529 = vunpack.c.l.b16 %v5220
    %v5530 = vunpack.c.l.b16 %v5221
    %v5531 = vpack.c.b16 %v5528, %v5527
    %v5532 = vpack.c.b16 %v5530, %v5529
    %v5533 = vunpack.c.l.b16 %v4522
    %v5534 = vunpack.c.l.b16 %v4523
    %v5535 = vunpack.c.l.b16 %v4524
    %v5536 = vunpack.c.l.b16 %v4525
    %v5537 = vpack.c.b16 %v5534, %v5533
    %v5538 = vpack.c.b16 %v5536, %v5535
    %v5542 = vsel %vm850, %v5531, 0
    %v5545 = vsel %vm850, %v5532, 0
    %5547 = vmatpush.bf16.msra.mxu0 0
    %5548 = vmatpush.bf16.msra.mxu0 0
    %5549 = vmatpush.bf16.msra.mxu0 0
    %5550 = vmatpush.bf16.msra.mxu0 0
    %5551 = vmatpush.bf16.msra.mxu0 0
    %5552 = vmatpush.bf16.msra.mxu0 0
    %5553 = vmatpush.bf16.msra.mxu0 %v5538
    %5554 = vmatpush.bf16.msra.mxu0 %v5537
    %5555 = vmatmul.bf16.gmra.mxu0 %v5542
    %v5556 = vpop.f32.mrf.mxu0
    %v5557 = vadd.f32 0.0, %v5556
    %v5558 = vpop.f32.mrf.mxu0
    %v5559 = vadd.f32 0.0, %v5558
    %5560 = vmatmul.bf16.gmra.mxu0 %v5545
    %v5561 = vpop.f32.mrf.mxu0
    %v5562 = vadd.f32 0.0, %v5561
    %v5563 = vpop.f32.mrf.mxu0
    %v5564 = vadd.f32 0.0, %v5563
    %5565 = vdwg.mxu0
    %v5566 = vpack.c.bf16 %v5258, %v5256
    %v5567 = vpack.c.bf16 %v5263, %v5261
    %v5568 = vpack.c.bf16 %v5301, %v5299
    %v5569 = vpack.c.bf16 %v5306, %v5304
    %v5570 = vpack.c.bf16 %v5344, %v5342
    %v5571 = vpack.c.bf16 %v5349, %v5347
    %v5572 = vpack.c.bf16 %v5387, %v5385
    %v5573 = vpack.c.bf16 %v5392, %v5390
    %v5574 = vpack.c.bf16 %v5430, %v5428
    %v5575 = vpack.c.bf16 %v5435, %v5433
    %v5576 = vpack.c.bf16 %v5473, %v5471
    %v5577 = vpack.c.bf16 %v5478, %v5476
    %v5578 = vpack.c.bf16 %v5516, %v5514
    %v5579 = vpack.c.bf16 %v5521, %v5519
    %v5580 = vpack.c.bf16 %v5559, %v5557
    %v5581 = vpack.c.bf16 %v5564, %v5562
    %v5582 = vld [vmem:[%s2 + $0x18] sm:$0xf]
    %v5583 = vld [vmem:[%s2 + $0x1c] sm:$0xf]
    %v5586 = vunpack.c.l.b16 %v5582
    %v5587 = vunpack.c.l.b16 %v5583
    %v5588 = vpack.c.b16 %v5587, %v5586
    %v5591 = vsel %vm531, %v5566, 0
    %v5594 = vsel %vm531, %v5567, 0
    %v5597 = vsel %vm531, %v5568, 0
    %v5600 = vsel %vm531, %v5569, 0
    %v5603 = vsel %vm531, %v5570, 0
    %v5606 = vsel %vm531, %v5571, 0
    %v5609 = vsel %vm531, %v5572, 0
    %v5612 = vsel %vm531, %v5573, 0
    %v5615 = vsel %vm531, %v5574, 0
    %v5618 = vsel %vm531, %v5575, 0
    %v5621 = vsel %vm531, %v5576, 0
    %v5624 = vsel %vm531, %v5577, 0
    %v5627 = vsel %vm531, %v5578, 0
    %v5630 = vsel %vm531, %v5579, 0
    %v5633 = vsel %vm531, %v5580, 0
    %v5636 = vsel %vm531, %v5581, 0
    %5638 = vmatpush.bf16.msra.mxu0 0
    %5639 = vmatpush.bf16.msra.mxu0 0
    %5640 = vmatpush.bf16.msra.mxu0 0
    %5641 = vmatpush.bf16.msra.mxu0 0
    %5642 = vmatpush.bf16.msra.mxu0 0
    %5643 = vmatpush.bf16.msra.mxu0 0
    %5644 = vmatpush.bf16.msra.mxu0 0
    %5645 = vmatpush.bf16.msra.mxu0 %v5588
    %5646 = vmatmul.bf16.gmra.mxu0 %v5591
    %v5647 = vpop.f32.mrf.mxu0
    %v5648 = vadd.f32 0.0, %v5647
    %v5649 = vpop.f32.mrf.mxu0
    %v5650 = vadd.f32 0.0, %v5649
    %5651 = vmatmul.bf16.gmra.mxu0 %v5594
    %v5652 = vpop.f32.mrf.mxu0
    %v5653 = vadd.f32 0.0, %v5652
    %v5654 = vpop.f32.mrf.mxu0
    %v5655 = vadd.f32 0.0, %v5654
    %5656 = vmatmul.bf16.gmra.mxu0 %v5597
    %v5657 = vpop.f32.mrf.mxu0
    %v5658 = vadd.f32 0.0, %v5657
    %v5659 = vpop.f32.mrf.mxu0
    %v5660 = vadd.f32 0.0, %v5659
    %5661 = vmatmul.bf16.gmra.mxu0 %v5600
    %v5662 = vpop.f32.mrf.mxu0
    %v5663 = vadd.f32 0.0, %v5662
    %v5664 = vpop.f32.mrf.mxu0
    %v5665 = vadd.f32 0.0, %v5664
    %5666 = vmatmul.bf16.gmra.mxu0 %v5603
    %v5667 = vpop.f32.mrf.mxu0
    %v5668 = vadd.f32 0.0, %v5667
    %v5669 = vpop.f32.mrf.mxu0
    %v5670 = vadd.f32 0.0, %v5669
    %5671 = vmatmul.bf16.gmra.mxu0 %v5606
    %v5672 = vpop.f32.mrf.mxu0
    %v5673 = vadd.f32 0.0, %v5672
    %v5674 = vpop.f32.mrf.mxu0
    %v5675 = vadd.f32 0.0, %v5674
    %5676 = vmatmul.bf16.gmra.mxu0 %v5609
    %v5677 = vpop.f32.mrf.mxu0
    %v5678 = vadd.f32 0.0, %v5677
    %v5679 = vpop.f32.mrf.mxu0
    %v5680 = vadd.f32 0.0, %v5679
    %5681 = vmatmul.bf16.gmra.mxu0 %v5612
    %v5682 = vpop.f32.mrf.mxu0
    %v5683 = vadd.f32 0.0, %v5682
    %v5684 = vpop.f32.mrf.mxu0
    %v5685 = vadd.f32 0.0, %v5684
    %5686 = vmatmul.bf16.gmra.mxu0 %v5615
    %v5687 = vpop.f32.mrf.mxu0
    %v5688 = vadd.f32 0.0, %v5687
    %v5689 = vpop.f32.mrf.mxu0
    %v5690 = vadd.f32 0.0, %v5689
    %5691 = vmatmul.bf16.gmra.mxu0 %v5618
    %v5692 = vpop.f32.mrf.mxu0
    %v5693 = vadd.f32 0.0, %v5692
    %v5694 = vpop.f32.mrf.mxu0
    %v5695 = vadd.f32 0.0, %v5694
    %5696 = vmatmul.bf16.gmra.mxu0 %v5621
    %v5697 = vpop.f32.mrf.mxu0
    %v5698 = vadd.f32 0.0, %v5697
    %v5699 = vpop.f32.mrf.mxu0
    %v5700 = vadd.f32 0.0, %v5699
    %5701 = vmatmul.bf16.gmra.mxu0 %v5624
    %v5702 = vpop.f32.mrf.mxu0
    %v5703 = vadd.f32 0.0, %v5702
    %v5704 = vpop.f32.mrf.mxu0
    %v5705 = vadd.f32 0.0, %v5704
    %5706 = vmatmul.bf16.gmra.mxu0 %v5627
    %v5707 = vpop.f32.mrf.mxu0
    %v5708 = vadd.f32 0.0, %v5707
    %v5709 = vpop.f32.mrf.mxu0
    %v5710 = vadd.f32 0.0, %v5709
    %5711 = vmatmul.bf16.gmra.mxu0 %v5630
    %v5712 = vpop.f32.mrf.mxu0
    %v5713 = vadd.f32 0.0, %v5712
    %v5714 = vpop.f32.mrf.mxu0
    %v5715 = vadd.f32 0.0, %v5714
    %5716 = vmatmul.bf16.gmra.mxu0 %v5633
    %v5717 = vpop.f32.mrf.mxu0
    %v5718 = vadd.f32 0.0, %v5717
    %v5719 = vpop.f32.mrf.mxu0
    %v5720 = vadd.f32 0.0, %v5719
    %5721 = vmatmul.bf16.gmra.mxu0 %v5636
    %v5722 = vpop.f32.mrf.mxu0
    %v5723 = vadd.f32 0.0, %v5722
    %v5724 = vpop.f32.mrf.mxu0
    %v5725 = vadd.f32 0.0, %v5724
    %5726 = vdwg.mxu0
    %v5727 = vadd.f32 %v4398, %v5648
    %v5728 = vadd.f32 %v4399, %v5650
    %v5729 = vadd.f32 %v4400, %v5653
    %v5730 = vadd.f32 %v4401, %v5655
    %v5731 = vadd.f32 %v4402, %v5658
    %v5732 = vadd.f32 %v4403, %v5660
    %v5733 = vadd.f32 %v4404, %v5663
    %v5734 = vadd.f32 %v4405, %v5665
    %v5735 = vadd.f32 %v4406, %v5668
    %v5736 = vadd.f32 %v4407, %v5670
    %v5737 = vadd.f32 %v4408, %v5673
    %v5738 = vadd.f32 %v4409, %v5675
    %v5739 = vadd.f32 %v4410, %v5678
    %v5740 = vadd.f32 %v4411, %v5680
    %v5741 = vadd.f32 %v4412, %v5683
    %v5742 = vadd.f32 %v4413, %v5685
    %v5743 = vadd.f32 %v4414, %v5688
    %v5744 = vadd.f32 %v4415, %v5690
    %v5745 = vadd.f32 %v4416, %v5693
    %v5746 = vadd.f32 %v4417, %v5695
    %v5747 = vadd.f32 %v4418, %v5698
    %v5748 = vadd.f32 %v4419, %v5700
    %v5749 = vadd.f32 %v4420, %v5703
    %v5750 = vadd.f32 %v4421, %v5705
    %v5751 = vadd.f32 %v4422, %v5708
    %v5752 = vadd.f32 %v4423, %v5710
    %v5753 = vadd.f32 %v4424, %v5713
    %v5754 = vadd.f32 %v4425, %v5715
    %v5755 = vadd.f32 %v4426, %v5718
    %v5756 = vadd.f32 %v4427, %v5720
    %v5757 = vadd.f32 %v4428, %v5723
    %v5758 = vadd.f32 %v4429, %v5725
    %5759 = vst.msk [vmem:[#allocation2] sm:$0xff] %vm179, %v5727
    %5760 = vst.msk [vmem:[#allocation2 + $0x8] sm:$0xff] %vm179, %v5728
    %5761 = vst.msk [vmem:[#allocation2 + $0x10] sm:$0xff] %vm179, %v5729
    %5762 = vst.msk [vmem:[#allocation2 + $0x18] sm:$0xff] %vm179, %v5730
    %5763 = vst.msk [vmem:[#allocation2 + $0x20] sm:$0xff] %vm179, %v5731
    %5764 = vst.msk [vmem:[#allocation2 + $0x28] sm:$0xff] %vm179, %v5732
    %5765 = vst.msk [vmem:[#allocation2 + $0x30] sm:$0xff] %vm179, %v5733
    %5766 = vst.msk [vmem:[#allocation2 + $0x38] sm:$0xff] %vm179, %v5734
    %5767 = vst.msk [vmem:[#allocation2 + $0x40] sm:$0xff] %vm179, %v5735
    %5768 = vst.msk [vmem:[#allocation2 + $0x48] sm:$0xff] %vm179, %v5736
    %5769 = vst.msk [vmem:[#allocation2 + $0x50] sm:$0xff] %vm179, %v5737
    %5770 = vst.msk [vmem:[#allocation2 + $0x58] sm:$0xff] %vm179, %v5738
    %5771 = vst.msk [vmem:[#allocation2 + $0x60] sm:$0xff] %vm179, %v5739
    %5772 = vst.msk [vmem:[#allocation2 + $0x68] sm:$0xff] %vm179, %v5740
    %5773 = vst.msk [vmem:[#allocation2 + $0x70] sm:$0xff] %vm179, %v5741
    %5774 = vst.msk [vmem:[#allocation2 + $0x78] sm:$0xff] %vm179, %v5742
    %5775 = vst.msk [vmem:[#allocation2 + $0x80] sm:$0xff] %vm179, %v5743
    %5776 = vst.msk [vmem:[#allocation2 + $0x88] sm:$0xff] %vm179, %v5744
    %5777 = vst.msk [vmem:[#allocation2 + $0x90] sm:$0xff] %vm179, %v5745
    %5778 = vst.msk [vmem:[#allocation2 + $0x98] sm:$0xff] %vm179, %v5746
    %5779 = vst.msk [vmem:[#allocation2 + $0xa0] sm:$0xff] %vm179, %v5747
    %5780 = vst.msk [vmem:[#allocation2 + $0xa8] sm:$0xff] %vm179, %v5748
    %5781 = vst.msk [vmem:[#allocation2 + $0xb0] sm:$0xff] %vm179, %v5749
    %5782 = vst.msk [vmem:[#allocation2 + $0xb8] sm:$0xff] %vm179, %v5750
    %5783 = vst.msk [vmem:[#allocation2 + $0xc0] sm:$0xff] %vm179, %v5751
    %5784 = vst.msk [vmem:[#allocation2 + $0xc8] sm:$0xff] %vm179, %v5752
    %5785 = vst.msk [vmem:[#allocation2 + $0xd0] sm:$0xff] %vm179, %v5753
    %5786 = vst.msk [vmem:[#allocation2 + $0xd8] sm:$0xff] %vm179, %v5754
    %5787 = vst.msk [vmem:[#allocation2 + $0xe0] sm:$0xff] %vm179, %v5755
    %5788 = vst.msk [vmem:[#allocation2 + $0xe8] sm:$0xff] %vm179, %v5756
    %5789 = vst.msk [vmem:[#allocation2 + $0xf0] sm:$0xff] %vm179, %v5757
    %5790 = vst.msk [vmem:[#allocation2 + $0xf8] sm:$0xff] %vm179, %v5758
    // Predicated region
    $region18: #{multi_head_attention.1} parent=1 // pred_check
      _
    $region19: #{multi_head_attention.1} parent=1 // pred_check_branch
      %5792 = sbr.rel (0) target = $region21
    $region20: #{multi_head_attention.1} parent=1 // pred_region
      %5794 = vsyncadd [#allocation3], 0
      %s5795 = sshll.u32 [#allocation2], 4
      %s5796 = int_to_ptr.vmem [resolvable:$true] %s5795
      %s5797 = sshll.u32 %s4, 4
      %s5798 = int_to_ptr.hbm [resolvable:$true] %s5797
      %5803 = dma.vmem_to_hbm [thread:$0]  %s5796, 4096, %s5798, [#allocation3], 128, 128, 8
    $region21: #{multi_head_attention.1} parent=1 // pred_fallthru
      _
    // Predicated region
    $region22: #{multi_head_attention.1} parent=1 // pred_check
      _
    $region23: #{multi_head_attention.1} parent=1 // pred_check_branch
      %5805 = sbr.rel (0) target = $region25
    $region24: #{multi_head_attention.1} parent=1 // pred_region
      %5807 = dma.done [#allocation3], 4096
    $region25: #{multi_head_attention.1} parent=1 // pred_fallthru
      _
    %5808 = vsyncpa [#allocation3], 1

</llo_original>
